<compile_context>
chip_gen: v7x
topology: tpu7x:2x2x1
jax: 0.10.0
libtpu: 0.0.40
codegen_flags: <defaults>
</compile_context>

<pallas_src>
import functools

import jax
import jax.numpy as jnp
from jax import lax
from jax.experimental import pallas as pl
from jax.experimental.pallas import tpu as pltpu

_TILE_TOKENS = 512  # production token tile (lane axis); clipped / split below


def _token_tile(n):
    """Token-tile size. Small n -> one full-extent tile; larger n -> at least two
    lane-aligned (multiple-of-128) tiles so the parallel grid axis can be
    sharded across v7x's two TensorCores."""
    if n <= 256:
        return n
    half = -(-n // 2)                 # ceil(n / 2)
    half = -(-half // 128) * 128      # round up to a multiple of 128 lanes
    return min(_TILE_TOKENS, half)


# --------------------------------------------------------------------------- #
# Fused SparseMoE kernel (router + gated expert mixture), lane-dense layout    #
# --------------------------------------------------------------------------- #
def _moe_kernel(xt_ref, gt_ref, wr_ref, br_ref, w1_ref, b1_ref, w2_ref, b2_ref,
                out_ref, probs_ref, idx_ref, *, top_k, num_experts):
    # xt_ref:    (D, T)    bf16  activations, tokens on the lane axis (streamed)
    # gt_ref:    (E, T)    f32   pre-drawn standard-normal noise      (streamed)
    # wr_ref:    (2E, D)   bf16  fused (route | noise) weight         (resident)
    # br_ref:    (2E, 1)   f32   fused bias                           (resident)
    # w1_ref:    (E, H, D) bf16  expert up-proj, PyTorch (out,in)     (resident)
    # b1_ref:    (E, H, 1) f32                                        (resident)
    # w2_ref:    (E, D, H) bf16  expert down-proj                     (resident)
    # b2_ref:    (E, D, 1) f32                                        (resident)
    # out_ref:   (D, T)    f32   mixture output
    # probs_ref: (E, T)    f32   router softmax (exactly top_k nonzeros/column)
    # idx_ref:   (top_k,T) i32   selected experts, descending-prob order
    x_bf = xt_ref[...]

    # ----------------- Router: fused (route | noise) projection ------------- #
    fused = jnp.dot(wr_ref[...], x_bf,
                    preferred_element_type=jnp.float32) + br_ref[...]     # (2E, T)
    logits = fused[:num_experts, :]
    noise_logits = fused[num_experts:, :]
    # noisy = logits + randn * softplus(noise_logits)   (f32 epilogue, EUP)
    noisy = logits + gt_ref[...] * jax.nn.softplus(noise_logits)          # (E, T)

    # Top-k over the expert (sublane) axis; unrolled, first-occurrence tie-break.
    ids = lax.broadcasted_iota(jnp.int32, noisy.shape, 0)
    neg_inf = jnp.float32(-jnp.inf)
    work = noisy
    keep = jnp.zeros(noisy.shape, dtype=jnp.bool_)
    idx_rows = []
    for _ in range(top_k):  # top_k is small & static -> unrolled
        m = jnp.max(work, axis=0, keepdims=True)
        sel_idx = jnp.min(jnp.where(work == m, ids, num_experts),
                          axis=0, keepdims=True)                          # (1, T)
        sel = ids == sel_idx
        keep = jnp.logical_or(keep, sel)
        work = jnp.where(sel, neg_inf, work)
        idx_rows.append(sel_idx)

    # scatter(-inf elsewhere) + softmax over the expert axis.
    sparse = jnp.where(keep, noisy, neg_inf)
    mx = jnp.max(sparse, axis=0, keepdims=True)
    ex = jnp.exp(sparse - mx)
    probs = ex / jnp.sum(ex, axis=0, keepdims=True)                       # (E, T) f32
    probs_ref[...] = probs.astype(probs_ref.dtype)
    idx_ref[...] = jnp.concatenate(idx_rows, axis=0).astype(jnp.int32)

    # -------- Experts: gated dense mixture (gate==0 exactly if unselected) -- #
    acc = jnp.zeros(out_ref.shape, jnp.float32)
    for e in range(num_experts):   # small static loop; all weights VMEM-resident
        h = jnp.dot(w1_ref[e], x_bf,
                    preferred_element_type=jnp.float32) + b1_ref[e]       # (H, T) f32
        h = jnp.maximum(h, 0.0).astype(jnp.bfloat16)                      # ReLU -> bf16
        y = jnp.dot(w2_ref[e], h,
                    preferred_element_type=jnp.float32) + b2_ref[e]       # (D, T) f32
        acc = acc + probs[e:e + 1, :] * y                                 # (1,T)*(D,T)
    out_ref[...] = acc.astype(out_ref.dtype)


def sparse_moe_forward(x, router_params, expert_params, gauss, top_k):
    """Full SparseMoE forward pass (single fused Pallas kernel).

    x: (B, T, D) f32
    router_params = (w_route (E,D), b_route (E,), w_noise (E,D), b_noise (E,))
    expert_params = (w1 (E,H,D), b1 (E,H), w2 (E,D,H), b2 (E,D))   [PyTorch (out,in)]
    gauss: (B, T, E) pre-drawn standard normal (torch.randn_like parity).
    Returns (final_output (B,T,D) f32, router_output (B,T,E) f32, indices (B,T,top_k) i32).
    """
    B, T, D = x.shape
    w_route, b_route, w_noise, b_noise = router_params
    w1, b1, w2, b2 = expert_params
    E = w_route.shape[0]
    H = w1.shape[1]
    assert 0 < top_k < E, "top_k must be in (0, num_experts)"

    N = B * T
    tile = _token_tile(N)
    n_pad = pl.cdiv(N, tile) * tile

    def _pad_tokens(a):  # pad along the token (first) axis
        if a.shape[0] == n_pad:
            return a
        return jnp.pad(a, [(0, n_pad - a.shape[0])] + [(0, 0)] * (a.ndim - 1))

    # Single lane-dense bf16 copy of the activations (tokens on the lane axis).
    xt = _pad_tokens(x.reshape(N, D)).T.astype(jnp.bfloat16)              # (D, Np)
    gt = _pad_tokens(gauss.reshape(N, E)).T.astype(jnp.float32)           # (E, Np)

    # Fused (route | noise) projection; PyTorch Linear weights are (out, in).
    wr = jnp.concatenate([w_route, w_noise], axis=0).astype(jnp.bfloat16)  # (2E, D)
    br = jnp.concatenate([b_route, b_noise], axis=0).reshape(2 * E, 1)
    br = br.astype(jnp.float32)                                            # (2E, 1)

    w1b = w1.astype(jnp.bfloat16)                                          # (E, H, D)
    b1r = b1.reshape(E, H, 1).astype(jnp.float32)                          # (E, H, 1)
    w2b = w2.astype(jnp.bfloat16)                                          # (E, D, H)
    b2r = b2.reshape(E, D, 1).astype(jnp.float32)                          # (E, D, 1)

    kernel = functools.partial(_moe_kernel, top_k=top_k, num_experts=E)

    bytes_accessed = (n_pad * D * 2 + n_pad * E * 4                 # xt, gt
                      + 2 * E * D * 2 + 2 * E * 4                   # router weights
                      + 2 * E * D * H * 2 + E * (H + D) * 4         # expert weights
                      + n_pad * D * 4 + n_pad * E * 4 + n_pad * top_k * 4)  # outputs

    out_t, probs_t, idx_t = pl.pallas_call(
        kernel,
        out_shape=(jax.ShapeDtypeStruct((D, n_pad), jnp.float32),
                   jax.ShapeDtypeStruct((E, n_pad), jnp.float32),
                   jax.ShapeDtypeStruct((top_k, n_pad), jnp.int32)),
        grid=(n_pad // tile,),
        in_specs=[
            pl.BlockSpec((D, tile), lambda i: (0, i)),         # activations (streamed)
            pl.BlockSpec((E, tile), lambda i: (0, i)),         # gaussian noise (streamed)
            pl.BlockSpec((2 * E, D), lambda i: (0, 0)),        # fused router weight
            pl.BlockSpec((2 * E, 1), lambda i: (0, 0)),        # fused router bias
            pl.BlockSpec((E, H, D), lambda i: (0, 0, 0)),      # expert W1 (resident)
            pl.BlockSpec((E, H, 1), lambda i: (0, 0, 0)),      # expert b1
            pl.BlockSpec((E, D, H), lambda i: (0, 0, 0)),      # expert W2 (resident)
            pl.BlockSpec((E, D, 1), lambda i: (0, 0, 0)),      # expert b2
        ],
        out_specs=(pl.BlockSpec((D, tile), lambda i: (0, i)),
                   pl.BlockSpec((E, tile), lambda i: (0, i)),
                   pl.BlockSpec((top_k, tile), lambda i: (0, i))),
        compiler_params=pltpu.CompilerParams(
            dimension_semantics=("parallel",),
            vmem_limit_bytes=48 * 1024 * 1024),   # fits v7x's 64 MiB physical VMEM
        cost_estimate=pl.CostEstimate(
            flops=2 * n_pad * D * 2 * E + 4 * n_pad * E * D * H,
            transcendentals=3 * n_pad * E,
            bytes_accessed=bytes_accessed),
    )(xt, gt, wr, br, w1b, b1r, w2b, b2r)

    final = out_t.T[:N].reshape(B, T, D)
    probs = probs_t.T[:N].reshape(B, T, E)
    idx = idx_t.T[:N].reshape(B, T, top_k)
    return final, probs, idx


if __name__ == "__main__":
    # Small shapes implied by the module: batch=2, seq=8, n_embed=32, experts=8, top_k=2
    B, T, D, E, TOP_K = 2, 8, 32, 8, 2
    H = 4 * D

    key = jax.random.PRNGKey(0)
    (kx, kg, kwr, kbr, kwn, kbn, kw1, kb1, kw2, kb2) = jax.random.split(key, 10)

    # PyTorch Linear-style uniform(-1/sqrt(fan_in), 1/sqrt(fan_in)) init,
    # weights in PyTorch (out_features, in_features) layout.
    bound_d = 1.0 / (D ** 0.5)
    bound_h = 1.0 / (H ** 0.5)
    w_route = jax.random.uniform(kwr, (E, D), jnp.float32, -bound_d, bound_d)
    b_route = jax.random.uniform(kbr, (E,), jnp.float32, -bound_d, bound_d)
    w_noise = jax.random.uniform(kwn, (E, D), jnp.float32, -bound_d, bound_d)
    b_noise = jax.random.uniform(kbn, (E,), jnp.float32, -bound_d, bound_d)
    w1 = jax.random.uniform(kw1, (E, H, D), jnp.float32, -bound_d, bound_d)   # (out,in)
    b1 = jax.random.uniform(kb1, (E, H), jnp.float32, -bound_d, bound_d)
    w2 = jax.random.uniform(kw2, (E, D, H), jnp.float32, -bound_h, bound_h)   # (out,in)
    b2 = jax.random.uniform(kb2, (E, D), jnp.float32, -bound_h, bound_h)

    x = jax.random.normal(kx, (B, T, D), jnp.float32)
    gauss = jax.random.normal(kg, (B, T, E), jnp.float32)   # torch.randn_like(logits)

    final, router_output, indices = sparse_moe_forward(
        x, (w_route, b_route, w_noise, b_noise), (w1, b1, w2, b2), gauss, TOP_K)
    jax.block_until_ready((final, router_output, indices))

    # Sanity: router probs sum to 1, exactly top_k nonzeros, valid indices.
    row_sums = jnp.sum(router_output, axis=-1)
    nnz = jnp.sum(router_output > 0, axis=-1)
    assert final.shape == (B, T, D)
    assert bool(jnp.all(jnp.isfinite(final)))
    assert bool(jnp.allclose(row_sums, 1.0, atol=1e-5))
    assert bool(jnp.all(nnz == TOP_K))
    assert indices.shape == (B, T, TOP_K)
    assert bool(jnp.all((indices >= 0) & (indices < E)))
    assert bool(jnp.all(jnp.take_along_axis(router_output, indices, axis=-1) > 0))

    # Cross-check the expert mixture against a pure-JAX f32 dense reference
    # (kernel matmuls run in bf16 -> tolerance-based comparison).
    def ref_moe(xf, gates):
        out = jnp.zeros_like(xf)
        for e in range(E):
            h = jnp.maximum(xf @ w1[e].T + b1[e], 0.0)
            y = h @ w2[e].T + b2[e]
            out = out + gates[:, e:e + 1] * y
        return out

    ref = ref_moe(x.reshape(-1, D), router_output.reshape(-1, E)).reshape(B, T, D)
    assert bool(jnp.allclose(final, ref, rtol=2e-2, atol=2e-2))

    print("KERNEL_OK")
</pallas_src>

<mosaic_0001>
module attributes {stable_mosaic.version = 11 : i64} {
  func.func @_moe_kernel(%arg0: i32, %arg1: memref<32x16xbf16, #tpu.memory_space<vmem>>, %arg2: memref<8x16xf32, #tpu.memory_space<vmem>>, %arg3: memref<16x32xbf16, #tpu.memory_space<vmem>>, %arg4: memref<16x1xf32, #tpu.memory_space<vmem>>, %arg5: memref<8x128x32xbf16, #tpu.memory_space<vmem>>, %arg6: memref<8x128x1xf32, #tpu.memory_space<vmem>>, %arg7: memref<8x32x128xbf16, #tpu.memory_space<vmem>>, %arg8: memref<8x32x1xf32, #tpu.memory_space<vmem>>, %arg9: memref<32x16xf32, #tpu.memory_space<vmem>>, %arg10: memref<8x16xf32, #tpu.memory_space<vmem>>, %arg11: memref<2x16xi32, #tpu.memory_space<vmem>>) attributes {dimension_semantics = [#tpu.dimension_semantics<parallel>], iteration_bounds = array<i64: 1>, scalar_prefetch = 0 : i64, scratch_operands = 0 : i64, tpu.core_type = #tpu.core_type<tc>, window_params = [{transform_indices = @transform_0, window_bounds = array<i64: 32, 16>}, {transform_indices = @transform_1, window_bounds = array<i64: 8, 16>}, {pipeline_mode = #tpu.pipeline_mode<synchronous>, transform_indices = @transform_2, window_bounds = array<i64: 16, 32>}, {pipeline_mode = #tpu.pipeline_mode<synchronous>, transform_indices = @transform_3, window_bounds = array<i64: 16, 1>}, {pipeline_mode = #tpu.pipeline_mode<synchronous>, transform_indices = @transform_4, window_bounds = array<i64: 8, 128, 32>}, {pipeline_mode = #tpu.pipeline_mode<synchronous>, transform_indices = @transform_5, window_bounds = array<i64: 8, 128, 1>}, {pipeline_mode = #tpu.pipeline_mode<synchronous>, transform_indices = @transform_6, window_bounds = array<i64: 8, 32, 128>}, {pipeline_mode = #tpu.pipeline_mode<synchronous>, transform_indices = @transform_7, window_bounds = array<i64: 8, 32, 1>}, {transform_indices = @transform_8, window_bounds = array<i64: 32, 16>}, {transform_indices = @transform_9, window_bounds = array<i64: 8, 16>}, {transform_indices = @transform_10, window_bounds = array<i64: 2, 16>}]} {
    %c0 = arith.constant 0 : index
    %c0_0 = arith.constant 0 : index
    %0 = vector.load %arg1[%c0, %c0_0] : memref<32x16xbf16, #tpu.memory_space<vmem>>, vector<32x16xbf16>
    %c0_1 = arith.constant 0 : index
    %c0_2 = arith.constant 0 : index
    %1 = vector.load %arg3[%c0_1, %c0_2] : memref<16x32xbf16, #tpu.memory_space<vmem>>, vector<16x32xbf16>
    %cst = arith.constant dense<0.000000e+00> : vector<16x16xf32>
    %2 = tpu.matmul %1, %0, %cst {dimension_numbers = #tpu.dot_dimension_numbers<[1], [0], [0], [1], [0, 0, 1, 1], [], []>} : vector<16x32xbf16>, vector<32x16xbf16>, vector<16x16xf32> -> vector<16x16xf32>
    %c0_3 = arith.constant 0 : index
    %c0_4 = arith.constant 0 : index
    %3 = vector.load %arg4[%c0_3, %c0_4] : memref<16x1xf32, #tpu.memory_space<vmem>>, vector<16x1xf32>
    %4 = vector.broadcast %3 : vector<16x1xf32> to vector<16x16xf32>
    %5 = arith.addf %2, %4 : vector<16x16xf32>
    %6 = vector.extract_strided_slice %5 {offsets = [0, 0], sizes = [8, 16], strides = [1, 1]} : vector<16x16xf32> to vector<8x16xf32>
    %7 = vector.extract_strided_slice %5 {offsets = [8, 0], sizes = [8, 16], strides = [1, 1]} : vector<16x16xf32> to vector<8x16xf32>
    %c0_5 = arith.constant 0 : index
    %c0_6 = arith.constant 0 : index
    %8 = vector.load %arg2[%c0_5, %c0_6] : memref<8x16xf32, #tpu.memory_space<vmem>>, vector<8x16xf32>
    %cst_7 = arith.constant 0.000000e+00 : f32
    %9 = vector.broadcast %cst_7 : f32 to vector<8x16xf32>
    %10 = arith.maximumf %7, %9 : vector<8x16xf32>
    %11 = vector.broadcast %cst_7 : f32 to vector<8x16xf32>
    %12 = arith.subf %7, %11 : vector<8x16xf32>
    %13 = arith.cmpf one, %12, %12 : vector<8x16xf32>
    %14 = vector.broadcast %cst_7 : f32 to vector<8x16xf32>
    %15 = arith.addf %7, %14 : vector<8x16xf32>
    %16 = math.absf %12 : vector<8x16xf32>
    %cst_8 = arith.constant 0.000000e+00 : f32
    %17 = vector.broadcast %cst_8 : f32 to vector<8x16xf32>
    %18 = arith.subf %17, %16 : vector<8x16xf32>
    %19 = math.exp %18 : vector<8x16xf32>
    %20 = math.log1p %19 : vector<8x16xf32>
    %21 = arith.addf %10, %20 : vector<8x16xf32>
    %22 = arith.select %13, %15, %21 : vector<8x16xi1>, vector<8x16xf32>
    %23 = arith.mulf %8, %22 : vector<8x16xf32>
    %24 = arith.addf %6, %23 : vector<8x16xf32>
    %25 = tpu.iota {dimensions = array<i32: 0>} : vector<8x16xi32>
    %false = arith.constant false
    %26 = vector.broadcast %false : i1 to vector<8x16xi1>
    %cst_9 = arith.constant dense<0xFF800000> : vector<16xf32>
    %27 = vector.multi_reduction <maximumf>, %24, %cst_9 [0] : vector<8x16xf32> to vector<16xf32>
    %28 = vector.shape_cast %27 : vector<16xf32> to vector<1x16xf32>
    %29 = vector.broadcast %28 : vector<1x16xf32> to vector<8x16xf32>
    %30 = arith.cmpf oeq, %24, %29 : vector<8x16xf32>
    %c8_i32 = arith.constant 8 : i32
    %31 = vector.broadcast %c8_i32 : i32 to vector<8x16xi32>
    %32 = arith.select %30, %25, %31 : vector<8x16xi1>, vector<8x16xi32>
    %cst_10 = arith.constant dense<2147483647> : vector<16xi32>
    %33 = vector.multi_reduction <minsi>, %32, %cst_10 [0] : vector<8x16xi32> to vector<16xi32>
    %34 = vector.shape_cast %33 : vector<16xi32> to vector<1x16xi32>
    %35 = vector.broadcast %34 : vector<1x16xi32> to vector<8x16xi32>
    %36 = arith.cmpi eq, %25, %35 : vector<8x16xi32>
    %37 = arith.ori %26, %36 : vector<8x16xi1>
    %cst_11 = arith.constant 0xFF800000 : f32
    %38 = vector.broadcast %cst_11 : f32 to vector<8x16xf32>
    %39 = arith.select %36, %38, %24 : vector<8x16xi1>, vector<8x16xf32>
    %cst_12 = arith.constant dense<0xFF800000> : vector<16xf32>
    %40 = vector.multi_reduction <maximumf>, %39, %cst_12 [0] : vector<8x16xf32> to vector<16xf32>
    %41 = vector.shape_cast %40 : vector<16xf32> to vector<1x16xf32>
    %42 = vector.broadcast %41 : vector<1x16xf32> to vector<8x16xf32>
    %43 = arith.cmpf oeq, %39, %42 : vector<8x16xf32>
    %c8_i32_13 = arith.constant 8 : i32
    %44 = vector.broadcast %c8_i32_13 : i32 to vector<8x16xi32>
    %45 = arith.select %43, %25, %44 : vector<8x16xi1>, vector<8x16xi32>
    %cst_14 = arith.constant dense<2147483647> : vector<16xi32>
    %46 = vector.multi_reduction <minsi>, %45, %cst_14 [0] : vector<8x16xi32> to vector<16xi32>
    %47 = vector.shape_cast %46 : vector<16xi32> to vector<1x16xi32>
    %48 = vector.broadcast %47 : vector<1x16xi32> to vector<8x16xi32>
    %49 = arith.cmpi eq, %25, %48 : vector<8x16xi32>
    %50 = arith.ori %37, %49 : vector<8x16xi1>
    %cst_15 = arith.constant 0xFF800000 : f32
    %51 = vector.broadcast %cst_15 : f32 to vector<8x16xf32>
    %52 = arith.select %50, %24, %51 : vector<8x16xi1>, vector<8x16xf32>
    %cst_16 = arith.constant dense<0xFF800000> : vector<16xf32>
    %53 = vector.multi_reduction <maximumf>, %52, %cst_16 [0] : vector<8x16xf32> to vector<16xf32>
    %54 = vector.shape_cast %53 : vector<16xf32> to vector<1x16xf32>
    %55 = vector.broadcast %54 : vector<1x16xf32> to vector<8x16xf32>
    %56 = arith.subf %52, %55 : vector<8x16xf32>
    %57 = math.exp %56 : vector<8x16xf32>
    %cst_17 = arith.constant dense<0.000000e+00> : vector<16xf32>
    %58 = vector.multi_reduction <add>, %57, %cst_17 [0] : vector<8x16xf32> to vector<16xf32>
    %59 = vector.shape_cast %58 : vector<16xf32> to vector<1x16xf32>
    %60 = vector.broadcast %59 : vector<1x16xf32> to vector<8x16xf32>
    %61 = arith.divf %57, %60 : vector<8x16xf32>
    %c0_18 = arith.constant 0 : index
    %c0_19 = arith.constant 0 : index
    %62 = vector.load %arg10[%c0_18, %c0_19] : memref<8x16xf32, #tpu.memory_space<vmem>>, vector<8x16xf32>
    tpu.vector_store %arg10[%c0_18, %c0_19], %61 {strides = array<i32>} : memref<8x16xf32, #tpu.memory_space<vmem>>, vector<8x16xf32>,
    %63 = tpu.concatenate %34, %47 in 0 : vector<1x16xi32>, vector<1x16xi32> -> vector<2x16xi32>
    %c0_20 = arith.constant 0 : index
    %c0_21 = arith.constant 0 : index
    %64 = vector.load %arg11[%c0_20, %c0_21] : memref<2x16xi32, #tpu.memory_space<vmem>>, vector<2x16xi32>
    tpu.vector_store %arg11[%c0_20, %c0_21], %63 {strides = array<i32>} : memref<2x16xi32, #tpu.memory_space<vmem>>, vector<2x16xi32>,
    %cst_22 = arith.constant 0.000000e+00 : f32
    %65 = vector.broadcast %cst_22 : f32 to vector<32x16xf32>
    %c0_23 = arith.constant 0 : index
    %c0_24 = arith.constant 0 : index
    %c0_25 = arith.constant 0 : index
    %66 = vector.load %arg5[%c0_23, %c0_24, %c0_25] : memref<8x128x32xbf16, #tpu.memory_space<vmem>>, vector<1x128x32xbf16>
    %67 = vector.shape_cast %66 : vector<1x128x32xbf16> to vector<128x32xbf16>
    %cst_26 = arith.constant dense<0.000000e+00> : vector<128x16xf32>
    %68 = tpu.matmul %67, %0, %cst_26 {dimension_numbers = #tpu.dot_dimension_numbers<[1], [0], [0], [1], [0, 0, 1, 1], [], []>} : vector<128x32xbf16>, vector<32x16xbf16>, vector<128x16xf32> -> vector<128x16xf32>
    %c0_27 = arith.constant 0 : index
    %c0_28 = arith.constant 0 : index
    %c0_29 = arith.constant 0 : index
    %69 = vector.load %arg6[%c0_27, %c0_28, %c0_29] : memref<8x128x1xf32, #tpu.memory_space<vmem>>, vector<1x128x1xf32>
    %70 = vector.shape_cast %69 : vector<1x128x1xf32> to vector<128x1xf32>
    %71 = vector.broadcast %70 : vector<128x1xf32> to vector<128x16xf32>
    %72 = arith.addf %68, %71 : vector<128x16xf32>
    %cst_30 = arith.constant 0.000000e+00 : f32
    %73 = vector.broadcast %cst_30 : f32 to vector<128x16xf32>
    %74 = arith.maximumf %72, %73 : vector<128x16xf32>
    %75 = arith.truncf %74 : vector<128x16xf32> to vector<128x16xbf16>
    %c0_31 = arith.constant 0 : index
    %c0_32 = arith.constant 0 : index
    %c0_33 = arith.constant 0 : index
    %76 = vector.load %arg7[%c0_31, %c0_32, %c0_33] : memref<8x32x128xbf16, #tpu.memory_space<vmem>>, vector<1x32x128xbf16>
    %77 = vector.shape_cast %76 : vector<1x32x128xbf16> to vector<32x128xbf16>
    %cst_34 = arith.constant dense<0.000000e+00> : vector<32x16xf32>
    %78 = tpu.matmul %77, %75, %cst_34 {dimension_numbers = #tpu.dot_dimension_numbers<[1], [0], [0], [1], [0, 0, 1, 1], [], []>} : vector<32x128xbf16>, vector<128x16xbf16>, vector<32x16xf32> -> vector<32x16xf32>
    %c0_35 = arith.constant 0 : index
    %c0_36 = arith.constant 0 : index
    %c0_37 = arith.constant 0 : index
    %79 = vector.load %arg8[%c0_35, %c0_36, %c0_37] : memref<8x32x1xf32, #tpu.memory_space<vmem>>, vector<1x32x1xf32>
    %80 = vector.shape_cast %79 : vector<1x32x1xf32> to vector<32x1xf32>
    %81 = vector.broadcast %80 : vector<32x1xf32> to vector<32x16xf32>
    %82 = arith.addf %78, %81 : vector<32x16xf32>
    %83 = vector.extract_strided_slice %61 {offsets = [0, 0], sizes = [1, 16], strides = [1, 1]} : vector<8x16xf32> to vector<1x16xf32>
    %84 = vector.broadcast %83 : vector<1x16xf32> to vector<32x16xf32>
    %85 = arith.mulf %84, %82 : vector<32x16xf32>
    %86 = arith.addf %65, %85 : vector<32x16xf32>
    %c1 = arith.constant 1 : index
    %c0_38 = arith.constant 0 : index
    %c0_39 = arith.constant 0 : index
    %87 = vector.load %arg5[%c1, %c0_38, %c0_39] : memref<8x128x32xbf16, #tpu.memory_space<vmem>>, vector<1x128x32xbf16>
    %88 = vector.shape_cast %87 : vector<1x128x32xbf16> to vector<128x32xbf16>
    %cst_40 = arith.constant dense<0.000000e+00> : vector<128x16xf32>
    %89 = tpu.matmul %88, %0, %cst_40 {dimension_numbers = #tpu.dot_dimension_numbers<[1], [0], [0], [1], [0, 0, 1, 1], [], []>} : vector<128x32xbf16>, vector<32x16xbf16>, vector<128x16xf32> -> vector<128x16xf32>
    %c1_41 = arith.constant 1 : index
    %c0_42 = arith.constant 0 : index
    %c0_43 = arith.constant 0 : index
    %90 = vector.load %arg6[%c1_41, %c0_42, %c0_43] : memref<8x128x1xf32, #tpu.memory_space<vmem>>, vector<1x128x1xf32>
    %91 = vector.shape_cast %90 : vector<1x128x1xf32> to vector<128x1xf32>
    %92 = vector.broadcast %91 : vector<128x1xf32> to vector<128x16xf32>
    %93 = arith.addf %89, %92 : vector<128x16xf32>
    %cst_44 = arith.constant 0.000000e+00 : f32
    %94 = vector.broadcast %cst_44 : f32 to vector<128x16xf32>
    %95 = arith.maximumf %93, %94 : vector<128x16xf32>
    %96 = arith.truncf %95 : vector<128x16xf32> to vector<128x16xbf16>
    %c1_45 = arith.constant 1 : index
    %c0_46 = arith.constant 0 : index
    %c0_47 = arith.constant 0 : index
    %97 = vector.load %arg7[%c1_45, %c0_46, %c0_47] : memref<8x32x128xbf16, #tpu.memory_space<vmem>>, vector<1x32x128xbf16>
    %98 = vector.shape_cast %97 : vector<1x32x128xbf16> to vector<32x128xbf16>
    %cst_48 = arith.constant dense<0.000000e+00> : vector<32x16xf32>
    %99 = tpu.matmul %98, %96, %cst_48 {dimension_numbers = #tpu.dot_dimension_numbers<[1], [0], [0], [1], [0, 0, 1, 1], [], []>} : vector<32x128xbf16>, vector<128x16xbf16>, vector<32x16xf32> -> vector<32x16xf32>
    %c1_49 = arith.constant 1 : index
    %c0_50 = arith.constant 0 : index
    %c0_51 = arith.constant 0 : index
    %100 = vector.load %arg8[%c1_49, %c0_50, %c0_51] : memref<8x32x1xf32, #tpu.memory_space<vmem>>, vector<1x32x1xf32>
    %101 = vector.shape_cast %100 : vector<1x32x1xf32> to vector<32x1xf32>
    %102 = vector.broadcast %101 : vector<32x1xf32> to vector<32x16xf32>
    %103 = arith.addf %99, %102 : vector<32x16xf32>
    %104 = vector.extract_strided_slice %61 {offsets = [1, 0], sizes = [1, 16], strides = [1, 1]} : vector<8x16xf32> to vector<1x16xf32>
    %105 = vector.broadcast %104 : vector<1x16xf32> to vector<32x16xf32>
    %106 = arith.mulf %105, %103 : vector<32x16xf32>
    %107 = arith.addf %86, %106 : vector<32x16xf32>
    %c2 = arith.constant 2 : index
    %c0_52 = arith.constant 0 : index
    %c0_53 = arith.constant 0 : index
    %108 = vector.load %arg5[%c2, %c0_52, %c0_53] : memref<8x128x32xbf16, #tpu.memory_space<vmem>>, vector<1x128x32xbf16>
    %109 = vector.shape_cast %108 : vector<1x128x32xbf16> to vector<128x32xbf16>
    %cst_54 = arith.constant dense<0.000000e+00> : vector<128x16xf32>
    %110 = tpu.matmul %109, %0, %cst_54 {dimension_numbers = #tpu.dot_dimension_numbers<[1], [0], [0], [1], [0, 0, 1, 1], [], []>} : vector<128x32xbf16>, vector<32x16xbf16>, vector<128x16xf32> -> vector<128x16xf32>
    %c2_55 = arith.constant 2 : index
    %c0_56 = arith.constant 0 : index
    %c0_57 = arith.constant 0 : index
    %111 = vector.load %arg6[%c2_55, %c0_56, %c0_57] : memref<8x128x1xf32, #tpu.memory_space<vmem>>, vector<1x128x1xf32>
    %112 = vector.shape_cast %111 : vector<1x128x1xf32> to vector<128x1xf32>
    %113 = vector.broadcast %112 : vector<128x1xf32> to vector<128x16xf32>
    %114 = arith.addf %110, %113 : vector<128x16xf32>
    %cst_58 = arith.constant 0.000000e+00 : f32
    %115 = vector.broadcast %cst_58 : f32 to vector<128x16xf32>
    %116 = arith.maximumf %114, %115 : vector<128x16xf32>
    %117 = arith.truncf %116 : vector<128x16xf32> to vector<128x16xbf16>
    %c2_59 = arith.constant 2 : index
    %c0_60 = arith.constant 0 : index
    %c0_61 = arith.constant 0 : index
    %118 = vector.load %arg7[%c2_59, %c0_60, %c0_61] : memref<8x32x128xbf16, #tpu.memory_space<vmem>>, vector<1x32x128xbf16>
    %119 = vector.shape_cast %118 : vector<1x32x128xbf16> to vector<32x128xbf16>
    %cst_62 = arith.constant dense<0.000000e+00> : vector<32x16xf32>
    %120 = tpu.matmul %119, %117, %cst_62 {dimension_numbers = #tpu.dot_dimension_numbers<[1], [0], [0], [1], [0, 0, 1, 1], [], []>} : vector<32x128xbf16>, vector<128x16xbf16>, vector<32x16xf32> -> vector<32x16xf32>
    %c2_63 = arith.constant 2 : index
    %c0_64 = arith.constant 0 : index
    %c0_65 = arith.constant 0 : index
    %121 = vector.load %arg8[%c2_63, %c0_64, %c0_65] : memref<8x32x1xf32, #tpu.memory_space<vmem>>, vector<1x32x1xf32>
    %122 = vector.shape_cast %121 : vector<1x32x1xf32> to vector<32x1xf32>
    %123 = vector.broadcast %122 : vector<32x1xf32> to vector<32x16xf32>
    %124 = arith.addf %120, %123 : vector<32x16xf32>
    %125 = vector.extract_strided_slice %61 {offsets = [2, 0], sizes = [1, 16], strides = [1, 1]} : vector<8x16xf32> to vector<1x16xf32>
    %126 = vector.broadcast %125 : vector<1x16xf32> to vector<32x16xf32>
    %127 = arith.mulf %126, %124 : vector<32x16xf32>
    %128 = arith.addf %107, %127 : vector<32x16xf32>
    %c3 = arith.constant 3 : index
    %c0_66 = arith.constant 0 : index
    %c0_67 = arith.constant 0 : index
    %129 = vector.load %arg5[%c3, %c0_66, %c0_67] : memref<8x128x32xbf16, #tpu.memory_space<vmem>>, vector<1x128x32xbf16>
    %130 = vector.shape_cast %129 : vector<1x128x32xbf16> to vector<128x32xbf16>
    %cst_68 = arith.constant dense<0.000000e+00> : vector<128x16xf32>
    %131 = tpu.matmul %130, %0, %cst_68 {dimension_numbers = #tpu.dot_dimension_numbers<[1], [0], [0], [1], [0, 0, 1, 1], [], []>} : vector<128x32xbf16>, vector<32x16xbf16>, vector<128x16xf32> -> vector<128x16xf32>
    %c3_69 = arith.constant 3 : index
    %c0_70 = arith.constant 0 : index
    %c0_71 = arith.constant 0 : index
    %132 = vector.load %arg6[%c3_69, %c0_70, %c0_71] : memref<8x128x1xf32, #tpu.memory_space<vmem>>, vector<1x128x1xf32>
    %133 = vector.shape_cast %132 : vector<1x128x1xf32> to vector<128x1xf32>
    %134 = vector.broadcast %133 : vector<128x1xf32> to vector<128x16xf32>
    %135 = arith.addf %131, %134 : vector<128x16xf32>
    %cst_72 = arith.constant 0.000000e+00 : f32
    %136 = vector.broadcast %cst_72 : f32 to vector<128x16xf32>
    %137 = arith.maximumf %135, %136 : vector<128x16xf32>
    %138 = arith.truncf %137 : vector<128x16xf32> to vector<128x16xbf16>
    %c3_73 = arith.constant 3 : index
    %c0_74 = arith.constant 0 : index
    %c0_75 = arith.constant 0 : index
    %139 = vector.load %arg7[%c3_73, %c0_74, %c0_75] : memref<8x32x128xbf16, #tpu.memory_space<vmem>>, vector<1x32x128xbf16>
    %140 = vector.shape_cast %139 : vector<1x32x128xbf16> to vector<32x128xbf16>
    %cst_76 = arith.constant dense<0.000000e+00> : vector<32x16xf32>
    %141 = tpu.matmul %140, %138, %cst_76 {dimension_numbers = #tpu.dot_dimension_numbers<[1], [0], [0], [1], [0, 0, 1, 1], [], []>} : vector<32x128xbf16>, vector<128x16xbf16>, vector<32x16xf32> -> vector<32x16xf32>
    %c3_77 = arith.constant 3 : index
    %c0_78 = arith.constant 0 : index
    %c0_79 = arith.constant 0 : index
    %142 = vector.load %arg8[%c3_77, %c0_78, %c0_79] : memref<8x32x1xf32, #tpu.memory_space<vmem>>, vector<1x32x1xf32>
    %143 = vector.shape_cast %142 : vector<1x32x1xf32> to vector<32x1xf32>
    %144 = vector.broadcast %143 : vector<32x1xf32> to vector<32x16xf32>
    %145 = arith.addf %141, %144 : vector<32x16xf32>
    %146 = vector.extract_strided_slice %61 {offsets = [3, 0], sizes = [1, 16], strides = [1, 1]} : vector<8x16xf32> to vector<1x16xf32>
    %147 = vector.broadcast %146 : vector<1x16xf32> to vector<32x16xf32>
    %148 = arith.mulf %147, %145 : vector<32x16xf32>
    %149 = arith.addf %128, %148 : vector<32x16xf32>
    %c4 = arith.constant 4 : index
    %c0_80 = arith.constant 0 : index
    %c0_81 = arith.constant 0 : index
    %150 = vector.load %arg5[%c4, %c0_80, %c0_81] : memref<8x128x32xbf16, #tpu.memory_space<vmem>>, vector<1x128x32xbf16>
    %151 = vector.shape_cast %150 : vector<1x128x32xbf16> to vector<128x32xbf16>
    %cst_82 = arith.constant dense<0.000000e+00> : vector<128x16xf32>
    %152 = tpu.matmul %151, %0, %cst_82 {dimension_numbers = #tpu.dot_dimension_numbers<[1], [0], [0], [1], [0, 0, 1, 1], [], []>} : vector<128x32xbf16>, vector<32x16xbf16>, vector<128x16xf32> -> vector<128x16xf32>
    %c4_83 = arith.constant 4 : index
    %c0_84 = arith.constant 0 : index
    %c0_85 = arith.constant 0 : index
    %153 = vector.load %arg6[%c4_83, %c0_84, %c0_85] : memref<8x128x1xf32, #tpu.memory_space<vmem>>, vector<1x128x1xf32>
    %154 = vector.shape_cast %153 : vector<1x128x1xf32> to vector<128x1xf32>
    %155 = vector.broadcast %154 : vector<128x1xf32> to vector<128x16xf32>
    %156 = arith.addf %152, %155 : vector<128x16xf32>
    %cst_86 = arith.constant 0.000000e+00 : f32
    %157 = vector.broadcast %cst_86 : f32 to vector<128x16xf32>
    %158 = arith.maximumf %156, %157 : vector<128x16xf32>
    %159 = arith.truncf %158 : vector<128x16xf32> to vector<128x16xbf16>
    %c4_87 = arith.constant 4 : index
    %c0_88 = arith.constant 0 : index
    %c0_89 = arith.constant 0 : index
    %160 = vector.load %arg7[%c4_87, %c0_88, %c0_89] : memref<8x32x128xbf16, #tpu.memory_space<vmem>>, vector<1x32x128xbf16>
    %161 = vector.shape_cast %160 : vector<1x32x128xbf16> to vector<32x128xbf16>
    %cst_90 = arith.constant dense<0.000000e+00> : vector<32x16xf32>
    %162 = tpu.matmul %161, %159, %cst_90 {dimension_numbers = #tpu.dot_dimension_numbers<[1], [0], [0], [1], [0, 0, 1, 1], [], []>} : vector<32x128xbf16>, vector<128x16xbf16>, vector<32x16xf32> -> vector<32x16xf32>
    %c4_91 = arith.constant 4 : index
    %c0_92 = arith.constant 0 : index
    %c0_93 = arith.constant 0 : index
    %163 = vector.load %arg8[%c4_91, %c0_92, %c0_93] : memref<8x32x1xf32, #tpu.memory_space<vmem>>, vector<1x32x1xf32>
    %164 = vector.shape_cast %163 : vector<1x32x1xf32> to vector<32x1xf32>
    %165 = vector.broadcast %164 : vector<32x1xf32> to vector<32x16xf32>
    %166 = arith.addf %162, %165 : vector<32x16xf32>
    %167 = vector.extract_strided_slice %61 {offsets = [4, 0], sizes = [1, 16], strides = [1, 1]} : vector<8x16xf32> to vector<1x16xf32>
    %168 = vector.broadcast %167 : vector<1x16xf32> to vector<32x16xf32>
    %169 = arith.mulf %168, %166 : vector<32x16xf32>
    %170 = arith.addf %149, %169 : vector<32x16xf32>
    %c5 = arith.constant 5 : index
    %c0_94 = arith.constant 0 : index
    %c0_95 = arith.constant 0 : index
    %171 = vector.load %arg5[%c5, %c0_94, %c0_95] : memref<8x128x32xbf16, #tpu.memory_space<vmem>>, vector<1x128x32xbf16>
    %172 = vector.shape_cast %171 : vector<1x128x32xbf16> to vector<128x32xbf16>
    %cst_96 = arith.constant dense<0.000000e+00> : vector<128x16xf32>
    %173 = tpu.matmul %172, %0, %cst_96 {dimension_numbers = #tpu.dot_dimension_numbers<[1], [0], [0], [1], [0, 0, 1, 1], [], []>} : vector<128x32xbf16>, vector<32x16xbf16>, vector<128x16xf32> -> vector<128x16xf32>
    %c5_97 = arith.constant 5 : index
    %c0_98 = arith.constant 0 : index
    %c0_99 = arith.constant 0 : index
    %174 = vector.load %arg6[%c5_97, %c0_98, %c0_99] : memref<8x128x1xf32, #tpu.memory_space<vmem>>, vector<1x128x1xf32>
    %175 = vector.shape_cast %174 : vector<1x128x1xf32> to vector<128x1xf32>
    %176 = vector.broadcast %175 : vector<128x1xf32> to vector<128x16xf32>
    %177 = arith.addf %173, %176 : vector<128x16xf32>
    %cst_100 = arith.constant 0.000000e+00 : f32
    %178 = vector.broadcast %cst_100 : f32 to vector<128x16xf32>
    %179 = arith.maximumf %177, %178 : vector<128x16xf32>
    %180 = arith.truncf %179 : vector<128x16xf32> to vector<128x16xbf16>
    %c5_101 = arith.constant 5 : index
    %c0_102 = arith.constant 0 : index
    %c0_103 = arith.constant 0 : index
    %181 = vector.load %arg7[%c5_101, %c0_102, %c0_103] : memref<8x32x128xbf16, #tpu.memory_space<vmem>>, vector<1x32x128xbf16>
    %182 = vector.shape_cast %181 : vector<1x32x128xbf16> to vector<32x128xbf16>
    %cst_104 = arith.constant dense<0.000000e+00> : vector<32x16xf32>
    %183 = tpu.matmul %182, %180, %cst_104 {dimension_numbers = #tpu.dot_dimension_numbers<[1], [0], [0], [1], [0, 0, 1, 1], [], []>} : vector<32x128xbf16>, vector<128x16xbf16>, vector<32x16xf32> -> vector<32x16xf32>
    %c5_105 = arith.constant 5 : index
    %c0_106 = arith.constant 0 : index
    %c0_107 = arith.constant 0 : index
    %184 = vector.load %arg8[%c5_105, %c0_106, %c0_107] : memref<8x32x1xf32, #tpu.memory_space<vmem>>, vector<1x32x1xf32>
    %185 = vector.shape_cast %184 : vector<1x32x1xf32> to vector<32x1xf32>
    %186 = vector.broadcast %185 : vector<32x1xf32> to vector<32x16xf32>
    %187 = arith.addf %183, %186 : vector<32x16xf32>
    %188 = vector.extract_strided_slice %61 {offsets = [5, 0], sizes = [1, 16], strides = [1, 1]} : vector<8x16xf32> to vector<1x16xf32>
    %189 = vector.broadcast %188 : vector<1x16xf32> to vector<32x16xf32>
    %190 = arith.mulf %189, %187 : vector<32x16xf32>
    %191 = arith.addf %170, %190 : vector<32x16xf32>
    %c6 = arith.constant 6 : index
    %c0_108 = arith.constant 0 : index
    %c0_109 = arith.constant 0 : index
    %192 = vector.load %arg5[%c6, %c0_108, %c0_109] : memref<8x128x32xbf16, #tpu.memory_space<vmem>>, vector<1x128x32xbf16>
    %193 = vector.shape_cast %192 : vector<1x128x32xbf16> to vector<128x32xbf16>
    %cst_110 = arith.constant dense<0.000000e+00> : vector<128x16xf32>
    %194 = tpu.matmul %193, %0, %cst_110 {dimension_numbers = #tpu.dot_dimension_numbers<[1], [0], [0], [1], [0, 0, 1, 1], [], []>} : vector<128x32xbf16>, vector<32x16xbf16>, vector<128x16xf32> -> vector<128x16xf32>
    %c6_111 = arith.constant 6 : index
    %c0_112 = arith.constant 0 : index
    %c0_113 = arith.constant 0 : index
    %195 = vector.load %arg6[%c6_111, %c0_112, %c0_113] : memref<8x128x1xf32, #tpu.memory_space<vmem>>, vector<1x128x1xf32>
    %196 = vector.shape_cast %195 : vector<1x128x1xf32> to vector<128x1xf32>
    %197 = vector.broadcast %196 : vector<128x1xf32> to vector<128x16xf32>
    %198 = arith.addf %194, %197 : vector<128x16xf32>
    %cst_114 = arith.constant 0.000000e+00 : f32
    %199 = vector.broadcast %cst_114 : f32 to vector<128x16xf32>
    %200 = arith.maximumf %198, %199 : vector<128x16xf32>
    %201 = arith.truncf %200 : vector<128x16xf32> to vector<128x16xbf16>
    %c6_115 = arith.constant 6 : index
    %c0_116 = arith.constant 0 : index
    %c0_117 = arith.constant 0 : index
    %202 = vector.load %arg7[%c6_115, %c0_116, %c0_117] : memref<8x32x128xbf16, #tpu.memory_space<vmem>>, vector<1x32x128xbf16>
    %203 = vector.shape_cast %202 : vector<1x32x128xbf16> to vector<32x128xbf16>
    %cst_118 = arith.constant dense<0.000000e+00> : vector<32x16xf32>
    %204 = tpu.matmul %203, %201, %cst_118 {dimension_numbers = #tpu.dot_dimension_numbers<[1], [0], [0], [1], [0, 0, 1, 1], [], []>} : vector<32x128xbf16>, vector<128x16xbf16>, vector<32x16xf32> -> vector<32x16xf32>
    %c6_119 = arith.constant 6 : index
    %c0_120 = arith.constant 0 : index
    %c0_121 = arith.constant 0 : index
    %205 = vector.load %arg8[%c6_119, %c0_120, %c0_121] : memref<8x32x1xf32, #tpu.memory_space<vmem>>, vector<1x32x1xf32>
    %206 = vector.shape_cast %205 : vector<1x32x1xf32> to vector<32x1xf32>
    %207 = vector.broadcast %206 : vector<32x1xf32> to vector<32x16xf32>
    %208 = arith.addf %204, %207 : vector<32x16xf32>
    %209 = vector.extract_strided_slice %61 {offsets = [6, 0], sizes = [1, 16], strides = [1, 1]} : vector<8x16xf32> to vector<1x16xf32>
    %210 = vector.broadcast %209 : vector<1x16xf32> to vector<32x16xf32>
    %211 = arith.mulf %210, %208 : vector<32x16xf32>
    %212 = arith.addf %191, %211 : vector<32x16xf32>
    %c7 = arith.constant 7 : index
    %c0_122 = arith.constant 0 : index
    %c0_123 = arith.constant 0 : index
    %213 = vector.load %arg5[%c7, %c0_122, %c0_123] : memref<8x128x32xbf16, #tpu.memory_space<vmem>>, vector<1x128x32xbf16>
    %214 = vector.shape_cast %213 : vector<1x128x32xbf16> to vector<128x32xbf16>
    %cst_124 = arith.constant dense<0.000000e+00> : vector<128x16xf32>
    %215 = tpu.matmul %214, %0, %cst_124 {dimension_numbers = #tpu.dot_dimension_numbers<[1], [0], [0], [1], [0, 0, 1, 1], [], []>} : vector<128x32xbf16>, vector<32x16xbf16>, vector<128x16xf32> -> vector<128x16xf32>
    %c7_125 = arith.constant 7 : index
    %c0_126 = arith.constant 0 : index
    %c0_127 = arith.constant 0 : index
    %216 = vector.load %arg6[%c7_125, %c0_126, %c0_127] : memref<8x128x1xf32, #tpu.memory_space<vmem>>, vector<1x128x1xf32>
    %217 = vector.shape_cast %216 : vector<1x128x1xf32> to vector<128x1xf32>
    %218 = vector.broadcast %217 : vector<128x1xf32> to vector<128x16xf32>
    %219 = arith.addf %215, %218 : vector<128x16xf32>
    %cst_128 = arith.constant 0.000000e+00 : f32
    %220 = vector.broadcast %cst_128 : f32 to vector<128x16xf32>
    %221 = arith.maximumf %219, %220 : vector<128x16xf32>
    %222 = arith.truncf %221 : vector<128x16xf32> to vector<128x16xbf16>
    %c7_129 = arith.constant 7 : index
    %c0_130 = arith.constant 0 : index
    %c0_131 = arith.constant 0 : index
    %223 = vector.load %arg7[%c7_129, %c0_130, %c0_131] : memref<8x32x128xbf16, #tpu.memory_space<vmem>>, vector<1x32x128xbf16>
    %224 = vector.shape_cast %223 : vector<1x32x128xbf16> to vector<32x128xbf16>
    %cst_132 = arith.constant dense<0.000000e+00> : vector<32x16xf32>
    %225 = tpu.matmul %224, %222, %cst_132 {dimension_numbers = #tpu.dot_dimension_numbers<[1], [0], [0], [1], [0, 0, 1, 1], [], []>} : vector<32x128xbf16>, vector<128x16xbf16>, vector<32x16xf32> -> vector<32x16xf32>
    %c7_133 = arith.constant 7 : index
    %c0_134 = arith.constant 0 : index
    %c0_135 = arith.constant 0 : index
    %226 = vector.load %arg8[%c7_133, %c0_134, %c0_135] : memref<8x32x1xf32, #tpu.memory_space<vmem>>, vector<1x32x1xf32>
    %227 = vector.shape_cast %226 : vector<1x32x1xf32> to vector<32x1xf32>
    %228 = vector.broadcast %227 : vector<32x1xf32> to vector<32x16xf32>
    %229 = arith.addf %225, %228 : vector<32x16xf32>
    %230 = vector.extract_strided_slice %61 {offsets = [7, 0], sizes = [1, 16], strides = [1, 1]} : vector<8x16xf32> to vector<1x16xf32>
    %231 = vector.broadcast %230 : vector<1x16xf32> to vector<32x16xf32>
    %232 = arith.mulf %231, %229 : vector<32x16xf32>
    %233 = arith.addf %212, %232 : vector<32x16xf32>
    %c0_136 = arith.constant 0 : index
    %c0_137 = arith.constant 0 : index
    %234 = vector.load %arg9[%c0_136, %c0_137] : memref<32x16xf32, #tpu.memory_space<vmem>>, vector<32x16xf32>
    tpu.vector_store %arg9[%c0_136, %c0_137], %233 {strides = array<i32>} : memref<32x16xf32, #tpu.memory_space<vmem>>, vector<32x16xf32>,
    return
  }
  func.func @transform_0(%arg0: i32) -> (i32, i32) {
    %c0_i32 = arith.constant 0 : i32
    %c0_i32_0 = arith.constant 0 : i32
    return %c0_i32, %arg0 : i32, i32
  }
  func.func @transform_1(%arg0: i32) -> (i32, i32) {
    %c0_i32 = arith.constant 0 : i32
    %c0_i32_0 = arith.constant 0 : i32
    return %c0_i32, %arg0 : i32, i32
  }
  func.func @transform_2(%arg0: i32) -> (i32, i32) {
    %c0_i32 = arith.constant 0 : i32
    %c0_i32_0 = arith.constant 0 : i32
    %c0_i32_1 = arith.constant 0 : i32
    return %c0_i32, %c0_i32_0 : i32, i32
  }
  func.func @transform_3(%arg0: i32) -> (i32, i32) {
    %c0_i32 = arith.constant 0 : i32
    %c0_i32_0 = arith.constant 0 : i32
    %c0_i32_1 = arith.constant 0 : i32
    return %c0_i32, %c0_i32_0 : i32, i32
  }
  func.func @transform_4(%arg0: i32) -> (i32, i32, i32) {
    %c0_i32 = arith.constant 0 : i32
    %c0_i32_0 = arith.constant 0 : i32
    %c0_i32_1 = arith.constant 0 : i32
    %c0_i32_2 = arith.constant 0 : i32
    return %c0_i32, %c0_i32_0, %c0_i32_1 : i32, i32, i32
  }
  func.func @transform_5(%arg0: i32) -> (i32, i32, i32) {
    %c0_i32 = arith.constant 0 : i32
    %c0_i32_0 = arith.constant 0 : i32
    %c0_i32_1 = arith.constant 0 : i32
    %c0_i32_2 = arith.constant 0 : i32
    return %c0_i32, %c0_i32_0, %c0_i32_1 : i32, i32, i32
  }
  func.func @transform_6(%arg0: i32) -> (i32, i32, i32) {
    %c0_i32 = arith.constant 0 : i32
    %c0_i32_0 = arith.constant 0 : i32
    %c0_i32_1 = arith.constant 0 : i32
    %c0_i32_2 = arith.constant 0 : i32
    return %c0_i32, %c0_i32_0, %c0_i32_1 : i32, i32, i32
  }
  func.func @transform_7(%arg0: i32) -> (i32, i32, i32) {
    %c0_i32 = arith.constant 0 : i32
    %c0_i32_0 = arith.constant 0 : i32
    %c0_i32_1 = arith.constant 0 : i32
    %c0_i32_2 = arith.constant 0 : i32
    return %c0_i32, %c0_i32_0, %c0_i32_1 : i32, i32, i32
  }
  func.func @transform_8(%arg0: i32) -> (i32, i32) {
    %c0_i32 = arith.constant 0 : i32
    %c0_i32_0 = arith.constant 0 : i32
    return %c0_i32, %arg0 : i32, i32
  }
  func.func @transform_9(%arg0: i32) -> (i32, i32) {
    %c0_i32 = arith.constant 0 : i32
    %c0_i32_0 = arith.constant 0 : i32
    return %c0_i32, %arg0 : i32, i32
  }
  func.func @transform_10(%arg0: i32) -> (i32, i32) {
    %c0_i32 = arith.constant 0 : i32
    %c0_i32_0 = arith.constant 0 : i32
    return %c0_i32, %arg0 : i32, i32
  }
}

</mosaic_0001>

<llo_original>
// kernel: tpu_custom_call.1
$region0: #{tpu_custom_call.1}
  #allocation0 [shape = 'u32[]', space=smem, size = 0x4, offset = 0x4, fixed_abs, tag = 'smem constant byte address 0x4 - core index']
  #allocation1 [shape = 'u32[144,128]{1,0:T(1,128)}', space=vmem, size = 0x12000, scoped, tag = 'internal scratch']
  %s0 = inlined_call_operand.vmem [shape: bf16[32,16], index: 0, kind: input, shape index: {}]
  %s1 = inlined_call_operand.vmem [shape: f32[8,16], index: 1, kind: input, shape index: {}]
  %s2 = inlined_call_operand.vmem [shape: bf16[16,32], index: 2, kind: input, shape index: {}]
  %s3 = inlined_call_operand.vmem [shape: f32[16,1], index: 3, kind: input, shape index: {}]
  %s4 = inlined_call_operand.vmem [shape: bf16[8,128,32], index: 4, kind: input, shape index: {}]
  %s5 = inlined_call_operand.vmem [shape: f32[8,128,1], index: 5, kind: input, shape index: {}]
  %s6 = inlined_call_operand.vmem [shape: bf16[8,32,128], index: 6, kind: input, shape index: {}]
  %s7 = inlined_call_operand.vmem [shape: f32[8,32,1], index: 7, kind: input, shape index: {}]
  %s8 = inlined_call_operand.vmem [shape: f32[32,16], index: 8, kind: output, shape index: {0}]
  %s9 = inlined_call_operand.hbm [shape: f32[8,16], index: 9, kind: output, shape index: {1}]
  %s10 = inlined_call_operand.hbm [shape: s32[2,16], index: 10, kind: output, shape index: {2}]
  %11 = xla_tuple %s8, %s9, %s10
  %s12 = sld [smem:[#allocation0]]
  $region58: #{tpu_custom_call.1} parent=0
    _
  %s14 = ssub.s32 1, %s12
  %s15 = scalar_select 0, %s14, %s12
  $region1: #{tpu_custom_call.1} parent=0
    #allocation2 [shape = 'u8[4096]{0}', space=vmem, size = 0x1000, scoped, tag = 'output window, operand 1, single buffered']
    #allocation3 [shape = 's32[1]{0}', space=sflag, size = 0x4, scoped, tag = 'scoped memory for tpu_custom_call.1']
    #allocation4 [shape = 'u8[1024]{0}', space=vmem, size = 0x400, scoped, tag = 'output window, operand 2, single buffered']
    #allocation5 [shape = 's32[1]{0}', space=sflag, size = 0x4, scoped, tag = 'scoped memory for tpu_custom_call.1']
    %16 = vsyncpa [#allocation3], 0
    %17 = vsyncpa [#allocation5], 0
    // Predicated region
    $region2: #{tpu_custom_call.1} parent=1 // pred_check
      _
    $region3: #{tpu_custom_call.1} parent=1 // pred_check_branch
      %19 = sbr.rel (0) target = $region5
    $region4: #{tpu_custom_call.1} parent=1 // pred_region
      _
    $region5: #{tpu_custom_call.1} parent=1 // pred_fallthru
      _
    // Predicated region
    $region6: #{tpu_custom_call.1} parent=1 // pred_check
      _
    $region7: #{tpu_custom_call.1} parent=1 // pred_check_branch
      %21 = sbr.rel (0) target = $region9
    $region8: #{tpu_custom_call.1} parent=1 // pred_region
      _
    $region9: #{tpu_custom_call.1} parent=1 // pred_fallthru
      _
    // Predicated region
    $region10: #{tpu_custom_call.1} parent=1 // pred_check
      _
    $region11: #{tpu_custom_call.1} parent=1 // pred_check_branch
      %23 = sbr.rel (0) target = $region13
    $region12: #{tpu_custom_call.1} parent=1 // pred_region
      _
    $region13: #{tpu_custom_call.1} parent=1 // pred_fallthru
      _
    // Predicated region
    $region14: #{tpu_custom_call.1} parent=1 // pred_check
      _
    $region15: #{tpu_custom_call.1} parent=1 // pred_check_branch
      %25 = sbr.rel (0) target = $region17
    $region16: #{tpu_custom_call.1} parent=1 // pred_region
      _
    $region17: #{tpu_custom_call.1} parent=1 // pred_fallthru
      _
    // Predicated region
    $region18: #{tpu_custom_call.1} parent=1 // pred_check
      _
    $region19: #{tpu_custom_call.1} parent=1 // pred_check_branch
      %27 = sbr.rel (0) target = $region21
    $region20: #{tpu_custom_call.1} parent=1 // pred_region
      _
    $region21: #{tpu_custom_call.1} parent=1 // pred_fallthru
      _
    // Predicated region
    $region22: #{tpu_custom_call.1} parent=1 // pred_check
      _
    $region23: #{tpu_custom_call.1} parent=1 // pred_check_branch
      %29 = sbr.rel (0) target = $region25
    $region24: #{tpu_custom_call.1} parent=1 // pred_region
      _
    $region25: #{tpu_custom_call.1} parent=1 // pred_fallthru
      _
    // Predicated region
    $region26: #{tpu_custom_call.1} parent=1 // pred_check
      _
    $region27: #{tpu_custom_call.1} parent=1 // pred_check_branch
      %31 = sbr.rel (0) target = $region29
    $region28: #{tpu_custom_call.1} parent=1 // pred_region
      _
    $region29: #{tpu_custom_call.1} parent=1 // pred_fallthru
      _
    // Predicated region
    $region30: #{tpu_custom_call.1} parent=1 // pred_check
      _
    $region31: #{tpu_custom_call.1} parent=1 // pred_check_branch
      %33 = sbr.rel (0) target = $region33
    $region32: #{tpu_custom_call.1} parent=1 // pred_region
      _
    $region33: #{tpu_custom_call.1} parent=1 // pred_fallthru
      _
    %v35 = vld [vmem:[%s0] sm:$0xf]
    %v36 = vld [vmem:[%s0 + $0x4] sm:$0xf]
    %v37 = vld [vmem:[%s0 + $0x8] sm:$0xf]
    %v38 = vld [vmem:[%s0 + $0xc] sm:$0xf]
    %v39 = vld [vmem:[%s2] sm:$0xf]
    %v40 = vld [vmem:[%s2 + $0x4] sm:$0xf]
    %v41 = vld [vmem:[%s3] sm:$0xff]
    %v42 = vld [vmem:[%s3 + $0x8] sm:$0xff]
    %44 = vset.pattern.permute.xlu0 0
    %45 = vperm.xlu0 %44, %v41
    %v46 = vpop.permute.xlu0 %45
    %49 = vset.pattern.permute.xlu0 0
    %50 = vperm.xlu0 %49, %v42
    %v51 = vpop.permute.xlu0 %50
    %v55 = vunpack.c.l.b16 %v39
    %v56 = vunpack.c.l.b16 %v40
    %v57 = vpack.c.b16 %v56, %v55
    %v62 = vunpack.c.l.b16 %v35
    %v63 = vunpack.c.l.b16 %v36
    %v64 = vunpack.c.l.b16 %v37
    %v65 = vunpack.c.l.b16 %v38
    %v66 = vpack.c.b16 %v63, %v62
    %v67 = vpack.c.b16 %v65, %v64
    %vm70 = vcmask 261120
    %v72 = vsel %vm70, %v57, 0
    %74 = vmatprep.subr.bf16.mxu0 0
    %75 = vmatpush1.bf16.msra.mxu0 %v66
    %76 = vmatprep.subr.bf16.mxu0 0
    %77 = vmatpush1.bf16.msra.mxu0 %v67
    %78 = vmatprep.subr.bf16.mxu0 0
    %79 = vmatpush1.bf16.msra.mxu0 0
    %80 = vmatprep.subr.bf16.mxu0 0
    %81 = vmatpush1.bf16.msra.mxu0 0
    %82 = vmatprep.subr.bf16.mxu0 0
    %83 = vmatpush1.bf16.msra.mxu0 0
    %84 = vmatprep.subr.bf16.mxu0 0
    %85 = vmatpush1.bf16.msra.mxu0 0
    %86 = vmatprep.subr.bf16.mxu0 0
    %87 = vmatpush1.bf16.msra.mxu0 0
    %88 = vmatprep.subr.bf16.mxu0 0
    %89 = vmatpush1.bf16.msra.mxu0 0
    %90 = vmatprep.subr.bf16.mxu0 0
    %91 = vmatpush1.bf16.msra.mxu0 0
    %92 = vmatprep.subr.bf16.mxu0 0
    %93 = vmatpush1.bf16.msra.mxu0 0
    %94 = vmatprep.subr.bf16.mxu0 0
    %95 = vmatpush1.bf16.msra.mxu0 0
    %96 = vmatprep.subr.bf16.mxu0 0
    %97 = vmatpush1.bf16.msra.mxu0 0
    %98 = vmatprep.subr.bf16.mxu0 0
    %99 = vmatpush1.bf16.msra.mxu0 0
    %100 = vmatprep.subr.bf16.mxu0 0
    %101 = vmatpush1.bf16.msra.mxu0 0
    %102 = vmatprep.subr.bf16.mxu0 0
    %103 = vmatpush1.bf16.msra.mxu0 0
    %104 = vmatprep.subr.bf16.mxu0 0
    %105 = vmatpush1.bf16.msra.mxu0 0
    %106 = vmatprep.mubr.bf16.mxu0 0
    %107 = vmatmul.mubr.bf16.gmra.mrb[0].mxu0 %v72
    %v108 = vpop.f32.mrb[0].mxu0
    %v109 = vadd.f32 %v46, %v108
    %v110 = vpop.f32.mrb[0].mxu0
    %v111 = vpop.f32.mrb[0].mxu0
    %v112 = vadd.f32 %v51, %v111
    %v113 = vpop.f32.mrb[0].mxu0
    %114 = vdwg.mxu0
    %v115 = vld [vmem:[%s1] sm:$0xff]
    %v116 = vmax.f32 %v112, 0.0
    %vm117 = vcmp.ne.f32.partialorder %v112, %v112
    %v118 = vadd.f32 %v112, 0.0
    %v119 = vand.u32 2147483647, %v112
    %v120 = vsub.f32 0.0, %v119
    %v121 = vmul.f32 %v120, 1.442695
    %v122 = vpow.pop %v121
    %v123 = vadd.f32 %v122, 1.0
    %v124 = vlog2.pop %v123
    %v125 = vmul.f32 %v124, 0.6931472
    %v126 = vmul.f32 -0.5, %v122
    %v127 = vadd.f32 %v126, 1.0
    %v128 = vmul.f32 %v127, %v122
    %v129 = vand.u32 2147483647, %v122
    %vm130 = vcmp.lt.f32.partialorder %v129, 0.0004427343
    %v131 = vsel %vm130, %v128, %v125
    %v132 = vadd.f32 %v116, %v131
    %v133 = vsel %vm117, %v118, %v132
    %v134 = vmul.f32 %v115, %v133
    %v135 = vadd.f32 %v109, %v134
    %v136 = vlaneseq
    %v137 = vshrl.u32 %v136, 7
    %vm138 = vcmask 130048
    %v139 = vsel %vm138, %v135, -inf
    %v140 = vrot.slane %v139, 4
    %v141 = vmax.f32 %v139, %v140
    %v142 = vrot.slane %v141, 2
    %v143 = vmax.f32 %v141, %v142
    %v144 = vrot.slane %v143, 1
    %v145 = vmax.f32 %v143, %v144
    %vm146 = vcmp.eq.f32.partialorder %v135, %v145
    %v147 = vsel %vm146, %v137, 8
    %v148 = vsel %vm138, %v147, 2147483647
    %v149 = vrot.slane %v148, 4
    %vm150 = vcmp.lt.s32.totalorder %v148, %v149
    %v151 = vsel %vm150, %v148, %v149
    %v152 = vrot.slane %v151, 2
    %vm153 = vcmp.lt.s32.totalorder %v151, %v152
    %v154 = vsel %vm153, %v151, %v152
    %v155 = vrot.slane %v154, 1
    %vm156 = vcmp.lt.s32.totalorder %v154, %v155
    %v157 = vsel %vm156, %v154, %v155
    %vm158 = vcmp.eq.s32.totalorder %v137, %v157
    %v159 = vsel %vm158, -inf, %v135
    %v160 = vsel %vm138, %v159, -inf
    %v161 = vrot.slane %v160, 4
    %v162 = vmax.f32 %v160, %v161
    %v163 = vrot.slane %v162, 2
    %v164 = vmax.f32 %v162, %v163
    %v165 = vrot.slane %v164, 1
    %v166 = vmax.f32 %v164, %v165
    %vm167 = vcmp.eq.f32.partialorder %v159, %v166
    %v168 = vsel %vm167, %v137, 8
    %v169 = vsel %vm138, %v168, 2147483647
    %v170 = vrot.slane %v169, 4
    %vm171 = vcmp.lt.s32.totalorder %v169, %v170
    %v172 = vsel %vm171, %v169, %v170
    %v173 = vrot.slane %v172, 2
    %vm174 = vcmp.lt.s32.totalorder %v172, %v173
    %v175 = vsel %vm174, %v172, %v173
    %v176 = vrot.slane %v175, 1
    %vm177 = vcmp.lt.s32.totalorder %v175, %v176
    %v178 = vsel %vm177, %v175, %v176
    %vm179 = vcmp.eq.s32.totalorder %v137, %v178
    %vm180 = vmor %vm158, %vm179
    %v181 = vsel %vm180, %v135, -inf
    %v182 = vsel %vm138, %v181, -inf
    %v183 = vrot.slane %v182, 4
    %v184 = vmax.f32 %v182, %v183
    %v185 = vrot.slane %v184, 2
    %v186 = vmax.f32 %v184, %v185
    %v187 = vrot.slane %v186, 1
    %v188 = vmax.f32 %v186, %v187
    %v189 = vsub.f32 %v181, %v188
    %v190 = vmul.f32 %v189, 1.442695
    %v191 = vpow.pop %v190
    %v192 = vsel %vm138, %v191, 0.0
    %v193 = vrot.slane %v192, 4
    %v194 = vadd.f32 %v192, %v193
    %v195 = vrot.slane %v194, 2
    %v196 = vadd.f32 %v194, %v195
    %v197 = vrot.slane %v196, 1
    %v198 = vadd.f32 %v196, %v197
    %v199 = vrcp.pop %v198
    %v200 = vmul.f32 %v191, %v199
    %201 = vst.msk [vmem:[#allocation2] sm:$0xff] %vm138, %v200
    %vm202 = vcmask 1040384
    %v203 = vsel %vm202, %v157, %v178
    %vm204 = vcmask 123904
    %205 = vst.msk [vmem:[#allocation4] sm:$0x3] %vm204, %v203
    %v206 = vld [vmem:[%s4] sm:$0xf]
    %v207 = vld [vmem:[%s4 + $0x4] sm:$0xf]
    %v208 = vld [vmem:[%s4 + $0x8] sm:$0xf]
    %v209 = vld [vmem:[%s4 + $0xc] sm:$0xf]
    %v210 = vld [vmem:[%s4 + $0x10] sm:$0xf]
    %v211 = vld [vmem:[%s4 + $0x14] sm:$0xf]
    %v212 = vld [vmem:[%s4 + $0x18] sm:$0xf]
    %v213 = vld [vmem:[%s4 + $0x1c] sm:$0xf]
    %v214 = vld [vmem:[%s4 + $0x20] sm:$0xf]
    %v215 = vld [vmem:[%s4 + $0x24] sm:$0xf]
    %v216 = vld [vmem:[%s4 + $0x28] sm:$0xf]
    %v217 = vld [vmem:[%s4 + $0x2c] sm:$0xf]
    %v218 = vld [vmem:[%s4 + $0x30] sm:$0xf]
    %v219 = vld [vmem:[%s4 + $0x34] sm:$0xf]
    %v220 = vld [vmem:[%s4 + $0x38] sm:$0xf]
    %v221 = vld [vmem:[%s4 + $0x3c] sm:$0xf]
    %v222 = vld [vmem:[%s5] sm:$0xff]
    %v223 = vld [vmem:[%s5 + $0x8] sm:$0xff]
    %v224 = vld [vmem:[%s5 + $0x10] sm:$0xff]
    %v225 = vld [vmem:[%s5 + $0x18] sm:$0xff]
    %v226 = vld [vmem:[%s5 + $0x20] sm:$0xff]
    %v227 = vld [vmem:[%s5 + $0x28] sm:$0xff]
    %v228 = vld [vmem:[%s5 + $0x30] sm:$0xff]
    %v229 = vld [vmem:[%s5 + $0x38] sm:$0xff]
    %v230 = vld [vmem:[%s5 + $0x40] sm:$0xff]
    %v231 = vld [vmem:[%s5 + $0x48] sm:$0xff]
    %v232 = vld [vmem:[%s5 + $0x50] sm:$0xff]
    %v233 = vld [vmem:[%s5 + $0x58] sm:$0xff]
    %v234 = vld [vmem:[%s5 + $0x60] sm:$0xff]
    %v235 = vld [vmem:[%s5 + $0x68] sm:$0xff]
    %v236 = vld [vmem:[%s5 + $0x70] sm:$0xff]
    %v237 = vld [vmem:[%s5 + $0x78] sm:$0xff]
    %239 = vset.pattern.permute.xlu0 0
    %240 = vperm.xlu0 %239, %v222
    %v241 = vpop.permute.xlu0 %240
    %244 = vset.pattern.permute.xlu0 0
    %245 = vperm.xlu0 %244, %v223
    %v246 = vpop.permute.xlu0 %245
    %249 = vset.pattern.permute.xlu0 0
    %250 = vperm.xlu0 %249, %v224
    %v251 = vpop.permute.xlu0 %250
    %254 = vset.pattern.permute.xlu0 0
    %255 = vperm.xlu0 %254, %v225
    %v256 = vpop.permute.xlu0 %255
    %259 = vset.pattern.permute.xlu0 0
    %260 = vperm.xlu0 %259, %v226
    %v261 = vpop.permute.xlu0 %260
    %264 = vset.pattern.permute.xlu0 0
    %265 = vperm.xlu0 %264, %v227
    %v266 = vpop.permute.xlu0 %265
    %269 = vset.pattern.permute.xlu0 0
    %270 = vperm.xlu0 %269, %v228
    %v271 = vpop.permute.xlu0 %270
    %274 = vset.pattern.permute.xlu0 0
    %275 = vperm.xlu0 %274, %v229
    %v276 = vpop.permute.xlu0 %275
    %279 = vset.pattern.permute.xlu0 0
    %280 = vperm.xlu0 %279, %v230
    %v281 = vpop.permute.xlu0 %280
    %284 = vset.pattern.permute.xlu0 0
    %285 = vperm.xlu0 %284, %v231
    %v286 = vpop.permute.xlu0 %285
    %289 = vset.pattern.permute.xlu0 0
    %290 = vperm.xlu0 %289, %v232
    %v291 = vpop.permute.xlu0 %290
    %294 = vset.pattern.permute.xlu0 0
    %295 = vperm.xlu0 %294, %v233
    %v296 = vpop.permute.xlu0 %295
    %299 = vset.pattern.permute.xlu0 0
    %300 = vperm.xlu0 %299, %v234
    %v301 = vpop.permute.xlu0 %300
    %304 = vset.pattern.permute.xlu0 0
    %305 = vperm.xlu0 %304, %v235
    %v306 = vpop.permute.xlu0 %305
    %309 = vset.pattern.permute.xlu0 0
    %310 = vperm.xlu0 %309, %v236
    %v311 = vpop.permute.xlu0 %310
    %314 = vset.pattern.permute.xlu0 0
    %315 = vperm.xlu0 %314, %v237
    %v316 = vpop.permute.xlu0 %315
    %v334 = vunpack.c.l.b16 %v206
    %v335 = vunpack.c.l.b16 %v207
    %v336 = vunpack.c.l.b16 %v208
    %v337 = vunpack.c.l.b16 %v209
    %v338 = vunpack.c.l.b16 %v210
    %v339 = vunpack.c.l.b16 %v211
    %v340 = vunpack.c.l.b16 %v212
    %v341 = vunpack.c.l.b16 %v213
    %v342 = vunpack.c.l.b16 %v214
    %v343 = vunpack.c.l.b16 %v215
    %v344 = vunpack.c.l.b16 %v216
    %v345 = vunpack.c.l.b16 %v217
    %v346 = vunpack.c.l.b16 %v218
    %v347 = vunpack.c.l.b16 %v219
    %v348 = vunpack.c.l.b16 %v220
    %v349 = vunpack.c.l.b16 %v221
    %v350 = vpack.c.b16 %v335, %v334
    %v351 = vpack.c.b16 %v337, %v336
    %v352 = vpack.c.b16 %v339, %v338
    %v353 = vpack.c.b16 %v341, %v340
    %v354 = vpack.c.b16 %v343, %v342
    %v355 = vpack.c.b16 %v345, %v344
    %v356 = vpack.c.b16 %v347, %v346
    %v357 = vpack.c.b16 %v349, %v348
    %v359 = vsel %vm70, %v350, 0
    %v362 = vsel %vm70, %v351, 0
    %v365 = vsel %vm70, %v352, 0
    %v368 = vsel %vm70, %v353, 0
    %v371 = vsel %vm70, %v354, 0
    %v374 = vsel %vm70, %v355, 0
    %v377 = vsel %vm70, %v356, 0
    %v380 = vsel %vm70, %v357, 0
    %382 = vmatprep.subr.bf16.mxu0 0
    %383 = vmatpush1.bf16.msra.mxu0 %v66
    %384 = vmatprep.subr.bf16.mxu0 0
    %385 = vmatpush1.bf16.msra.mxu0 %v67
    %386 = vmatprep.subr.bf16.mxu0 0
    %387 = vmatpush1.bf16.msra.mxu0 0
    %388 = vmatprep.subr.bf16.mxu0 0
    %389 = vmatpush1.bf16.msra.mxu0 0
    %390 = vmatprep.subr.bf16.mxu0 0
    %391 = vmatpush1.bf16.msra.mxu0 0
    %392 = vmatprep.subr.bf16.mxu0 0
    %393 = vmatpush1.bf16.msra.mxu0 0
    %394 = vmatprep.subr.bf16.mxu0 0
    %395 = vmatpush1.bf16.msra.mxu0 0
    %396 = vmatprep.subr.bf16.mxu0 0
    %397 = vmatpush1.bf16.msra.mxu0 0
    %398 = vmatprep.subr.bf16.mxu0 0
    %399 = vmatpush1.bf16.msra.mxu0 0
    %400 = vmatprep.subr.bf16.mxu0 0
    %401 = vmatpush1.bf16.msra.mxu0 0
    %402 = vmatprep.subr.bf16.mxu0 0
    %403 = vmatpush1.bf16.msra.mxu0 0
    %404 = vmatprep.subr.bf16.mxu0 0
    %405 = vmatpush1.bf16.msra.mxu0 0
    %406 = vmatprep.subr.bf16.mxu0 0
    %407 = vmatpush1.bf16.msra.mxu0 0
    %408 = vmatprep.subr.bf16.mxu0 0
    %409 = vmatpush1.bf16.msra.mxu0 0
    %410 = vmatprep.subr.bf16.mxu0 0
    %411 = vmatpush1.bf16.msra.mxu0 0
    %412 = vmatprep.subr.bf16.mxu0 0
    %413 = vmatpush1.bf16.msra.mxu0 0
    %414 = vmatprep.mubr.bf16.mxu0 0
    %415 = vmatmul.mubr.bf16.gmra.mrb[0].mxu0 %v359
    %v416 = vpop.f32.mrb[0].mxu0
    %v417 = vadd.f32 %v241, %v416
    %v418 = vpop.f32.mrb[0].mxu0
    %v419 = vpop.f32.mrb[0].mxu0
    %v420 = vadd.f32 %v246, %v419
    %v421 = vpop.f32.mrb[0].mxu0
    %422 = vmatprep.mubr.bf16.mxu0 0
    %423 = vmatmul.mubr.bf16.gmra.mrb[0].mxu0 %v362
    %v424 = vpop.f32.mrb[0].mxu0
    %v425 = vadd.f32 %v251, %v424
    %v426 = vpop.f32.mrb[0].mxu0
    %v427 = vpop.f32.mrb[0].mxu0
    %v428 = vadd.f32 %v256, %v427
    %v429 = vpop.f32.mrb[0].mxu0
    %430 = vmatprep.mubr.bf16.mxu0 0
    %431 = vmatmul.mubr.bf16.gmra.mrb[0].mxu0 %v365
    %v432 = vpop.f32.mrb[0].mxu0
    %v433 = vadd.f32 %v261, %v432
    %v434 = vpop.f32.mrb[0].mxu0
    %v435 = vpop.f32.mrb[0].mxu0
    %v436 = vadd.f32 %v266, %v435
    %v437 = vpop.f32.mrb[0].mxu0
    %438 = vmatprep.mubr.bf16.mxu0 0
    %439 = vmatmul.mubr.bf16.gmra.mrb[0].mxu0 %v368
    %v440 = vpop.f32.mrb[0].mxu0
    %v441 = vadd.f32 %v271, %v440
    %v442 = vpop.f32.mrb[0].mxu0
    %v443 = vpop.f32.mrb[0].mxu0
    %v444 = vadd.f32 %v276, %v443
    %v445 = vpop.f32.mrb[0].mxu0
    %446 = vmatprep.mubr.bf16.mxu0 0
    %447 = vmatmul.mubr.bf16.gmra.mrb[0].mxu0 %v371
    %v448 = vpop.f32.mrb[0].mxu0
    %v449 = vadd.f32 %v281, %v448
    %v450 = vpop.f32.mrb[0].mxu0
    %v451 = vpop.f32.mrb[0].mxu0
    %v452 = vadd.f32 %v286, %v451
    %v453 = vpop.f32.mrb[0].mxu0
    %454 = vmatprep.mubr.bf16.mxu0 0
    %455 = vmatmul.mubr.bf16.gmra.mrb[0].mxu0 %v374
    %v456 = vpop.f32.mrb[0].mxu0
    %v457 = vadd.f32 %v291, %v456
    %v458 = vpop.f32.mrb[0].mxu0
    %v459 = vpop.f32.mrb[0].mxu0
    %v460 = vadd.f32 %v296, %v459
    %v461 = vpop.f32.mrb[0].mxu0
    %462 = vmatprep.mubr.bf16.mxu0 0
    %463 = vmatmul.mubr.bf16.gmra.mrb[0].mxu0 %v377
    %v464 = vpop.f32.mrb[0].mxu0
    %v465 = vadd.f32 %v301, %v464
    %v466 = vpop.f32.mrb[0].mxu0
    %v467 = vpop.f32.mrb[0].mxu0
    %v468 = vadd.f32 %v306, %v467
    %v469 = vpop.f32.mrb[0].mxu0
    %470 = vmatprep.mubr.bf16.mxu0 0
    %471 = vmatmul.mubr.bf16.gmra.mrb[0].mxu0 %v380
    %v472 = vpop.f32.mrb[0].mxu0
    %v473 = vadd.f32 %v311, %v472
    %v474 = vpop.f32.mrb[0].mxu0
    %v475 = vpop.f32.mrb[0].mxu0
    %v476 = vadd.f32 %v316, %v475
    %v477 = vpop.f32.mrb[0].mxu0
    %478 = vdwg.mxu0
    %v479 = vmax.f32 %v417, 0.0
    %v480 = vmax.f32 %v420, 0.0
    %v481 = vmax.f32 %v425, 0.0
    %v482 = vmax.f32 %v428, 0.0
    %v483 = vmax.f32 %v433, 0.0
    %v484 = vmax.f32 %v436, 0.0
    %v485 = vmax.f32 %v441, 0.0
    %v486 = vmax.f32 %v444, 0.0
    %v487 = vmax.f32 %v449, 0.0
    %v488 = vmax.f32 %v452, 0.0
    %v489 = vmax.f32 %v457, 0.0
    %v490 = vmax.f32 %v460, 0.0
    %v491 = vmax.f32 %v465, 0.0
    %v492 = vmax.f32 %v468, 0.0
    %v493 = vmax.f32 %v473, 0.0
    %v494 = vmax.f32 %v476, 0.0
    %v495 = vpack.c.bf16 %v480, %v479
    %v496 = vpack.c.bf16 %v482, %v481
    %v497 = vpack.c.bf16 %v484, %v483
    %v498 = vpack.c.bf16 %v486, %v485
    %v499 = vpack.c.bf16 %v488, %v487
    %v500 = vpack.c.bf16 %v490, %v489
    %v501 = vpack.c.bf16 %v492, %v491
    %v502 = vpack.c.bf16 %v494, %v493
    %v503 = vld [vmem:[%s6] sm:$0xf]
    %v504 = vld [vmem:[%s6 + $0x4] sm:$0xf]
    %v505 = vld [vmem:[%s6 + $0x8] sm:$0xf]
    %v506 = vld [vmem:[%s6 + $0xc] sm:$0xf]
    %v507 = vld [vmem:[%s7] sm:$0xff]
    %v508 = vld [vmem:[%s7 + $0x8] sm:$0xff]
    %v509 = vld [vmem:[%s7 + $0x10] sm:$0xff]
    %v510 = vld [vmem:[%s7 + $0x18] sm:$0xff]
    %512 = vset.pattern.permute.xlu0 0
    %513 = vperm.xlu0 %512, %v507
    %v514 = vpop.permute.xlu0 %513
    %517 = vset.pattern.permute.xlu0 0
    %518 = vperm.xlu0 %517, %v508
    %v519 = vpop.permute.xlu0 %518
    %522 = vset.pattern.permute.xlu0 0
    %523 = vperm.xlu0 %522, %v509
    %v524 = vpop.permute.xlu0 %523
    %527 = vset.pattern.permute.xlu0 0
    %528 = vperm.xlu0 %527, %v510
    %v529 = vpop.permute.xlu0 %528
    %v535 = vunpack.c.l.b16 %v503
    %v536 = vunpack.c.l.b16 %v504
    %v537 = vunpack.c.l.b16 %v505
    %v538 = vunpack.c.l.b16 %v506
    %v539 = vpack.c.b16 %v536, %v535
    %v540 = vpack.c.b16 %v538, %v537
    %543 = vmatprep.subr.bf16.mxu0 0
    %544 = vmatpush1.bf16.msra.mxu0 %v495
    %545 = vmatprep.subr.bf16.mxu0 0
    %546 = vmatpush1.bf16.msra.mxu0 %v496
    %547 = vmatprep.subr.bf16.mxu0 0
    %548 = vmatpush1.bf16.msra.mxu0 %v497
    %549 = vmatprep.subr.bf16.mxu0 0
    %550 = vmatpush1.bf16.msra.mxu0 %v498
    %551 = vmatprep.subr.bf16.mxu0 0
    %552 = vmatpush1.bf16.msra.mxu0 %v499
    %553 = vmatprep.subr.bf16.mxu0 0
    %554 = vmatpush1.bf16.msra.mxu0 %v500
    %555 = vmatprep.subr.bf16.mxu0 0
    %556 = vmatpush1.bf16.msra.mxu0 %v501
    %557 = vmatprep.subr.bf16.mxu0 0
    %558 = vmatpush1.bf16.msra.mxu0 %v502
    %559 = vmatprep.subr.bf16.mxu0 0
    %560 = vmatpush1.bf16.msra.mxu0 0
    %561 = vmatprep.subr.bf16.mxu0 0
    %562 = vmatpush1.bf16.msra.mxu0 0
    %563 = vmatprep.subr.bf16.mxu0 0
    %564 = vmatpush1.bf16.msra.mxu0 0
    %565 = vmatprep.subr.bf16.mxu0 0
    %566 = vmatpush1.bf16.msra.mxu0 0
    %567 = vmatprep.subr.bf16.mxu0 0
    %568 = vmatpush1.bf16.msra.mxu0 0
    %569 = vmatprep.subr.bf16.mxu0 0
    %570 = vmatpush1.bf16.msra.mxu0 0
    %571 = vmatprep.subr.bf16.mxu0 0
    %572 = vmatpush1.bf16.msra.mxu0 0
    %573 = vmatprep.subr.bf16.mxu0 0
    %574 = vmatpush1.bf16.msra.mxu0 0
    %575 = vmatprep.mubr.bf16.mxu0 0
    %576 = vmatmul.mubr.bf16.gmra.mrb[0].mxu0 %v539
    %v577 = vpop.f32.mrb[0].mxu0
    %v578 = vadd.f32 %v514, %v577
    %v579 = vpop.f32.mrb[0].mxu0
    %v580 = vpop.f32.mrb[0].mxu0
    %v581 = vadd.f32 %v519, %v580
    %v582 = vpop.f32.mrb[0].mxu0
    %583 = vmatprep.mubr.bf16.mxu0 0
    %584 = vmatmul.mubr.bf16.gmra.mrb[0].mxu0 %v540
    %v585 = vpop.f32.mrb[0].mxu0
    %v586 = vadd.f32 %v524, %v585
    %v587 = vpop.f32.mrb[0].mxu0
    %v588 = vpop.f32.mrb[0].mxu0
    %v589 = vadd.f32 %v529, %v588
    %v590 = vpop.f32.mrb[0].mxu0
    %591 = vdwg.mxu0
    %v592 = vlaneseq
    %v593 = vshrl.u32 %v592, 7
    %v594 = vsub.s32 0, %v593
    %v595 = vrot.slane %v200, %v594
    %v596 = vmul.f32 %v595, %v578
    %v597 = vmul.f32 %v595, %v581
    %v598 = vmul.f32 %v595, %v586
    %v599 = vmul.f32 %v595, %v589
    %v600 = vadd.f32 %v596, 0.0
    %v601 = vadd.f32 %v597, 0.0
    %v602 = vadd.f32 %v598, 0.0
    %v603 = vadd.f32 %v599, 0.0
    %s604 = scalar_lea.vmem %s4, 64
    %v605 = vld [vmem:[%s604] sm:$0xf]
    %v606 = vld [vmem:[%s604 + $0x4] sm:$0xf]
    %v607 = vld [vmem:[%s604 + $0x8] sm:$0xf]
    %v608 = vld [vmem:[%s604 + $0xc] sm:$0xf]
    %v609 = vld [vmem:[%s604 + $0x10] sm:$0xf]
    %v610 = vld [vmem:[%s604 + $0x14] sm:$0xf]
    %v611 = vld [vmem:[%s604 + $0x18] sm:$0xf]
    %v612 = vld [vmem:[%s604 + $0x1c] sm:$0xf]
    %v613 = vld [vmem:[%s604 + $0x20] sm:$0xf]
    %v614 = vld [vmem:[%s604 + $0x24] sm:$0xf]
    %v615 = vld [vmem:[%s604 + $0x28] sm:$0xf]
    %v616 = vld [vmem:[%s604 + $0x2c] sm:$0xf]
    %v617 = vld [vmem:[%s604 + $0x30] sm:$0xf]
    %v618 = vld [vmem:[%s604 + $0x34] sm:$0xf]
    %v619 = vld [vmem:[%s604 + $0x38] sm:$0xf]
    %v620 = vld [vmem:[%s604 + $0x3c] sm:$0xf]
    %s621 = scalar_lea.vmem %s5, 128
    %v622 = vld [vmem:[%s621] sm:$0xff]
    %v623 = vld [vmem:[%s621 + $0x8] sm:$0xff]
    %v624 = vld [vmem:[%s621 + $0x10] sm:$0xff]
    %v625 = vld [vmem:[%s621 + $0x18] sm:$0xff]
    %v626 = vld [vmem:[%s621 + $0x20] sm:$0xff]
    %v627 = vld [vmem:[%s621 + $0x28] sm:$0xff]
    %v628 = vld [vmem:[%s621 + $0x30] sm:$0xff]
    %v629 = vld [vmem:[%s621 + $0x38] sm:$0xff]
    %v630 = vld [vmem:[%s621 + $0x40] sm:$0xff]
    %v631 = vld [vmem:[%s621 + $0x48] sm:$0xff]
    %v632 = vld [vmem:[%s621 + $0x50] sm:$0xff]
    %v633 = vld [vmem:[%s621 + $0x58] sm:$0xff]
    %v634 = vld [vmem:[%s621 + $0x60] sm:$0xff]
    %v635 = vld [vmem:[%s621 + $0x68] sm:$0xff]
    %v636 = vld [vmem:[%s621 + $0x70] sm:$0xff]
    %v637 = vld [vmem:[%s621 + $0x78] sm:$0xff]
    %639 = vset.pattern.permute.xlu0 0
    %640 = vperm.xlu0 %639, %v622
    %v641 = vpop.permute.xlu0 %640
    %644 = vset.pattern.permute.xlu0 0
    %645 = vperm.xlu0 %644, %v623
    %v646 = vpop.permute.xlu0 %645
    %649 = vset.pattern.permute.xlu0 0
    %650 = vperm.xlu0 %649, %v624
    %v651 = vpop.permute.xlu0 %650
    %654 = vset.pattern.permute.xlu0 0
    %655 = vperm.xlu0 %654, %v625
    %v656 = vpop.permute.xlu0 %655
    %659 = vset.pattern.permute.xlu0 0
    %660 = vperm.xlu0 %659, %v626
    %v661 = vpop.permute.xlu0 %660
    %664 = vset.pattern.permute.xlu0 0
    %665 = vperm.xlu0 %664, %v627
    %v666 = vpop.permute.xlu0 %665
    %669 = vset.pattern.permute.xlu0 0
    %670 = vperm.xlu0 %669, %v628
    %v671 = vpop.permute.xlu0 %670
    %674 = vset.pattern.permute.xlu0 0
    %675 = vperm.xlu0 %674, %v629
    %v676 = vpop.permute.xlu0 %675
    %679 = vset.pattern.permute.xlu0 0
    %680 = vperm.xlu0 %679, %v630
    %v681 = vpop.permute.xlu0 %680
    %684 = vset.pattern.permute.xlu0 0
    %685 = vperm.xlu0 %684, %v631
    %v686 = vpop.permute.xlu0 %685
    %689 = vset.pattern.permute.xlu0 0
    %690 = vperm.xlu0 %689, %v632
    %v691 = vpop.permute.xlu0 %690
    %694 = vset.pattern.permute.xlu0 0
    %695 = vperm.xlu0 %694, %v633
    %v696 = vpop.permute.xlu0 %695
    %699 = vset.pattern.permute.xlu0 0
    %700 = vperm.xlu0 %699, %v634
    %v701 = vpop.permute.xlu0 %700
    %704 = vset.pattern.permute.xlu0 0
    %705 = vperm.xlu0 %704, %v635
    %v706 = vpop.permute.xlu0 %705
    %709 = vset.pattern.permute.xlu0 0
    %710 = vperm.xlu0 %709, %v636
    %v711 = vpop.permute.xlu0 %710
    %714 = vset.pattern.permute.xlu0 0
    %715 = vperm.xlu0 %714, %v637
    %v716 = vpop.permute.xlu0 %715
    %v734 = vunpack.c.l.b16 %v605
    %v735 = vunpack.c.l.b16 %v606
    %v736 = vunpack.c.l.b16 %v607
    %v737 = vunpack.c.l.b16 %v608
    %v738 = vunpack.c.l.b16 %v609
    %v739 = vunpack.c.l.b16 %v610
    %v740 = vunpack.c.l.b16 %v611
    %v741 = vunpack.c.l.b16 %v612
    %v742 = vunpack.c.l.b16 %v613
    %v743 = vunpack.c.l.b16 %v614
    %v744 = vunpack.c.l.b16 %v615
    %v745 = vunpack.c.l.b16 %v616
    %v746 = vunpack.c.l.b16 %v617
    %v747 = vunpack.c.l.b16 %v618
    %v748 = vunpack.c.l.b16 %v619
    %v749 = vunpack.c.l.b16 %v620
    %v750 = vpack.c.b16 %v735, %v734
    %v751 = vpack.c.b16 %v737, %v736
    %v752 = vpack.c.b16 %v739, %v738
    %v753 = vpack.c.b16 %v741, %v740
    %v754 = vpack.c.b16 %v743, %v742
    %v755 = vpack.c.b16 %v745, %v744
    %v756 = vpack.c.b16 %v747, %v746
    %v757 = vpack.c.b16 %v749, %v748
    %v759 = vsel %vm70, %v750, 0
    %v762 = vsel %vm70, %v751, 0
    %v765 = vsel %vm70, %v752, 0
    %v768 = vsel %vm70, %v753, 0
    %v771 = vsel %vm70, %v754, 0
    %v774 = vsel %vm70, %v755, 0
    %v777 = vsel %vm70, %v756, 0
    %v780 = vsel %vm70, %v757, 0
    %782 = vmatprep.subr.bf16.mxu0 0
    %783 = vmatpush1.bf16.msra.mxu0 %v66
    %784 = vmatprep.subr.bf16.mxu0 0
    %785 = vmatpush1.bf16.msra.mxu0 %v67
    %786 = vmatprep.subr.bf16.mxu0 0
    %787 = vmatpush1.bf16.msra.mxu0 0
    %788 = vmatprep.subr.bf16.mxu0 0
    %789 = vmatpush1.bf16.msra.mxu0 0
    %790 = vmatprep.subr.bf16.mxu0 0
    %791 = vmatpush1.bf16.msra.mxu0 0
    %792 = vmatprep.subr.bf16.mxu0 0
    %793 = vmatpush1.bf16.msra.mxu0 0
    %794 = vmatprep.subr.bf16.mxu0 0
    %795 = vmatpush1.bf16.msra.mxu0 0
    %796 = vmatprep.subr.bf16.mxu0 0
    %797 = vmatpush1.bf16.msra.mxu0 0
    %798 = vmatprep.subr.bf16.mxu0 0
    %799 = vmatpush1.bf16.msra.mxu0 0
    %800 = vmatprep.subr.bf16.mxu0 0
    %801 = vmatpush1.bf16.msra.mxu0 0
    %802 = vmatprep.subr.bf16.mxu0 0
    %803 = vmatpush1.bf16.msra.mxu0 0
    %804 = vmatprep.subr.bf16.mxu0 0
    %805 = vmatpush1.bf16.msra.mxu0 0
    %806 = vmatprep.subr.bf16.mxu0 0
    %807 = vmatpush1.bf16.msra.mxu0 0
    %808 = vmatprep.subr.bf16.mxu0 0
    %809 = vmatpush1.bf16.msra.mxu0 0
    %810 = vmatprep.subr.bf16.mxu0 0
    %811 = vmatpush1.bf16.msra.mxu0 0
    %812 = vmatprep.subr.bf16.mxu0 0
    %813 = vmatpush1.bf16.msra.mxu0 0
    %814 = vmatprep.mubr.bf16.mxu0 0
    %815 = vmatmul.mubr.bf16.gmra.mrb[0].mxu0 %v759
    %v816 = vpop.f32.mrb[0].mxu0
    %v817 = vadd.f32 %v641, %v816
    %v818 = vpop.f32.mrb[0].mxu0
    %v819 = vpop.f32.mrb[0].mxu0
    %v820 = vadd.f32 %v646, %v819
    %v821 = vpop.f32.mrb[0].mxu0
    %822 = vmatprep.mubr.bf16.mxu0 0
    %823 = vmatmul.mubr.bf16.gmra.mrb[0].mxu0 %v762
    %v824 = vpop.f32.mrb[0].mxu0
    %v825 = vadd.f32 %v651, %v824
    %v826 = vpop.f32.mrb[0].mxu0
    %v827 = vpop.f32.mrb[0].mxu0
    %v828 = vadd.f32 %v656, %v827
    %v829 = vpop.f32.mrb[0].mxu0
    %830 = vmatprep.mubr.bf16.mxu0 0
    %831 = vmatmul.mubr.bf16.gmra.mrb[0].mxu0 %v765
    %v832 = vpop.f32.mrb[0].mxu0
    %v833 = vadd.f32 %v661, %v832
    %v834 = vpop.f32.mrb[0].mxu0
    %v835 = vpop.f32.mrb[0].mxu0
    %v836 = vadd.f32 %v666, %v835
    %v837 = vpop.f32.mrb[0].mxu0
    %838 = vmatprep.mubr.bf16.mxu0 0
    %839 = vmatmul.mubr.bf16.gmra.mrb[0].mxu0 %v768
    %v840 = vpop.f32.mrb[0].mxu0
    %v841 = vadd.f32 %v671, %v840
    %v842 = vpop.f32.mrb[0].mxu0
    %v843 = vpop.f32.mrb[0].mxu0
    %v844 = vadd.f32 %v676, %v843
    %v845 = vpop.f32.mrb[0].mxu0
    %846 = vmatprep.mubr.bf16.mxu0 0
    %847 = vmatmul.mubr.bf16.gmra.mrb[0].mxu0 %v771
    %v848 = vpop.f32.mrb[0].mxu0
    %v849 = vadd.f32 %v681, %v848
    %v850 = vpop.f32.mrb[0].mxu0
    %v851 = vpop.f32.mrb[0].mxu0
    %v852 = vadd.f32 %v686, %v851
    %v853 = vpop.f32.mrb[0].mxu0
    %854 = vmatprep.mubr.bf16.mxu0 0
    %855 = vmatmul.mubr.bf16.gmra.mrb[0].mxu0 %v774
    %v856 = vpop.f32.mrb[0].mxu0
    %v857 = vadd.f32 %v691, %v856
    %v858 = vpop.f32.mrb[0].mxu0
    %v859 = vpop.f32.mrb[0].mxu0
    %v860 = vadd.f32 %v696, %v859
    %v861 = vpop.f32.mrb[0].mxu0
    %862 = vmatprep.mubr.bf16.mxu0 0
    %863 = vmatmul.mubr.bf16.gmra.mrb[0].mxu0 %v777
    %v864 = vpop.f32.mrb[0].mxu0
    %v865 = vadd.f32 %v701, %v864
    %v866 = vpop.f32.mrb[0].mxu0
    %v867 = vpop.f32.mrb[0].mxu0
    %v868 = vadd.f32 %v706, %v867
    %v869 = vpop.f32.mrb[0].mxu0
    %870 = vmatprep.mubr.bf16.mxu0 0
    %871 = vmatmul.mubr.bf16.gmra.mrb[0].mxu0 %v780
    %v872 = vpop.f32.mrb[0].mxu0
    %v873 = vadd.f32 %v711, %v872
    %v874 = vpop.f32.mrb[0].mxu0
    %v875 = vpop.f32.mrb[0].mxu0
    %v876 = vadd.f32 %v716, %v875
    %v877 = vpop.f32.mrb[0].mxu0
    %878 = vdwg.mxu0
    %v879 = vmax.f32 %v817, 0.0
    %v880 = vmax.f32 %v820, 0.0
    %v881 = vmax.f32 %v825, 0.0
    %v882 = vmax.f32 %v828, 0.0
    %v883 = vmax.f32 %v833, 0.0
    %v884 = vmax.f32 %v836, 0.0
    %v885 = vmax.f32 %v841, 0.0
    %v886 = vmax.f32 %v844, 0.0
    %v887 = vmax.f32 %v849, 0.0
    %v888 = vmax.f32 %v852, 0.0
    %v889 = vmax.f32 %v857, 0.0
    %v890 = vmax.f32 %v860, 0.0
    %v891 = vmax.f32 %v865, 0.0
    %v892 = vmax.f32 %v868, 0.0
    %v893 = vmax.f32 %v873, 0.0
    %v894 = vmax.f32 %v876, 0.0
    %v895 = vpack.c.bf16 %v880, %v879
    %v896 = vpack.c.bf16 %v882, %v881
    %v897 = vpack.c.bf16 %v884, %v883
    %v898 = vpack.c.bf16 %v886, %v885
    %v899 = vpack.c.bf16 %v888, %v887
    %v900 = vpack.c.bf16 %v890, %v889
    %v901 = vpack.c.bf16 %v892, %v891
    %v902 = vpack.c.bf16 %v894, %v893
    %s903 = scalar_lea.vmem %s6, 16
    %v904 = vld [vmem:[%s903] sm:$0xf]
    %v905 = vld [vmem:[%s903 + $0x4] sm:$0xf]
    %v906 = vld [vmem:[%s903 + $0x8] sm:$0xf]
    %v907 = vld [vmem:[%s903 + $0xc] sm:$0xf]
    %s908 = scalar_lea.vmem %s7, 32
    %v909 = vld [vmem:[%s908] sm:$0xff]
    %v910 = vld [vmem:[%s908 + $0x8] sm:$0xff]
    %v911 = vld [vmem:[%s908 + $0x10] sm:$0xff]
    %v912 = vld [vmem:[%s908 + $0x18] sm:$0xff]
    %914 = vset.pattern.permute.xlu0 0
    %915 = vperm.xlu0 %914, %v909
    %v916 = vpop.permute.xlu0 %915
    %919 = vset.pattern.permute.xlu0 0
    %920 = vperm.xlu0 %919, %v910
    %v921 = vpop.permute.xlu0 %920
    %924 = vset.pattern.permute.xlu0 0
    %925 = vperm.xlu0 %924, %v911
    %v926 = vpop.permute.xlu0 %925
    %929 = vset.pattern.permute.xlu0 0
    %930 = vperm.xlu0 %929, %v912
    %v931 = vpop.permute.xlu0 %930
    %v937 = vunpack.c.l.b16 %v904
    %v938 = vunpack.c.l.b16 %v905
    %v939 = vunpack.c.l.b16 %v906
    %v940 = vunpack.c.l.b16 %v907
    %v941 = vpack.c.b16 %v938, %v937
    %v942 = vpack.c.b16 %v940, %v939
    %945 = vmatprep.subr.bf16.mxu0 0
    %946 = vmatpush1.bf16.msra.mxu0 %v895
    %947 = vmatprep.subr.bf16.mxu0 0
    %948 = vmatpush1.bf16.msra.mxu0 %v896
    %949 = vmatprep.subr.bf16.mxu0 0
    %950 = vmatpush1.bf16.msra.mxu0 %v897
    %951 = vmatprep.subr.bf16.mxu0 0
    %952 = vmatpush1.bf16.msra.mxu0 %v898
    %953 = vmatprep.subr.bf16.mxu0 0
    %954 = vmatpush1.bf16.msra.mxu0 %v899
    %955 = vmatprep.subr.bf16.mxu0 0
    %956 = vmatpush1.bf16.msra.mxu0 %v900
    %957 = vmatprep.subr.bf16.mxu0 0
    %958 = vmatpush1.bf16.msra.mxu0 %v901
    %959 = vmatprep.subr.bf16.mxu0 0
    %960 = vmatpush1.bf16.msra.mxu0 %v902
    %961 = vmatprep.subr.bf16.mxu0 0
    %962 = vmatpush1.bf16.msra.mxu0 0
    %963 = vmatprep.subr.bf16.mxu0 0
    %964 = vmatpush1.bf16.msra.mxu0 0
    %965 = vmatprep.subr.bf16.mxu0 0
    %966 = vmatpush1.bf16.msra.mxu0 0
    %967 = vmatprep.subr.bf16.mxu0 0
    %968 = vmatpush1.bf16.msra.mxu0 0
    %969 = vmatprep.subr.bf16.mxu0 0
    %970 = vmatpush1.bf16.msra.mxu0 0
    %971 = vmatprep.subr.bf16.mxu0 0
    %972 = vmatpush1.bf16.msra.mxu0 0
    %973 = vmatprep.subr.bf16.mxu0 0
    %974 = vmatpush1.bf16.msra.mxu0 0
    %975 = vmatprep.subr.bf16.mxu0 0
    %976 = vmatpush1.bf16.msra.mxu0 0
    %977 = vmatprep.mubr.bf16.mxu0 0
    %978 = vmatmul.mubr.bf16.gmra.mrb[0].mxu0 %v941
    %v979 = vpop.f32.mrb[0].mxu0
    %v980 = vadd.f32 %v916, %v979
    %v981 = vpop.f32.mrb[0].mxu0
    %v982 = vpop.f32.mrb[0].mxu0
    %v983 = vadd.f32 %v921, %v982
    %v984 = vpop.f32.mrb[0].mxu0
    %985 = vmatprep.mubr.bf16.mxu0 0
    %986 = vmatmul.mubr.bf16.gmra.mrb[0].mxu0 %v942
    %v987 = vpop.f32.mrb[0].mxu0
    %v988 = vadd.f32 %v926, %v987
    %v989 = vpop.f32.mrb[0].mxu0
    %v990 = vpop.f32.mrb[0].mxu0
    %v991 = vadd.f32 %v931, %v990
    %v992 = vpop.f32.mrb[0].mxu0
    %993 = vdwg.mxu0
    %v994 = vlaneseq
    %v995 = vshrl.u32 %v994, 7
    %v996 = vsub.s32 1, %v995
    %v997 = vrot.slane %v200, %v996
    %v998 = vmul.f32 %v997, %v980
    %v999 = vmul.f32 %v997, %v983
    %v1000 = vmul.f32 %v997, %v988
    %v1001 = vmul.f32 %v997, %v991
    %v1002 = vadd.f32 %v600, %v998
    %v1003 = vadd.f32 %v601, %v999
    %v1004 = vadd.f32 %v602, %v1000
    %v1005 = vadd.f32 %v603, %v1001
    %s1006 = scalar_lea.vmem %s4, 128
    %v1007 = vld [vmem:[%s1006] sm:$0xf]
    %v1008 = vld [vmem:[%s1006 + $0x4] sm:$0xf]
    %v1009 = vld [vmem:[%s1006 + $0x8] sm:$0xf]
    %v1010 = vld [vmem:[%s1006 + $0xc] sm:$0xf]
    %v1011 = vld [vmem:[%s1006 + $0x10] sm:$0xf]
    %v1012 = vld [vmem:[%s1006 + $0x14] sm:$0xf]
    %v1013 = vld [vmem:[%s1006 + $0x18] sm:$0xf]
    %v1014 = vld [vmem:[%s1006 + $0x1c] sm:$0xf]
    %v1015 = vld [vmem:[%s1006 + $0x20] sm:$0xf]
    %v1016 = vld [vmem:[%s1006 + $0x24] sm:$0xf]
    %v1017 = vld [vmem:[%s1006 + $0x28] sm:$0xf]
    %v1018 = vld [vmem:[%s1006 + $0x2c] sm:$0xf]
    %v1019 = vld [vmem:[%s1006 + $0x30] sm:$0xf]
    %v1020 = vld [vmem:[%s1006 + $0x34] sm:$0xf]
    %v1021 = vld [vmem:[%s1006 + $0x38] sm:$0xf]
    %v1022 = vld [vmem:[%s1006 + $0x3c] sm:$0xf]
    %s1023 = scalar_lea.vmem %s5, 256
    %v1024 = vld [vmem:[%s1023] sm:$0xff]
    %v1025 = vld [vmem:[%s1023 + $0x8] sm:$0xff]
    %v1026 = vld [vmem:[%s1023 + $0x10] sm:$0xff]
    %v1027 = vld [vmem:[%s1023 + $0x18] sm:$0xff]
    %v1028 = vld [vmem:[%s1023 + $0x20] sm:$0xff]
    %v1029 = vld [vmem:[%s1023 + $0x28] sm:$0xff]
    %v1030 = vld [vmem:[%s1023 + $0x30] sm:$0xff]
    %v1031 = vld [vmem:[%s1023 + $0x38] sm:$0xff]
    %v1032 = vld [vmem:[%s1023 + $0x40] sm:$0xff]
    %v1033 = vld [vmem:[%s1023 + $0x48] sm:$0xff]
    %v1034 = vld [vmem:[%s1023 + $0x50] sm:$0xff]
    %v1035 = vld [vmem:[%s1023 + $0x58] sm:$0xff]
    %v1036 = vld [vmem:[%s1023 + $0x60] sm:$0xff]
    %v1037 = vld [vmem:[%s1023 + $0x68] sm:$0xff]
    %v1038 = vld [vmem:[%s1023 + $0x70] sm:$0xff]
    %v1039 = vld [vmem:[%s1023 + $0x78] sm:$0xff]
    %1041 = vset.pattern.permute.xlu0 0
    %1042 = vperm.xlu0 %1041, %v1024
    %v1043 = vpop.permute.xlu0 %1042
    %1046 = vset.pattern.permute.xlu0 0
    %1047 = vperm.xlu0 %1046, %v1025
    %v1048 = vpop.permute.xlu0 %1047
    %1051 = vset.pattern.permute.xlu0 0
    %1052 = vperm.xlu0 %1051, %v1026
    %v1053 = vpop.permute.xlu0 %1052
    %1056 = vset.pattern.permute.xlu0 0
    %1057 = vperm.xlu0 %1056, %v1027
    %v1058 = vpop.permute.xlu0 %1057
    %1061 = vset.pattern.permute.xlu0 0
    %1062 = vperm.xlu0 %1061, %v1028
    %v1063 = vpop.permute.xlu0 %1062
    %1066 = vset.pattern.permute.xlu0 0
    %1067 = vperm.xlu0 %1066, %v1029
    %v1068 = vpop.permute.xlu0 %1067
    %1071 = vset.pattern.permute.xlu0 0
    %1072 = vperm.xlu0 %1071, %v1030
    %v1073 = vpop.permute.xlu0 %1072
    %1076 = vset.pattern.permute.xlu0 0
    %1077 = vperm.xlu0 %1076, %v1031
    %v1078 = vpop.permute.xlu0 %1077
    %1081 = vset.pattern.permute.xlu0 0
    %1082 = vperm.xlu0 %1081, %v1032
    %v1083 = vpop.permute.xlu0 %1082
    %1086 = vset.pattern.permute.xlu0 0
    %1087 = vperm.xlu0 %1086, %v1033
    %v1088 = vpop.permute.xlu0 %1087
    %1091 = vset.pattern.permute.xlu0 0
    %1092 = vperm.xlu0 %1091, %v1034
    %v1093 = vpop.permute.xlu0 %1092
    %1096 = vset.pattern.permute.xlu0 0
    %1097 = vperm.xlu0 %1096, %v1035
    %v1098 = vpop.permute.xlu0 %1097
    %1101 = vset.pattern.permute.xlu0 0
    %1102 = vperm.xlu0 %1101, %v1036
    %v1103 = vpop.permute.xlu0 %1102
    %1106 = vset.pattern.permute.xlu0 0
    %1107 = vperm.xlu0 %1106, %v1037
    %v1108 = vpop.permute.xlu0 %1107
    %1111 = vset.pattern.permute.xlu0 0
    %1112 = vperm.xlu0 %1111, %v1038
    %v1113 = vpop.permute.xlu0 %1112
    %1116 = vset.pattern.permute.xlu0 0
    %1117 = vperm.xlu0 %1116, %v1039
    %v1118 = vpop.permute.xlu0 %1117
    %v1136 = vunpack.c.l.b16 %v1007
    %v1137 = vunpack.c.l.b16 %v1008
    %v1138 = vunpack.c.l.b16 %v1009
    %v1139 = vunpack.c.l.b16 %v1010
    %v1140 = vunpack.c.l.b16 %v1011
    %v1141 = vunpack.c.l.b16 %v1012
    %v1142 = vunpack.c.l.b16 %v1013
    %v1143 = vunpack.c.l.b16 %v1014
    %v1144 = vunpack.c.l.b16 %v1015
    %v1145 = vunpack.c.l.b16 %v1016
    %v1146 = vunpack.c.l.b16 %v1017
    %v1147 = vunpack.c.l.b16 %v1018
    %v1148 = vunpack.c.l.b16 %v1019
    %v1149 = vunpack.c.l.b16 %v1020
    %v1150 = vunpack.c.l.b16 %v1021
    %v1151 = vunpack.c.l.b16 %v1022
    %v1152 = vpack.c.b16 %v1137, %v1136
    %v1153 = vpack.c.b16 %v1139, %v1138
    %v1154 = vpack.c.b16 %v1141, %v1140
    %v1155 = vpack.c.b16 %v1143, %v1142
    %v1156 = vpack.c.b16 %v1145, %v1144
    %v1157 = vpack.c.b16 %v1147, %v1146
    %v1158 = vpack.c.b16 %v1149, %v1148
    %v1159 = vpack.c.b16 %v1151, %v1150
    %v1161 = vsel %vm70, %v1152, 0
    %v1164 = vsel %vm70, %v1153, 0
    %v1167 = vsel %vm70, %v1154, 0
    %v1170 = vsel %vm70, %v1155, 0
    %v1173 = vsel %vm70, %v1156, 0
    %v1176 = vsel %vm70, %v1157, 0
    %v1179 = vsel %vm70, %v1158, 0
    %v1182 = vsel %vm70, %v1159, 0
    %1184 = vmatprep.subr.bf16.mxu0 0
    %1185 = vmatpush1.bf16.msra.mxu0 %v66
    %1186 = vmatprep.subr.bf16.mxu0 0
    %1187 = vmatpush1.bf16.msra.mxu0 %v67
    %1188 = vmatprep.subr.bf16.mxu0 0
    %1189 = vmatpush1.bf16.msra.mxu0 0
    %1190 = vmatprep.subr.bf16.mxu0 0
    %1191 = vmatpush1.bf16.msra.mxu0 0
    %1192 = vmatprep.subr.bf16.mxu0 0
    %1193 = vmatpush1.bf16.msra.mxu0 0
    %1194 = vmatprep.subr.bf16.mxu0 0
    %1195 = vmatpush1.bf16.msra.mxu0 0
    %1196 = vmatprep.subr.bf16.mxu0 0
    %1197 = vmatpush1.bf16.msra.mxu0 0
    %1198 = vmatprep.subr.bf16.mxu0 0
    %1199 = vmatpush1.bf16.msra.mxu0 0
    %1200 = vmatprep.subr.bf16.mxu0 0
    %1201 = vmatpush1.bf16.msra.mxu0 0
    %1202 = vmatprep.subr.bf16.mxu0 0
    %1203 = vmatpush1.bf16.msra.mxu0 0
    %1204 = vmatprep.subr.bf16.mxu0 0
    %1205 = vmatpush1.bf16.msra.mxu0 0
    %1206 = vmatprep.subr.bf16.mxu0 0
    %1207 = vmatpush1.bf16.msra.mxu0 0
    %1208 = vmatprep.subr.bf16.mxu0 0
    %1209 = vmatpush1.bf16.msra.mxu0 0
    %1210 = vmatprep.subr.bf16.mxu0 0
    %1211 = vmatpush1.bf16.msra.mxu0 0
    %1212 = vmatprep.subr.bf16.mxu0 0
    %1213 = vmatpush1.bf16.msra.mxu0 0
    %1214 = vmatprep.subr.bf16.mxu0 0
    %1215 = vmatpush1.bf16.msra.mxu0 0
    %1216 = vmatprep.mubr.bf16.mxu0 0
    %1217 = vmatmul.mubr.bf16.gmra.mrb[0].mxu0 %v1161
    %v1218 = vpop.f32.mrb[0].mxu0
    %v1219 = vadd.f32 %v1043, %v1218
    %v1220 = vpop.f32.mrb[0].mxu0
    %v1221 = vpop.f32.mrb[0].mxu0
    %v1222 = vadd.f32 %v1048, %v1221
    %v1223 = vpop.f32.mrb[0].mxu0
    %1224 = vmatprep.mubr.bf16.mxu0 0
    %1225 = vmatmul.mubr.bf16.gmra.mrb[0].mxu0 %v1164
    %v1226 = vpop.f32.mrb[0].mxu0
    %v1227 = vadd.f32 %v1053, %v1226
    %v1228 = vpop.f32.mrb[0].mxu0
    %v1229 = vpop.f32.mrb[0].mxu0
    %v1230 = vadd.f32 %v1058, %v1229
    %v1231 = vpop.f32.mrb[0].mxu0
    %1232 = vmatprep.mubr.bf16.mxu0 0
    %1233 = vmatmul.mubr.bf16.gmra.mrb[0].mxu0 %v1167
    %v1234 = vpop.f32.mrb[0].mxu0
    %v1235 = vadd.f32 %v1063, %v1234
    %v1236 = vpop.f32.mrb[0].mxu0
    %v1237 = vpop.f32.mrb[0].mxu0
    %v1238 = vadd.f32 %v1068, %v1237
    %v1239 = vpop.f32.mrb[0].mxu0
    %1240 = vmatprep.mubr.bf16.mxu0 0
    %1241 = vmatmul.mubr.bf16.gmra.mrb[0].mxu0 %v1170
    %v1242 = vpop.f32.mrb[0].mxu0
    %v1243 = vadd.f32 %v1073, %v1242
    %v1244 = vpop.f32.mrb[0].mxu0
    %v1245 = vpop.f32.mrb[0].mxu0
    %v1246 = vadd.f32 %v1078, %v1245
    %v1247 = vpop.f32.mrb[0].mxu0
    %1248 = vmatprep.mubr.bf16.mxu0 0
    %1249 = vmatmul.mubr.bf16.gmra.mrb[0].mxu0 %v1173
    %v1250 = vpop.f32.mrb[0].mxu0
    %v1251 = vadd.f32 %v1083, %v1250
    %v1252 = vpop.f32.mrb[0].mxu0
    %v1253 = vpop.f32.mrb[0].mxu0
    %v1254 = vadd.f32 %v1088, %v1253
    %v1255 = vpop.f32.mrb[0].mxu0
    %1256 = vmatprep.mubr.bf16.mxu0 0
    %1257 = vmatmul.mubr.bf16.gmra.mrb[0].mxu0 %v1176
    %v1258 = vpop.f32.mrb[0].mxu0
    %v1259 = vadd.f32 %v1093, %v1258
    %v1260 = vpop.f32.mrb[0].mxu0
    %v1261 = vpop.f32.mrb[0].mxu0
    %v1262 = vadd.f32 %v1098, %v1261
    %v1263 = vpop.f32.mrb[0].mxu0
    %1264 = vmatprep.mubr.bf16.mxu0 0
    %1265 = vmatmul.mubr.bf16.gmra.mrb[0].mxu0 %v1179
    %v1266 = vpop.f32.mrb[0].mxu0
    %v1267 = vadd.f32 %v1103, %v1266
    %v1268 = vpop.f32.mrb[0].mxu0
    %v1269 = vpop.f32.mrb[0].mxu0
    %v1270 = vadd.f32 %v1108, %v1269
    %v1271 = vpop.f32.mrb[0].mxu0
    %1272 = vmatprep.mubr.bf16.mxu0 0
    %1273 = vmatmul.mubr.bf16.gmra.mrb[0].mxu0 %v1182
    %v1274 = vpop.f32.mrb[0].mxu0
    %v1275 = vadd.f32 %v1113, %v1274
    %v1276 = vpop.f32.mrb[0].mxu0
    %v1277 = vpop.f32.mrb[0].mxu0
    %v1278 = vadd.f32 %v1118, %v1277
    %v1279 = vpop.f32.mrb[0].mxu0
    %1280 = vdwg.mxu0
    %v1281 = vmax.f32 %v1219, 0.0
    %v1282 = vmax.f32 %v1222, 0.0
    %v1283 = vmax.f32 %v1227, 0.0
    %v1284 = vmax.f32 %v1230, 0.0
    %v1285 = vmax.f32 %v1235, 0.0
    %v1286 = vmax.f32 %v1238, 0.0
    %v1287 = vmax.f32 %v1243, 0.0
    %v1288 = vmax.f32 %v1246, 0.0
    %v1289 = vmax.f32 %v1251, 0.0
    %v1290 = vmax.f32 %v1254, 0.0
    %v1291 = vmax.f32 %v1259, 0.0
    %v1292 = vmax.f32 %v1262, 0.0
    %v1293 = vmax.f32 %v1267, 0.0
    %v1294 = vmax.f32 %v1270, 0.0
    %v1295 = vmax.f32 %v1275, 0.0
    %v1296 = vmax.f32 %v1278, 0.0
    %v1297 = vpack.c.bf16 %v1282, %v1281
    %v1298 = vpack.c.bf16 %v1284, %v1283
    %v1299 = vpack.c.bf16 %v1286, %v1285
    %v1300 = vpack.c.bf16 %v1288, %v1287
    %v1301 = vpack.c.bf16 %v1290, %v1289
    %v1302 = vpack.c.bf16 %v1292, %v1291
    %v1303 = vpack.c.bf16 %v1294, %v1293
    %v1304 = vpack.c.bf16 %v1296, %v1295
    %s1305 = scalar_lea.vmem %s6, 32
    %v1306 = vld [vmem:[%s1305] sm:$0xf]
    %v1307 = vld [vmem:[%s1305 + $0x4] sm:$0xf]
    %v1308 = vld [vmem:[%s1305 + $0x8] sm:$0xf]
    %v1309 = vld [vmem:[%s1305 + $0xc] sm:$0xf]
    %s1310 = scalar_lea.vmem %s7, 64
    %v1311 = vld [vmem:[%s1310] sm:$0xff]
    %v1312 = vld [vmem:[%s1310 + $0x8] sm:$0xff]
    %v1313 = vld [vmem:[%s1310 + $0x10] sm:$0xff]
    %v1314 = vld [vmem:[%s1310 + $0x18] sm:$0xff]
    %1316 = vset.pattern.permute.xlu0 0
    %1317 = vperm.xlu0 %1316, %v1311
    %v1318 = vpop.permute.xlu0 %1317
    %1321 = vset.pattern.permute.xlu0 0
    %1322 = vperm.xlu0 %1321, %v1312
    %v1323 = vpop.permute.xlu0 %1322
    %1326 = vset.pattern.permute.xlu0 0
    %1327 = vperm.xlu0 %1326, %v1313
    %v1328 = vpop.permute.xlu0 %1327
    %1331 = vset.pattern.permute.xlu0 0
    %1332 = vperm.xlu0 %1331, %v1314
    %v1333 = vpop.permute.xlu0 %1332
    %v1339 = vunpack.c.l.b16 %v1306
    %v1340 = vunpack.c.l.b16 %v1307
    %v1341 = vunpack.c.l.b16 %v1308
    %v1342 = vunpack.c.l.b16 %v1309
    %v1343 = vpack.c.b16 %v1340, %v1339
    %v1344 = vpack.c.b16 %v1342, %v1341
    %1347 = vmatprep.subr.bf16.mxu0 0
    %1348 = vmatpush1.bf16.msra.mxu0 %v1297
    %1349 = vmatprep.subr.bf16.mxu0 0
    %1350 = vmatpush1.bf16.msra.mxu0 %v1298
    %1351 = vmatprep.subr.bf16.mxu0 0
    %1352 = vmatpush1.bf16.msra.mxu0 %v1299
    %1353 = vmatprep.subr.bf16.mxu0 0
    %1354 = vmatpush1.bf16.msra.mxu0 %v1300
    %1355 = vmatprep.subr.bf16.mxu0 0
    %1356 = vmatpush1.bf16.msra.mxu0 %v1301
    %1357 = vmatprep.subr.bf16.mxu0 0
    %1358 = vmatpush1.bf16.msra.mxu0 %v1302
    %1359 = vmatprep.subr.bf16.mxu0 0
    %1360 = vmatpush1.bf16.msra.mxu0 %v1303
    %1361 = vmatprep.subr.bf16.mxu0 0
    %1362 = vmatpush1.bf16.msra.mxu0 %v1304
    %1363 = vmatprep.subr.bf16.mxu0 0
    %1364 = vmatpush1.bf16.msra.mxu0 0
    %1365 = vmatprep.subr.bf16.mxu0 0
    %1366 = vmatpush1.bf16.msra.mxu0 0
    %1367 = vmatprep.subr.bf16.mxu0 0
    %1368 = vmatpush1.bf16.msra.mxu0 0
    %1369 = vmatprep.subr.bf16.mxu0 0
    %1370 = vmatpush1.bf16.msra.mxu0 0
    %1371 = vmatprep.subr.bf16.mxu0 0
    %1372 = vmatpush1.bf16.msra.mxu0 0
    %1373 = vmatprep.subr.bf16.mxu0 0
    %1374 = vmatpush1.bf16.msra.mxu0 0
    %1375 = vmatprep.subr.bf16.mxu0 0
    %1376 = vmatpush1.bf16.msra.mxu0 0
    %1377 = vmatprep.subr.bf16.mxu0 0
    %1378 = vmatpush1.bf16.msra.mxu0 0
    %1379 = vmatprep.mubr.bf16.mxu0 0
    %1380 = vmatmul.mubr.bf16.gmra.mrb[0].mxu0 %v1343
    %v1381 = vpop.f32.mrb[0].mxu0
    %v1382 = vadd.f32 %v1318, %v1381
    %v1383 = vpop.f32.mrb[0].mxu0
    %v1384 = vpop.f32.mrb[0].mxu0
    %v1385 = vadd.f32 %v1323, %v1384
    %v1386 = vpop.f32.mrb[0].mxu0
    %1387 = vmatprep.mubr.bf16.mxu0 0
    %1388 = vmatmul.mubr.bf16.gmra.mrb[0].mxu0 %v1344
    %v1389 = vpop.f32.mrb[0].mxu0
    %v1390 = vadd.f32 %v1328, %v1389
    %v1391 = vpop.f32.mrb[0].mxu0
    %v1392 = vpop.f32.mrb[0].mxu0
    %v1393 = vadd.f32 %v1333, %v1392
    %v1394 = vpop.f32.mrb[0].mxu0
    %1395 = vdwg.mxu0
    %v1396 = vlaneseq
    %v1397 = vshrl.u32 %v1396, 7
    %v1398 = vsub.s32 2, %v1397
    %v1399 = vrot.slane %v200, %v1398
    %v1400 = vmul.f32 %v1399, %v1382
    %v1401 = vmul.f32 %v1399, %v1385
    %v1402 = vmul.f32 %v1399, %v1390
    %v1403 = vmul.f32 %v1399, %v1393
    %v1404 = vadd.f32 %v1002, %v1400
    %v1405 = vadd.f32 %v1003, %v1401
    %v1406 = vadd.f32 %v1004, %v1402
    %v1407 = vadd.f32 %v1005, %v1403
    %s1408 = scalar_lea.vmem %s4, 192
    %v1409 = vld [vmem:[%s1408] sm:$0xf]
    %v1410 = vld [vmem:[%s1408 + $0x4] sm:$0xf]
    %v1411 = vld [vmem:[%s1408 + $0x8] sm:$0xf]
    %v1412 = vld [vmem:[%s1408 + $0xc] sm:$0xf]
    %v1413 = vld [vmem:[%s1408 + $0x10] sm:$0xf]
    %v1414 = vld [vmem:[%s1408 + $0x14] sm:$0xf]
    %v1415 = vld [vmem:[%s1408 + $0x18] sm:$0xf]
    %v1416 = vld [vmem:[%s1408 + $0x1c] sm:$0xf]
    %v1417 = vld [vmem:[%s1408 + $0x20] sm:$0xf]
    %v1418 = vld [vmem:[%s1408 + $0x24] sm:$0xf]
    %v1419 = vld [vmem:[%s1408 + $0x28] sm:$0xf]
    %v1420 = vld [vmem:[%s1408 + $0x2c] sm:$0xf]
    %v1421 = vld [vmem:[%s1408 + $0x30] sm:$0xf]
    %v1422 = vld [vmem:[%s1408 + $0x34] sm:$0xf]
    %v1423 = vld [vmem:[%s1408 + $0x38] sm:$0xf]
    %v1424 = vld [vmem:[%s1408 + $0x3c] sm:$0xf]
    %s1425 = scalar_lea.vmem %s5, 384
    %v1426 = vld [vmem:[%s1425] sm:$0xff]
    %v1427 = vld [vmem:[%s1425 + $0x8] sm:$0xff]
    %v1428 = vld [vmem:[%s1425 + $0x10] sm:$0xff]
    %v1429 = vld [vmem:[%s1425 + $0x18] sm:$0xff]
    %v1430 = vld [vmem:[%s1425 + $0x20] sm:$0xff]
    %v1431 = vld [vmem:[%s1425 + $0x28] sm:$0xff]
    %v1432 = vld [vmem:[%s1425 + $0x30] sm:$0xff]
    %v1433 = vld [vmem:[%s1425 + $0x38] sm:$0xff]
    %v1434 = vld [vmem:[%s1425 + $0x40] sm:$0xff]
    %v1435 = vld [vmem:[%s1425 + $0x48] sm:$0xff]
    %v1436 = vld [vmem:[%s1425 + $0x50] sm:$0xff]
    %v1437 = vld [vmem:[%s1425 + $0x58] sm:$0xff]
    %v1438 = vld [vmem:[%s1425 + $0x60] sm:$0xff]
    %v1439 = vld [vmem:[%s1425 + $0x68] sm:$0xff]
    %v1440 = vld [vmem:[%s1425 + $0x70] sm:$0xff]
    %v1441 = vld [vmem:[%s1425 + $0x78] sm:$0xff]
    %1443 = vset.pattern.permute.xlu0 0
    %1444 = vperm.xlu0 %1443, %v1426
    %v1445 = vpop.permute.xlu0 %1444
    %1448 = vset.pattern.permute.xlu0 0
    %1449 = vperm.xlu0 %1448, %v1427
    %v1450 = vpop.permute.xlu0 %1449
    %1453 = vset.pattern.permute.xlu0 0
    %1454 = vperm.xlu0 %1453, %v1428
    %v1455 = vpop.permute.xlu0 %1454
    %1458 = vset.pattern.permute.xlu0 0
    %1459 = vperm.xlu0 %1458, %v1429
    %v1460 = vpop.permute.xlu0 %1459
    %1463 = vset.pattern.permute.xlu0 0
    %1464 = vperm.xlu0 %1463, %v1430
    %v1465 = vpop.permute.xlu0 %1464
    %1468 = vset.pattern.permute.xlu0 0
    %1469 = vperm.xlu0 %1468, %v1431
    %v1470 = vpop.permute.xlu0 %1469
    %1473 = vset.pattern.permute.xlu0 0
    %1474 = vperm.xlu0 %1473, %v1432
    %v1475 = vpop.permute.xlu0 %1474
    %1478 = vset.pattern.permute.xlu0 0
    %1479 = vperm.xlu0 %1478, %v1433
    %v1480 = vpop.permute.xlu0 %1479
    %1483 = vset.pattern.permute.xlu0 0
    %1484 = vperm.xlu0 %1483, %v1434
    %v1485 = vpop.permute.xlu0 %1484
    %1488 = vset.pattern.permute.xlu0 0
    %1489 = vperm.xlu0 %1488, %v1435
    %v1490 = vpop.permute.xlu0 %1489
    %1493 = vset.pattern.permute.xlu0 0
    %1494 = vperm.xlu0 %1493, %v1436
    %v1495 = vpop.permute.xlu0 %1494
    %1498 = vset.pattern.permute.xlu0 0
    %1499 = vperm.xlu0 %1498, %v1437
    %v1500 = vpop.permute.xlu0 %1499
    %1503 = vset.pattern.permute.xlu0 0
    %1504 = vperm.xlu0 %1503, %v1438
    %v1505 = vpop.permute.xlu0 %1504
    %1508 = vset.pattern.permute.xlu0 0
    %1509 = vperm.xlu0 %1508, %v1439
    %v1510 = vpop.permute.xlu0 %1509
    %1513 = vset.pattern.permute.xlu0 0
    %1514 = vperm.xlu0 %1513, %v1440
    %v1515 = vpop.permute.xlu0 %1514
    %1518 = vset.pattern.permute.xlu0 0
    %1519 = vperm.xlu0 %1518, %v1441
    %v1520 = vpop.permute.xlu0 %1519
    %v1538 = vunpack.c.l.b16 %v1409
    %v1539 = vunpack.c.l.b16 %v1410
    %v1540 = vunpack.c.l.b16 %v1411
    %v1541 = vunpack.c.l.b16 %v1412
    %v1542 = vunpack.c.l.b16 %v1413
    %v1543 = vunpack.c.l.b16 %v1414
    %v1544 = vunpack.c.l.b16 %v1415
    %v1545 = vunpack.c.l.b16 %v1416
    %v1546 = vunpack.c.l.b16 %v1417
    %v1547 = vunpack.c.l.b16 %v1418
    %v1548 = vunpack.c.l.b16 %v1419
    %v1549 = vunpack.c.l.b16 %v1420
    %v1550 = vunpack.c.l.b16 %v1421
    %v1551 = vunpack.c.l.b16 %v1422
    %v1552 = vunpack.c.l.b16 %v1423
    %v1553 = vunpack.c.l.b16 %v1424
    %v1554 = vpack.c.b16 %v1539, %v1538
    %v1555 = vpack.c.b16 %v1541, %v1540
    %v1556 = vpack.c.b16 %v1543, %v1542
    %v1557 = vpack.c.b16 %v1545, %v1544
    %v1558 = vpack.c.b16 %v1547, %v1546
    %v1559 = vpack.c.b16 %v1549, %v1548
    %v1560 = vpack.c.b16 %v1551, %v1550
    %v1561 = vpack.c.b16 %v1553, %v1552
    %v1563 = vsel %vm70, %v1554, 0
    %v1566 = vsel %vm70, %v1555, 0
    %v1569 = vsel %vm70, %v1556, 0
    %v1572 = vsel %vm70, %v1557, 0
    %v1575 = vsel %vm70, %v1558, 0
    %v1578 = vsel %vm70, %v1559, 0
    %v1581 = vsel %vm70, %v1560, 0
    %v1584 = vsel %vm70, %v1561, 0
    %1586 = vmatprep.subr.bf16.mxu0 0
    %1587 = vmatpush1.bf16.msra.mxu0 %v66
    %1588 = vmatprep.subr.bf16.mxu0 0
    %1589 = vmatpush1.bf16.msra.mxu0 %v67
    %1590 = vmatprep.subr.bf16.mxu0 0
    %1591 = vmatpush1.bf16.msra.mxu0 0
    %1592 = vmatprep.subr.bf16.mxu0 0
    %1593 = vmatpush1.bf16.msra.mxu0 0
    %1594 = vmatprep.subr.bf16.mxu0 0
    %1595 = vmatpush1.bf16.msra.mxu0 0
    %1596 = vmatprep.subr.bf16.mxu0 0
    %1597 = vmatpush1.bf16.msra.mxu0 0
    %1598 = vmatprep.subr.bf16.mxu0 0
    %1599 = vmatpush1.bf16.msra.mxu0 0
    %1600 = vmatprep.subr.bf16.mxu0 0
    %1601 = vmatpush1.bf16.msra.mxu0 0
    %1602 = vmatprep.subr.bf16.mxu0 0
    %1603 = vmatpush1.bf16.msra.mxu0 0
    %1604 = vmatprep.subr.bf16.mxu0 0
    %1605 = vmatpush1.bf16.msra.mxu0 0
    %1606 = vmatprep.subr.bf16.mxu0 0
    %1607 = vmatpush1.bf16.msra.mxu0 0
    %1608 = vmatprep.subr.bf16.mxu0 0
    %1609 = vmatpush1.bf16.msra.mxu0 0
    %1610 = vmatprep.subr.bf16.mxu0 0
    %1611 = vmatpush1.bf16.msra.mxu0 0
    %1612 = vmatprep.subr.bf16.mxu0 0
    %1613 = vmatpush1.bf16.msra.mxu0 0
    %1614 = vmatprep.subr.bf16.mxu0 0
    %1615 = vmatpush1.bf16.msra.mxu0 0
    %1616 = vmatprep.subr.bf16.mxu0 0
    %1617 = vmatpush1.bf16.msra.mxu0 0
    %1618 = vmatprep.mubr.bf16.mxu0 0
    %1619 = vmatmul.mubr.bf16.gmra.mrb[0].mxu0 %v1563
    %v1620 = vpop.f32.mrb[0].mxu0
    %v1621 = vadd.f32 %v1445, %v1620
    %v1622 = vpop.f32.mrb[0].mxu0
    %v1623 = vpop.f32.mrb[0].mxu0
    %v1624 = vadd.f32 %v1450, %v1623
    %v1625 = vpop.f32.mrb[0].mxu0
    %1626 = vmatprep.mubr.bf16.mxu0 0
    %1627 = vmatmul.mubr.bf16.gmra.mrb[0].mxu0 %v1566
    %v1628 = vpop.f32.mrb[0].mxu0
    %v1629 = vadd.f32 %v1455, %v1628
    %v1630 = vpop.f32.mrb[0].mxu0
    %v1631 = vpop.f32.mrb[0].mxu0
    %v1632 = vadd.f32 %v1460, %v1631
    %v1633 = vpop.f32.mrb[0].mxu0
    %1634 = vmatprep.mubr.bf16.mxu0 0
    %1635 = vmatmul.mubr.bf16.gmra.mrb[0].mxu0 %v1569
    %v1636 = vpop.f32.mrb[0].mxu0
    %v1637 = vadd.f32 %v1465, %v1636
    %v1638 = vpop.f32.mrb[0].mxu0
    %v1639 = vpop.f32.mrb[0].mxu0
    %v1640 = vadd.f32 %v1470, %v1639
    %v1641 = vpop.f32.mrb[0].mxu0
    %1642 = vmatprep.mubr.bf16.mxu0 0
    %1643 = vmatmul.mubr.bf16.gmra.mrb[0].mxu0 %v1572
    %v1644 = vpop.f32.mrb[0].mxu0
    %v1645 = vadd.f32 %v1475, %v1644
    %v1646 = vpop.f32.mrb[0].mxu0
    %v1647 = vpop.f32.mrb[0].mxu0
    %v1648 = vadd.f32 %v1480, %v1647
    %v1649 = vpop.f32.mrb[0].mxu0
    %1650 = vmatprep.mubr.bf16.mxu0 0
    %1651 = vmatmul.mubr.bf16.gmra.mrb[0].mxu0 %v1575
    %v1652 = vpop.f32.mrb[0].mxu0
    %v1653 = vadd.f32 %v1485, %v1652
    %v1654 = vpop.f32.mrb[0].mxu0
    %v1655 = vpop.f32.mrb[0].mxu0
    %v1656 = vadd.f32 %v1490, %v1655
    %v1657 = vpop.f32.mrb[0].mxu0
    %1658 = vmatprep.mubr.bf16.mxu0 0
    %1659 = vmatmul.mubr.bf16.gmra.mrb[0].mxu0 %v1578
    %v1660 = vpop.f32.mrb[0].mxu0
    %v1661 = vadd.f32 %v1495, %v1660
    %v1662 = vpop.f32.mrb[0].mxu0
    %v1663 = vpop.f32.mrb[0].mxu0
    %v1664 = vadd.f32 %v1500, %v1663
    %v1665 = vpop.f32.mrb[0].mxu0
    %1666 = vmatprep.mubr.bf16.mxu0 0
    %1667 = vmatmul.mubr.bf16.gmra.mrb[0].mxu0 %v1581
    %v1668 = vpop.f32.mrb[0].mxu0
    %v1669 = vadd.f32 %v1505, %v1668
    %v1670 = vpop.f32.mrb[0].mxu0
    %v1671 = vpop.f32.mrb[0].mxu0
    %v1672 = vadd.f32 %v1510, %v1671
    %v1673 = vpop.f32.mrb[0].mxu0
    %1674 = vmatprep.mubr.bf16.mxu0 0
    %1675 = vmatmul.mubr.bf16.gmra.mrb[0].mxu0 %v1584
    %v1676 = vpop.f32.mrb[0].mxu0
    %v1677 = vadd.f32 %v1515, %v1676
    %v1678 = vpop.f32.mrb[0].mxu0
    %v1679 = vpop.f32.mrb[0].mxu0
    %v1680 = vadd.f32 %v1520, %v1679
    %v1681 = vpop.f32.mrb[0].mxu0
    %1682 = vdwg.mxu0
    %v1683 = vmax.f32 %v1621, 0.0
    %v1684 = vmax.f32 %v1624, 0.0
    %v1685 = vmax.f32 %v1629, 0.0
    %v1686 = vmax.f32 %v1632, 0.0
    %v1687 = vmax.f32 %v1637, 0.0
    %v1688 = vmax.f32 %v1640, 0.0
    %v1689 = vmax.f32 %v1645, 0.0
    %v1690 = vmax.f32 %v1648, 0.0
    %v1691 = vmax.f32 %v1653, 0.0
    %v1692 = vmax.f32 %v1656, 0.0
    %v1693 = vmax.f32 %v1661, 0.0
    %v1694 = vmax.f32 %v1664, 0.0
    %v1695 = vmax.f32 %v1669, 0.0
    %v1696 = vmax.f32 %v1672, 0.0
    %v1697 = vmax.f32 %v1677, 0.0
    %v1698 = vmax.f32 %v1680, 0.0
    %v1699 = vpack.c.bf16 %v1684, %v1683
    %v1700 = vpack.c.bf16 %v1686, %v1685
    %v1701 = vpack.c.bf16 %v1688, %v1687
    %v1702 = vpack.c.bf16 %v1690, %v1689
    %v1703 = vpack.c.bf16 %v1692, %v1691
    %v1704 = vpack.c.bf16 %v1694, %v1693
    %v1705 = vpack.c.bf16 %v1696, %v1695
    %v1706 = vpack.c.bf16 %v1698, %v1697
    %s1707 = scalar_lea.vmem %s6, 48
    %v1708 = vld [vmem:[%s1707] sm:$0xf]
    %v1709 = vld [vmem:[%s1707 + $0x4] sm:$0xf]
    %v1710 = vld [vmem:[%s1707 + $0x8] sm:$0xf]
    %v1711 = vld [vmem:[%s1707 + $0xc] sm:$0xf]
    %s1712 = scalar_lea.vmem %s7, 96
    %v1713 = vld [vmem:[%s1712] sm:$0xff]
    %v1714 = vld [vmem:[%s1712 + $0x8] sm:$0xff]
    %v1715 = vld [vmem:[%s1712 + $0x10] sm:$0xff]
    %v1716 = vld [vmem:[%s1712 + $0x18] sm:$0xff]
    %1718 = vset.pattern.permute.xlu0 0
    %1719 = vperm.xlu0 %1718, %v1713
    %v1720 = vpop.permute.xlu0 %1719
    %1723 = vset.pattern.permute.xlu0 0
    %1724 = vperm.xlu0 %1723, %v1714
    %v1725 = vpop.permute.xlu0 %1724
    %1728 = vset.pattern.permute.xlu0 0
    %1729 = vperm.xlu0 %1728, %v1715
    %v1730 = vpop.permute.xlu0 %1729
    %1733 = vset.pattern.permute.xlu0 0
    %1734 = vperm.xlu0 %1733, %v1716
    %v1735 = vpop.permute.xlu0 %1734
    %v1741 = vunpack.c.l.b16 %v1708
    %v1742 = vunpack.c.l.b16 %v1709
    %v1743 = vunpack.c.l.b16 %v1710
    %v1744 = vunpack.c.l.b16 %v1711
    %v1745 = vpack.c.b16 %v1742, %v1741
    %v1746 = vpack.c.b16 %v1744, %v1743
    %1749 = vmatprep.subr.bf16.mxu0 0
    %1750 = vmatpush1.bf16.msra.mxu0 %v1699
    %1751 = vmatprep.subr.bf16.mxu0 0
    %1752 = vmatpush1.bf16.msra.mxu0 %v1700
    %1753 = vmatprep.subr.bf16.mxu0 0
    %1754 = vmatpush1.bf16.msra.mxu0 %v1701
    %1755 = vmatprep.subr.bf16.mxu0 0
    %1756 = vmatpush1.bf16.msra.mxu0 %v1702
    %1757 = vmatprep.subr.bf16.mxu0 0
    %1758 = vmatpush1.bf16.msra.mxu0 %v1703
    %1759 = vmatprep.subr.bf16.mxu0 0
    %1760 = vmatpush1.bf16.msra.mxu0 %v1704
    %1761 = vmatprep.subr.bf16.mxu0 0
    %1762 = vmatpush1.bf16.msra.mxu0 %v1705
    %1763 = vmatprep.subr.bf16.mxu0 0
    %1764 = vmatpush1.bf16.msra.mxu0 %v1706
    %1765 = vmatprep.subr.bf16.mxu0 0
    %1766 = vmatpush1.bf16.msra.mxu0 0
    %1767 = vmatprep.subr.bf16.mxu0 0
    %1768 = vmatpush1.bf16.msra.mxu0 0
    %1769 = vmatprep.subr.bf16.mxu0 0
    %1770 = vmatpush1.bf16.msra.mxu0 0
    %1771 = vmatprep.subr.bf16.mxu0 0
    %1772 = vmatpush1.bf16.msra.mxu0 0
    %1773 = vmatprep.subr.bf16.mxu0 0
    %1774 = vmatpush1.bf16.msra.mxu0 0
    %1775 = vmatprep.subr.bf16.mxu0 0
    %1776 = vmatpush1.bf16.msra.mxu0 0
    %1777 = vmatprep.subr.bf16.mxu0 0
    %1778 = vmatpush1.bf16.msra.mxu0 0
    %1779 = vmatprep.subr.bf16.mxu0 0
    %1780 = vmatpush1.bf16.msra.mxu0 0
    %1781 = vmatprep.mubr.bf16.mxu0 0
    %1782 = vmatmul.mubr.bf16.gmra.mrb[0].mxu0 %v1745
    %v1783 = vpop.f32.mrb[0].mxu0
    %v1784 = vadd.f32 %v1720, %v1783
    %v1785 = vpop.f32.mrb[0].mxu0
    %v1786 = vpop.f32.mrb[0].mxu0
    %v1787 = vadd.f32 %v1725, %v1786
    %v1788 = vpop.f32.mrb[0].mxu0
    %1789 = vmatprep.mubr.bf16.mxu0 0
    %1790 = vmatmul.mubr.bf16.gmra.mrb[0].mxu0 %v1746
    %v1791 = vpop.f32.mrb[0].mxu0
    %v1792 = vadd.f32 %v1730, %v1791
    %v1793 = vpop.f32.mrb[0].mxu0
    %v1794 = vpop.f32.mrb[0].mxu0
    %v1795 = vadd.f32 %v1735, %v1794
    %v1796 = vpop.f32.mrb[0].mxu0
    %1797 = vdwg.mxu0
    %v1798 = vlaneseq
    %v1799 = vshrl.u32 %v1798, 7
    %v1800 = vsub.s32 3, %v1799
    %v1801 = vrot.slane %v200, %v1800
    %v1802 = vmul.f32 %v1801, %v1784
    %v1803 = vmul.f32 %v1801, %v1787
    %v1804 = vmul.f32 %v1801, %v1792
    %v1805 = vmul.f32 %v1801, %v1795
    %v1806 = vadd.f32 %v1404, %v1802
    %v1807 = vadd.f32 %v1405, %v1803
    %v1808 = vadd.f32 %v1406, %v1804
    %v1809 = vadd.f32 %v1407, %v1805
    %s1810 = scalar_lea.vmem %s4, 256
    %v1811 = vld [vmem:[%s1810] sm:$0xf]
    %v1812 = vld [vmem:[%s1810 + $0x4] sm:$0xf]
    %v1813 = vld [vmem:[%s1810 + $0x8] sm:$0xf]
    %v1814 = vld [vmem:[%s1810 + $0xc] sm:$0xf]
    %v1815 = vld [vmem:[%s1810 + $0x10] sm:$0xf]
    %v1816 = vld [vmem:[%s1810 + $0x14] sm:$0xf]
    %v1817 = vld [vmem:[%s1810 + $0x18] sm:$0xf]
    %v1818 = vld [vmem:[%s1810 + $0x1c] sm:$0xf]
    %v1819 = vld [vmem:[%s1810 + $0x20] sm:$0xf]
    %v1820 = vld [vmem:[%s1810 + $0x24] sm:$0xf]
    %v1821 = vld [vmem:[%s1810 + $0x28] sm:$0xf]
    %v1822 = vld [vmem:[%s1810 + $0x2c] sm:$0xf]
    %v1823 = vld [vmem:[%s1810 + $0x30] sm:$0xf]
    %v1824 = vld [vmem:[%s1810 + $0x34] sm:$0xf]
    %v1825 = vld [vmem:[%s1810 + $0x38] sm:$0xf]
    %v1826 = vld [vmem:[%s1810 + $0x3c] sm:$0xf]
    %s1827 = scalar_lea.vmem %s5, 512
    %v1828 = vld [vmem:[%s1827] sm:$0xff]
    %v1829 = vld [vmem:[%s1827 + $0x8] sm:$0xff]
    %v1830 = vld [vmem:[%s1827 + $0x10] sm:$0xff]
    %v1831 = vld [vmem:[%s1827 + $0x18] sm:$0xff]
    %v1832 = vld [vmem:[%s1827 + $0x20] sm:$0xff]
    %v1833 = vld [vmem:[%s1827 + $0x28] sm:$0xff]
    %v1834 = vld [vmem:[%s1827 + $0x30] sm:$0xff]
    %v1835 = vld [vmem:[%s1827 + $0x38] sm:$0xff]
    %v1836 = vld [vmem:[%s1827 + $0x40] sm:$0xff]
    %v1837 = vld [vmem:[%s1827 + $0x48] sm:$0xff]
    %v1838 = vld [vmem:[%s1827 + $0x50] sm:$0xff]
    %v1839 = vld [vmem:[%s1827 + $0x58] sm:$0xff]
    %v1840 = vld [vmem:[%s1827 + $0x60] sm:$0xff]
    %v1841 = vld [vmem:[%s1827 + $0x68] sm:$0xff]
    %v1842 = vld [vmem:[%s1827 + $0x70] sm:$0xff]
    %v1843 = vld [vmem:[%s1827 + $0x78] sm:$0xff]
    %1845 = vset.pattern.permute.xlu0 0
    %1846 = vperm.xlu0 %1845, %v1828
    %v1847 = vpop.permute.xlu0 %1846
    %1850 = vset.pattern.permute.xlu0 0
    %1851 = vperm.xlu0 %1850, %v1829
    %v1852 = vpop.permute.xlu0 %1851
    %1855 = vset.pattern.permute.xlu0 0
    %1856 = vperm.xlu0 %1855, %v1830
    %v1857 = vpop.permute.xlu0 %1856
    %1860 = vset.pattern.permute.xlu0 0
    %1861 = vperm.xlu0 %1860, %v1831
    %v1862 = vpop.permute.xlu0 %1861
    %1865 = vset.pattern.permute.xlu0 0
    %1866 = vperm.xlu0 %1865, %v1832
    %v1867 = vpop.permute.xlu0 %1866
    %1870 = vset.pattern.permute.xlu0 0
    %1871 = vperm.xlu0 %1870, %v1833
    %v1872 = vpop.permute.xlu0 %1871
    %1875 = vset.pattern.permute.xlu0 0
    %1876 = vperm.xlu0 %1875, %v1834
    %v1877 = vpop.permute.xlu0 %1876
    %1880 = vset.pattern.permute.xlu0 0
    %1881 = vperm.xlu0 %1880, %v1835
    %v1882 = vpop.permute.xlu0 %1881
    %1885 = vset.pattern.permute.xlu0 0
    %1886 = vperm.xlu0 %1885, %v1836
    %v1887 = vpop.permute.xlu0 %1886
    %1890 = vset.pattern.permute.xlu0 0
    %1891 = vperm.xlu0 %1890, %v1837
    %v1892 = vpop.permute.xlu0 %1891
    %1895 = vset.pattern.permute.xlu0 0
    %1896 = vperm.xlu0 %1895, %v1838
    %v1897 = vpop.permute.xlu0 %1896
    %1900 = vset.pattern.permute.xlu0 0
    %1901 = vperm.xlu0 %1900, %v1839
    %v1902 = vpop.permute.xlu0 %1901
    %1905 = vset.pattern.permute.xlu0 0
    %1906 = vperm.xlu0 %1905, %v1840
    %v1907 = vpop.permute.xlu0 %1906
    %1910 = vset.pattern.permute.xlu0 0
    %1911 = vperm.xlu0 %1910, %v1841
    %v1912 = vpop.permute.xlu0 %1911
    %1915 = vset.pattern.permute.xlu0 0
    %1916 = vperm.xlu0 %1915, %v1842
    %v1917 = vpop.permute.xlu0 %1916
    %1920 = vset.pattern.permute.xlu0 0
    %1921 = vperm.xlu0 %1920, %v1843
    %v1922 = vpop.permute.xlu0 %1921
    %v1940 = vunpack.c.l.b16 %v1811
    %v1941 = vunpack.c.l.b16 %v1812
    %v1942 = vunpack.c.l.b16 %v1813
    %v1943 = vunpack.c.l.b16 %v1814
    %v1944 = vunpack.c.l.b16 %v1815
    %v1945 = vunpack.c.l.b16 %v1816
    %v1946 = vunpack.c.l.b16 %v1817
    %v1947 = vunpack.c.l.b16 %v1818
    %v1948 = vunpack.c.l.b16 %v1819
    %v1949 = vunpack.c.l.b16 %v1820
    %v1950 = vunpack.c.l.b16 %v1821
    %v1951 = vunpack.c.l.b16 %v1822
    %v1952 = vunpack.c.l.b16 %v1823
    %v1953 = vunpack.c.l.b16 %v1824
    %v1954 = vunpack.c.l.b16 %v1825
    %v1955 = vunpack.c.l.b16 %v1826
    %v1956 = vpack.c.b16 %v1941, %v1940
    %v1957 = vpack.c.b16 %v1943, %v1942
    %v1958 = vpack.c.b16 %v1945, %v1944
    %v1959 = vpack.c.b16 %v1947, %v1946
    %v1960 = vpack.c.b16 %v1949, %v1948
    %v1961 = vpack.c.b16 %v1951, %v1950
    %v1962 = vpack.c.b16 %v1953, %v1952
    %v1963 = vpack.c.b16 %v1955, %v1954
    %v1965 = vsel %vm70, %v1956, 0
    %v1968 = vsel %vm70, %v1957, 0
    %v1971 = vsel %vm70, %v1958, 0
    %v1974 = vsel %vm70, %v1959, 0
    %v1977 = vsel %vm70, %v1960, 0
    %v1980 = vsel %vm70, %v1961, 0
    %v1983 = vsel %vm70, %v1962, 0
    %v1986 = vsel %vm70, %v1963, 0
    %1988 = vmatprep.subr.bf16.mxu0 0
    %1989 = vmatpush1.bf16.msra.mxu0 %v66
    %1990 = vmatprep.subr.bf16.mxu0 0
    %1991 = vmatpush1.bf16.msra.mxu0 %v67
    %1992 = vmatprep.subr.bf16.mxu0 0
    %1993 = vmatpush1.bf16.msra.mxu0 0
    %1994 = vmatprep.subr.bf16.mxu0 0
    %1995 = vmatpush1.bf16.msra.mxu0 0
    %1996 = vmatprep.subr.bf16.mxu0 0
    %1997 = vmatpush1.bf16.msra.mxu0 0
    %1998 = vmatprep.subr.bf16.mxu0 0
    %1999 = vmatpush1.bf16.msra.mxu0 0
    %2000 = vmatprep.subr.bf16.mxu0 0
    %2001 = vmatpush1.bf16.msra.mxu0 0
    %2002 = vmatprep.subr.bf16.mxu0 0
    %2003 = vmatpush1.bf16.msra.mxu0 0
    %2004 = vmatprep.subr.bf16.mxu0 0
    %2005 = vmatpush1.bf16.msra.mxu0 0
    %2006 = vmatprep.subr.bf16.mxu0 0
    %2007 = vmatpush1.bf16.msra.mxu0 0
    %2008 = vmatprep.subr.bf16.mxu0 0
    %2009 = vmatpush1.bf16.msra.mxu0 0
    %2010 = vmatprep.subr.bf16.mxu0 0
    %2011 = vmatpush1.bf16.msra.mxu0 0
    %2012 = vmatprep.subr.bf16.mxu0 0
    %2013 = vmatpush1.bf16.msra.mxu0 0
    %2014 = vmatprep.subr.bf16.mxu0 0
    %2015 = vmatpush1.bf16.msra.mxu0 0
    %2016 = vmatprep.subr.bf16.mxu0 0
    %2017 = vmatpush1.bf16.msra.mxu0 0
    %2018 = vmatprep.subr.bf16.mxu0 0
    %2019 = vmatpush1.bf16.msra.mxu0 0
    %2020 = vmatprep.mubr.bf16.mxu0 0
    %2021 = vmatmul.mubr.bf16.gmra.mrb[0].mxu0 %v1965
    %v2022 = vpop.f32.mrb[0].mxu0
    %v2023 = vadd.f32 %v1847, %v2022
    %v2024 = vpop.f32.mrb[0].mxu0
    %v2025 = vpop.f32.mrb[0].mxu0
    %v2026 = vadd.f32 %v1852, %v2025
    %v2027 = vpop.f32.mrb[0].mxu0
    %2028 = vmatprep.mubr.bf16.mxu0 0
    %2029 = vmatmul.mubr.bf16.gmra.mrb[0].mxu0 %v1968
    %v2030 = vpop.f32.mrb[0].mxu0
    %v2031 = vadd.f32 %v1857, %v2030
    %v2032 = vpop.f32.mrb[0].mxu0
    %v2033 = vpop.f32.mrb[0].mxu0
    %v2034 = vadd.f32 %v1862, %v2033
    %v2035 = vpop.f32.mrb[0].mxu0
    %2036 = vmatprep.mubr.bf16.mxu0 0
    %2037 = vmatmul.mubr.bf16.gmra.mrb[0].mxu0 %v1971
    %v2038 = vpop.f32.mrb[0].mxu0
    %v2039 = vadd.f32 %v1867, %v2038
    %v2040 = vpop.f32.mrb[0].mxu0
    %v2041 = vpop.f32.mrb[0].mxu0
    %v2042 = vadd.f32 %v1872, %v2041
    %v2043 = vpop.f32.mrb[0].mxu0
    %2044 = vmatprep.mubr.bf16.mxu0 0
    %2045 = vmatmul.mubr.bf16.gmra.mrb[0].mxu0 %v1974
    %v2046 = vpop.f32.mrb[0].mxu0
    %v2047 = vadd.f32 %v1877, %v2046
    %v2048 = vpop.f32.mrb[0].mxu0
    %v2049 = vpop.f32.mrb[0].mxu0
    %v2050 = vadd.f32 %v1882, %v2049
    %v2051 = vpop.f32.mrb[0].mxu0
    %2052 = vmatprep.mubr.bf16.mxu0 0
    %2053 = vmatmul.mubr.bf16.gmra.mrb[0].mxu0 %v1977
    %v2054 = vpop.f32.mrb[0].mxu0
    %v2055 = vadd.f32 %v1887, %v2054
    %v2056 = vpop.f32.mrb[0].mxu0
    %v2057 = vpop.f32.mrb[0].mxu0
    %v2058 = vadd.f32 %v1892, %v2057
    %v2059 = vpop.f32.mrb[0].mxu0
    %2060 = vmatprep.mubr.bf16.mxu0 0
    %2061 = vmatmul.mubr.bf16.gmra.mrb[0].mxu0 %v1980
    %v2062 = vpop.f32.mrb[0].mxu0
    %v2063 = vadd.f32 %v1897, %v2062
    %v2064 = vpop.f32.mrb[0].mxu0
    %v2065 = vpop.f32.mrb[0].mxu0
    %v2066 = vadd.f32 %v1902, %v2065
    %v2067 = vpop.f32.mrb[0].mxu0
    %2068 = vmatprep.mubr.bf16.mxu0 0
    %2069 = vmatmul.mubr.bf16.gmra.mrb[0].mxu0 %v1983
    %v2070 = vpop.f32.mrb[0].mxu0
    %v2071 = vadd.f32 %v1907, %v2070
    %v2072 = vpop.f32.mrb[0].mxu0
    %v2073 = vpop.f32.mrb[0].mxu0
    %v2074 = vadd.f32 %v1912, %v2073
    %v2075 = vpop.f32.mrb[0].mxu0
    %2076 = vmatprep.mubr.bf16.mxu0 0
    %2077 = vmatmul.mubr.bf16.gmra.mrb[0].mxu0 %v1986
    %v2078 = vpop.f32.mrb[0].mxu0
    %v2079 = vadd.f32 %v1917, %v2078
    %v2080 = vpop.f32.mrb[0].mxu0
    %v2081 = vpop.f32.mrb[0].mxu0
    %v2082 = vadd.f32 %v1922, %v2081
    %v2083 = vpop.f32.mrb[0].mxu0
    %2084 = vdwg.mxu0
    %v2085 = vmax.f32 %v2023, 0.0
    %v2086 = vmax.f32 %v2026, 0.0
    %v2087 = vmax.f32 %v2031, 0.0
    %v2088 = vmax.f32 %v2034, 0.0
    %v2089 = vmax.f32 %v2039, 0.0
    %v2090 = vmax.f32 %v2042, 0.0
    %v2091 = vmax.f32 %v2047, 0.0
    %v2092 = vmax.f32 %v2050, 0.0
    %v2093 = vmax.f32 %v2055, 0.0
    %v2094 = vmax.f32 %v2058, 0.0
    %v2095 = vmax.f32 %v2063, 0.0
    %v2096 = vmax.f32 %v2066, 0.0
    %v2097 = vmax.f32 %v2071, 0.0
    %v2098 = vmax.f32 %v2074, 0.0
    %v2099 = vmax.f32 %v2079, 0.0
    %v2100 = vmax.f32 %v2082, 0.0
    %v2101 = vpack.c.bf16 %v2086, %v2085
    %v2102 = vpack.c.bf16 %v2088, %v2087
    %v2103 = vpack.c.bf16 %v2090, %v2089
    %v2104 = vpack.c.bf16 %v2092, %v2091
    %v2105 = vpack.c.bf16 %v2094, %v2093
    %v2106 = vpack.c.bf16 %v2096, %v2095
    %v2107 = vpack.c.bf16 %v2098, %v2097
    %v2108 = vpack.c.bf16 %v2100, %v2099
    %s2109 = scalar_lea.vmem %s6, 64
    %v2110 = vld [vmem:[%s2109] sm:$0xf]
    %v2111 = vld [vmem:[%s2109 + $0x4] sm:$0xf]
    %v2112 = vld [vmem:[%s2109 + $0x8] sm:$0xf]
    %v2113 = vld [vmem:[%s2109 + $0xc] sm:$0xf]
    %s2114 = scalar_lea.vmem %s7, 128
    %v2115 = vld [vmem:[%s2114] sm:$0xff]
    %v2116 = vld [vmem:[%s2114 + $0x8] sm:$0xff]
    %v2117 = vld [vmem:[%s2114 + $0x10] sm:$0xff]
    %v2118 = vld [vmem:[%s2114 + $0x18] sm:$0xff]
    %2120 = vset.pattern.permute.xlu0 0
    %2121 = vperm.xlu0 %2120, %v2115
    %v2122 = vpop.permute.xlu0 %2121
    %2125 = vset.pattern.permute.xlu0 0
    %2126 = vperm.xlu0 %2125, %v2116
    %v2127 = vpop.permute.xlu0 %2126
    %2130 = vset.pattern.permute.xlu0 0
    %2131 = vperm.xlu0 %2130, %v2117
    %v2132 = vpop.permute.xlu0 %2131
    %2135 = vset.pattern.permute.xlu0 0
    %2136 = vperm.xlu0 %2135, %v2118
    %v2137 = vpop.permute.xlu0 %2136
    %v2143 = vunpack.c.l.b16 %v2110
    %v2144 = vunpack.c.l.b16 %v2111
    %v2145 = vunpack.c.l.b16 %v2112
    %v2146 = vunpack.c.l.b16 %v2113
    %v2147 = vpack.c.b16 %v2144, %v2143
    %v2148 = vpack.c.b16 %v2146, %v2145
    %2151 = vmatprep.subr.bf16.mxu0 0
    %2152 = vmatpush1.bf16.msra.mxu0 %v2101
    %2153 = vmatprep.subr.bf16.mxu0 0
    %2154 = vmatpush1.bf16.msra.mxu0 %v2102
    %2155 = vmatprep.subr.bf16.mxu0 0
    %2156 = vmatpush1.bf16.msra.mxu0 %v2103
    %2157 = vmatprep.subr.bf16.mxu0 0
    %2158 = vmatpush1.bf16.msra.mxu0 %v2104
    %2159 = vmatprep.subr.bf16.mxu0 0
    %2160 = vmatpush1.bf16.msra.mxu0 %v2105
    %2161 = vmatprep.subr.bf16.mxu0 0
    %2162 = vmatpush1.bf16.msra.mxu0 %v2106
    %2163 = vmatprep.subr.bf16.mxu0 0
    %2164 = vmatpush1.bf16.msra.mxu0 %v2107
    %2165 = vmatprep.subr.bf16.mxu0 0
    %2166 = vmatpush1.bf16.msra.mxu0 %v2108
    %2167 = vmatprep.subr.bf16.mxu0 0
    %2168 = vmatpush1.bf16.msra.mxu0 0
    %2169 = vmatprep.subr.bf16.mxu0 0
    %2170 = vmatpush1.bf16.msra.mxu0 0
    %2171 = vmatprep.subr.bf16.mxu0 0
    %2172 = vmatpush1.bf16.msra.mxu0 0
    %2173 = vmatprep.subr.bf16.mxu0 0
    %2174 = vmatpush1.bf16.msra.mxu0 0
    %2175 = vmatprep.subr.bf16.mxu0 0
    %2176 = vmatpush1.bf16.msra.mxu0 0
    %2177 = vmatprep.subr.bf16.mxu0 0
    %2178 = vmatpush1.bf16.msra.mxu0 0
    %2179 = vmatprep.subr.bf16.mxu0 0
    %2180 = vmatpush1.bf16.msra.mxu0 0
    %2181 = vmatprep.subr.bf16.mxu0 0
    %2182 = vmatpush1.bf16.msra.mxu0 0
    %2183 = vmatprep.mubr.bf16.mxu0 0
    %2184 = vmatmul.mubr.bf16.gmra.mrb[0].mxu0 %v2147
    %v2185 = vpop.f32.mrb[0].mxu0
    %v2186 = vadd.f32 %v2122, %v2185
    %v2187 = vpop.f32.mrb[0].mxu0
    %v2188 = vpop.f32.mrb[0].mxu0
    %v2189 = vadd.f32 %v2127, %v2188
    %v2190 = vpop.f32.mrb[0].mxu0
    %2191 = vmatprep.mubr.bf16.mxu0 0
    %2192 = vmatmul.mubr.bf16.gmra.mrb[0].mxu0 %v2148
    %v2193 = vpop.f32.mrb[0].mxu0
    %v2194 = vadd.f32 %v2132, %v2193
    %v2195 = vpop.f32.mrb[0].mxu0
    %v2196 = vpop.f32.mrb[0].mxu0
    %v2197 = vadd.f32 %v2137, %v2196
    %v2198 = vpop.f32.mrb[0].mxu0
    %2199 = vdwg.mxu0
    %v2200 = vlaneseq
    %v2201 = vshrl.u32 %v2200, 7
    %v2202 = vsub.s32 4, %v2201
    %v2203 = vrot.slane %v200, %v2202
    %v2204 = vmul.f32 %v2203, %v2186
    %v2205 = vmul.f32 %v2203, %v2189
    %v2206 = vmul.f32 %v2203, %v2194
    %v2207 = vmul.f32 %v2203, %v2197
    %v2208 = vadd.f32 %v1806, %v2204
    %v2209 = vadd.f32 %v1807, %v2205
    %v2210 = vadd.f32 %v1808, %v2206
    %v2211 = vadd.f32 %v1809, %v2207
    %s2212 = scalar_lea.vmem %s4, 320
    %v2213 = vld [vmem:[%s2212] sm:$0xf]
    %v2214 = vld [vmem:[%s2212 + $0x4] sm:$0xf]
    %v2215 = vld [vmem:[%s2212 + $0x8] sm:$0xf]
    %v2216 = vld [vmem:[%s2212 + $0xc] sm:$0xf]
    %v2217 = vld [vmem:[%s2212 + $0x10] sm:$0xf]
    %v2218 = vld [vmem:[%s2212 + $0x14] sm:$0xf]
    %v2219 = vld [vmem:[%s2212 + $0x18] sm:$0xf]
    %v2220 = vld [vmem:[%s2212 + $0x1c] sm:$0xf]
    %v2221 = vld [vmem:[%s2212 + $0x20] sm:$0xf]
    %v2222 = vld [vmem:[%s2212 + $0x24] sm:$0xf]
    %v2223 = vld [vmem:[%s2212 + $0x28] sm:$0xf]
    %v2224 = vld [vmem:[%s2212 + $0x2c] sm:$0xf]
    %v2225 = vld [vmem:[%s2212 + $0x30] sm:$0xf]
    %v2226 = vld [vmem:[%s2212 + $0x34] sm:$0xf]
    %v2227 = vld [vmem:[%s2212 + $0x38] sm:$0xf]
    %v2228 = vld [vmem:[%s2212 + $0x3c] sm:$0xf]
    %s2229 = scalar_lea.vmem %s5, 640
    %v2230 = vld [vmem:[%s2229] sm:$0xff]
    %v2231 = vld [vmem:[%s2229 + $0x8] sm:$0xff]
    %v2232 = vld [vmem:[%s2229 + $0x10] sm:$0xff]
    %v2233 = vld [vmem:[%s2229 + $0x18] sm:$0xff]
    %v2234 = vld [vmem:[%s2229 + $0x20] sm:$0xff]
    %v2235 = vld [vmem:[%s2229 + $0x28] sm:$0xff]
    %v2236 = vld [vmem:[%s2229 + $0x30] sm:$0xff]
    %v2237 = vld [vmem:[%s2229 + $0x38] sm:$0xff]
    %v2238 = vld [vmem:[%s2229 + $0x40] sm:$0xff]
    %v2239 = vld [vmem:[%s2229 + $0x48] sm:$0xff]
    %v2240 = vld [vmem:[%s2229 + $0x50] sm:$0xff]
    %v2241 = vld [vmem:[%s2229 + $0x58] sm:$0xff]
    %v2242 = vld [vmem:[%s2229 + $0x60] sm:$0xff]
    %v2243 = vld [vmem:[%s2229 + $0x68] sm:$0xff]
    %v2244 = vld [vmem:[%s2229 + $0x70] sm:$0xff]
    %v2245 = vld [vmem:[%s2229 + $0x78] sm:$0xff]
    %2247 = vset.pattern.permute.xlu0 0
    %2248 = vperm.xlu0 %2247, %v2230
    %v2249 = vpop.permute.xlu0 %2248
    %2252 = vset.pattern.permute.xlu0 0
    %2253 = vperm.xlu0 %2252, %v2231
    %v2254 = vpop.permute.xlu0 %2253
    %2257 = vset.pattern.permute.xlu0 0
    %2258 = vperm.xlu0 %2257, %v2232
    %v2259 = vpop.permute.xlu0 %2258
    %2262 = vset.pattern.permute.xlu0 0
    %2263 = vperm.xlu0 %2262, %v2233
    %v2264 = vpop.permute.xlu0 %2263
    %2267 = vset.pattern.permute.xlu0 0
    %2268 = vperm.xlu0 %2267, %v2234
    %v2269 = vpop.permute.xlu0 %2268
    %2272 = vset.pattern.permute.xlu0 0
    %2273 = vperm.xlu0 %2272, %v2235
    %v2274 = vpop.permute.xlu0 %2273
    %2277 = vset.pattern.permute.xlu0 0
    %2278 = vperm.xlu0 %2277, %v2236
    %v2279 = vpop.permute.xlu0 %2278
    %2282 = vset.pattern.permute.xlu0 0
    %2283 = vperm.xlu0 %2282, %v2237
    %v2284 = vpop.permute.xlu0 %2283
    %2287 = vset.pattern.permute.xlu0 0
    %2288 = vperm.xlu0 %2287, %v2238
    %v2289 = vpop.permute.xlu0 %2288
    %2292 = vset.pattern.permute.xlu0 0
    %2293 = vperm.xlu0 %2292, %v2239
    %v2294 = vpop.permute.xlu0 %2293
    %2297 = vset.pattern.permute.xlu0 0
    %2298 = vperm.xlu0 %2297, %v2240
    %v2299 = vpop.permute.xlu0 %2298
    %2302 = vset.pattern.permute.xlu0 0
    %2303 = vperm.xlu0 %2302, %v2241
    %v2304 = vpop.permute.xlu0 %2303
    %2307 = vset.pattern.permute.xlu0 0
    %2308 = vperm.xlu0 %2307, %v2242
    %v2309 = vpop.permute.xlu0 %2308
    %2312 = vset.pattern.permute.xlu0 0
    %2313 = vperm.xlu0 %2312, %v2243
    %v2314 = vpop.permute.xlu0 %2313
    %2317 = vset.pattern.permute.xlu0 0
    %2318 = vperm.xlu0 %2317, %v2244
    %v2319 = vpop.permute.xlu0 %2318
    %2322 = vset.pattern.permute.xlu0 0
    %2323 = vperm.xlu0 %2322, %v2245
    %v2324 = vpop.permute.xlu0 %2323
    %v2342 = vunpack.c.l.b16 %v2213
    %v2343 = vunpack.c.l.b16 %v2214
    %v2344 = vunpack.c.l.b16 %v2215
    %v2345 = vunpack.c.l.b16 %v2216
    %v2346 = vunpack.c.l.b16 %v2217
    %v2347 = vunpack.c.l.b16 %v2218
    %v2348 = vunpack.c.l.b16 %v2219
    %v2349 = vunpack.c.l.b16 %v2220
    %v2350 = vunpack.c.l.b16 %v2221
    %v2351 = vunpack.c.l.b16 %v2222
    %v2352 = vunpack.c.l.b16 %v2223
    %v2353 = vunpack.c.l.b16 %v2224
    %v2354 = vunpack.c.l.b16 %v2225
    %v2355 = vunpack.c.l.b16 %v2226
    %v2356 = vunpack.c.l.b16 %v2227
    %v2357 = vunpack.c.l.b16 %v2228
    %v2358 = vpack.c.b16 %v2343, %v2342
    %v2359 = vpack.c.b16 %v2345, %v2344
    %v2360 = vpack.c.b16 %v2347, %v2346
    %v2361 = vpack.c.b16 %v2349, %v2348
    %v2362 = vpack.c.b16 %v2351, %v2350
    %v2363 = vpack.c.b16 %v2353, %v2352
    %v2364 = vpack.c.b16 %v2355, %v2354
    %v2365 = vpack.c.b16 %v2357, %v2356
    %v2367 = vsel %vm70, %v2358, 0
    %v2370 = vsel %vm70, %v2359, 0
    %v2373 = vsel %vm70, %v2360, 0
    %v2376 = vsel %vm70, %v2361, 0
    %v2379 = vsel %vm70, %v2362, 0
    %v2382 = vsel %vm70, %v2363, 0
    %v2385 = vsel %vm70, %v2364, 0
    %v2388 = vsel %vm70, %v2365, 0
    %2390 = vmatprep.subr.bf16.mxu0 0
    %2391 = vmatpush1.bf16.msra.mxu0 %v66
    %2392 = vmatprep.subr.bf16.mxu0 0
    %2393 = vmatpush1.bf16.msra.mxu0 %v67
    %2394 = vmatprep.subr.bf16.mxu0 0
    %2395 = vmatpush1.bf16.msra.mxu0 0
    %2396 = vmatprep.subr.bf16.mxu0 0
    %2397 = vmatpush1.bf16.msra.mxu0 0
    %2398 = vmatprep.subr.bf16.mxu0 0
    %2399 = vmatpush1.bf16.msra.mxu0 0
    %2400 = vmatprep.subr.bf16.mxu0 0
    %2401 = vmatpush1.bf16.msra.mxu0 0
    %2402 = vmatprep.subr.bf16.mxu0 0
    %2403 = vmatpush1.bf16.msra.mxu0 0
    %2404 = vmatprep.subr.bf16.mxu0 0
    %2405 = vmatpush1.bf16.msra.mxu0 0
    %2406 = vmatprep.subr.bf16.mxu0 0
    %2407 = vmatpush1.bf16.msra.mxu0 0
    %2408 = vmatprep.subr.bf16.mxu0 0
    %2409 = vmatpush1.bf16.msra.mxu0 0
    %2410 = vmatprep.subr.bf16.mxu0 0
    %2411 = vmatpush1.bf16.msra.mxu0 0
    %2412 = vmatprep.subr.bf16.mxu0 0
    %2413 = vmatpush1.bf16.msra.mxu0 0
    %2414 = vmatprep.subr.bf16.mxu0 0
    %2415 = vmatpush1.bf16.msra.mxu0 0
    %2416 = vmatprep.subr.bf16.mxu0 0
    %2417 = vmatpush1.bf16.msra.mxu0 0
    %2418 = vmatprep.subr.bf16.mxu0 0
    %2419 = vmatpush1.bf16.msra.mxu0 0
    %2420 = vmatprep.subr.bf16.mxu0 0
    %2421 = vmatpush1.bf16.msra.mxu0 0
    %2422 = vmatprep.mubr.bf16.mxu0 0
    %2423 = vmatmul.mubr.bf16.gmra.mrb[0].mxu0 %v2367
    %v2424 = vpop.f32.mrb[0].mxu0
    %v2425 = vadd.f32 %v2249, %v2424
    %v2426 = vpop.f32.mrb[0].mxu0
    %v2427 = vpop.f32.mrb[0].mxu0
    %v2428 = vadd.f32 %v2254, %v2427
    %v2429 = vpop.f32.mrb[0].mxu0
    %2430 = vmatprep.mubr.bf16.mxu0 0
    %2431 = vmatmul.mubr.bf16.gmra.mrb[0].mxu0 %v2370
    %v2432 = vpop.f32.mrb[0].mxu0
    %v2433 = vadd.f32 %v2259, %v2432
    %v2434 = vpop.f32.mrb[0].mxu0
    %v2435 = vpop.f32.mrb[0].mxu0
    %v2436 = vadd.f32 %v2264, %v2435
    %v2437 = vpop.f32.mrb[0].mxu0
    %2438 = vmatprep.mubr.bf16.mxu0 0
    %2439 = vmatmul.mubr.bf16.gmra.mrb[0].mxu0 %v2373
    %v2440 = vpop.f32.mrb[0].mxu0
    %v2441 = vadd.f32 %v2269, %v2440
    %v2442 = vpop.f32.mrb[0].mxu0
    %v2443 = vpop.f32.mrb[0].mxu0
    %v2444 = vadd.f32 %v2274, %v2443
    %v2445 = vpop.f32.mrb[0].mxu0
    %2446 = vmatprep.mubr.bf16.mxu0 0
    %2447 = vmatmul.mubr.bf16.gmra.mrb[0].mxu0 %v2376
    %v2448 = vpop.f32.mrb[0].mxu0
    %v2449 = vadd.f32 %v2279, %v2448
    %v2450 = vpop.f32.mrb[0].mxu0
    %v2451 = vpop.f32.mrb[0].mxu0
    %v2452 = vadd.f32 %v2284, %v2451
    %v2453 = vpop.f32.mrb[0].mxu0
    %2454 = vmatprep.mubr.bf16.mxu0 0
    %2455 = vmatmul.mubr.bf16.gmra.mrb[0].mxu0 %v2379
    %v2456 = vpop.f32.mrb[0].mxu0
    %v2457 = vadd.f32 %v2289, %v2456
    %v2458 = vpop.f32.mrb[0].mxu0
    %v2459 = vpop.f32.mrb[0].mxu0
    %v2460 = vadd.f32 %v2294, %v2459
    %v2461 = vpop.f32.mrb[0].mxu0
    %2462 = vmatprep.mubr.bf16.mxu0 0
    %2463 = vmatmul.mubr.bf16.gmra.mrb[0].mxu0 %v2382
    %v2464 = vpop.f32.mrb[0].mxu0
    %v2465 = vadd.f32 %v2299, %v2464
    %v2466 = vpop.f32.mrb[0].mxu0
    %v2467 = vpop.f32.mrb[0].mxu0
    %v2468 = vadd.f32 %v2304, %v2467
    %v2469 = vpop.f32.mrb[0].mxu0
    %2470 = vmatprep.mubr.bf16.mxu0 0
    %2471 = vmatmul.mubr.bf16.gmra.mrb[0].mxu0 %v2385
    %v2472 = vpop.f32.mrb[0].mxu0
    %v2473 = vadd.f32 %v2309, %v2472
    %v2474 = vpop.f32.mrb[0].mxu0
    %v2475 = vpop.f32.mrb[0].mxu0
    %v2476 = vadd.f32 %v2314, %v2475
    %v2477 = vpop.f32.mrb[0].mxu0
    %2478 = vmatprep.mubr.bf16.mxu0 0
    %2479 = vmatmul.mubr.bf16.gmra.mrb[0].mxu0 %v2388
    %v2480 = vpop.f32.mrb[0].mxu0
    %v2481 = vadd.f32 %v2319, %v2480
    %v2482 = vpop.f32.mrb[0].mxu0
    %v2483 = vpop.f32.mrb[0].mxu0
    %v2484 = vadd.f32 %v2324, %v2483
    %v2485 = vpop.f32.mrb[0].mxu0
    %2486 = vdwg.mxu0
    %v2487 = vmax.f32 %v2425, 0.0
    %v2488 = vmax.f32 %v2428, 0.0
    %v2489 = vmax.f32 %v2433, 0.0
    %v2490 = vmax.f32 %v2436, 0.0
    %v2491 = vmax.f32 %v2441, 0.0
    %v2492 = vmax.f32 %v2444, 0.0
    %v2493 = vmax.f32 %v2449, 0.0
    %v2494 = vmax.f32 %v2452, 0.0
    %v2495 = vmax.f32 %v2457, 0.0
    %v2496 = vmax.f32 %v2460, 0.0
    %v2497 = vmax.f32 %v2465, 0.0
    %v2498 = vmax.f32 %v2468, 0.0
    %v2499 = vmax.f32 %v2473, 0.0
    %v2500 = vmax.f32 %v2476, 0.0
    %v2501 = vmax.f32 %v2481, 0.0
    %v2502 = vmax.f32 %v2484, 0.0
    %v2503 = vpack.c.bf16 %v2488, %v2487
    %v2504 = vpack.c.bf16 %v2490, %v2489
    %v2505 = vpack.c.bf16 %v2492, %v2491
    %v2506 = vpack.c.bf16 %v2494, %v2493
    %v2507 = vpack.c.bf16 %v2496, %v2495
    %v2508 = vpack.c.bf16 %v2498, %v2497
    %v2509 = vpack.c.bf16 %v2500, %v2499
    %v2510 = vpack.c.bf16 %v2502, %v2501
    %s2511 = scalar_lea.vmem %s6, 80
    %v2512 = vld [vmem:[%s2511] sm:$0xf]
    %v2513 = vld [vmem:[%s2511 + $0x4] sm:$0xf]
    %v2514 = vld [vmem:[%s2511 + $0x8] sm:$0xf]
    %v2515 = vld [vmem:[%s2511 + $0xc] sm:$0xf]
    %s2516 = scalar_lea.vmem %s7, 160
    %v2517 = vld [vmem:[%s2516] sm:$0xff]
    %v2518 = vld [vmem:[%s2516 + $0x8] sm:$0xff]
    %v2519 = vld [vmem:[%s2516 + $0x10] sm:$0xff]
    %v2520 = vld [vmem:[%s2516 + $0x18] sm:$0xff]
    %2522 = vset.pattern.permute.xlu0 0
    %2523 = vperm.xlu0 %2522, %v2517
    %v2524 = vpop.permute.xlu0 %2523
    %2527 = vset.pattern.permute.xlu0 0
    %2528 = vperm.xlu0 %2527, %v2518
    %v2529 = vpop.permute.xlu0 %2528
    %2532 = vset.pattern.permute.xlu0 0
    %2533 = vperm.xlu0 %2532, %v2519
    %v2534 = vpop.permute.xlu0 %2533
    %2537 = vset.pattern.permute.xlu0 0
    %2538 = vperm.xlu0 %2537, %v2520
    %v2539 = vpop.permute.xlu0 %2538
    %v2545 = vunpack.c.l.b16 %v2512
    %v2546 = vunpack.c.l.b16 %v2513
    %v2547 = vunpack.c.l.b16 %v2514
    %v2548 = vunpack.c.l.b16 %v2515
    %v2549 = vpack.c.b16 %v2546, %v2545
    %v2550 = vpack.c.b16 %v2548, %v2547
    %2553 = vmatprep.subr.bf16.mxu0 0
    %2554 = vmatpush1.bf16.msra.mxu0 %v2503
    %2555 = vmatprep.subr.bf16.mxu0 0
    %2556 = vmatpush1.bf16.msra.mxu0 %v2504
    %2557 = vmatprep.subr.bf16.mxu0 0
    %2558 = vmatpush1.bf16.msra.mxu0 %v2505
    %2559 = vmatprep.subr.bf16.mxu0 0
    %2560 = vmatpush1.bf16.msra.mxu0 %v2506
    %2561 = vmatprep.subr.bf16.mxu0 0
    %2562 = vmatpush1.bf16.msra.mxu0 %v2507
    %2563 = vmatprep.subr.bf16.mxu0 0
    %2564 = vmatpush1.bf16.msra.mxu0 %v2508
    %2565 = vmatprep.subr.bf16.mxu0 0
    %2566 = vmatpush1.bf16.msra.mxu0 %v2509
    %2567 = vmatprep.subr.bf16.mxu0 0
    %2568 = vmatpush1.bf16.msra.mxu0 %v2510
    %2569 = vmatprep.subr.bf16.mxu0 0
    %2570 = vmatpush1.bf16.msra.mxu0 0
    %2571 = vmatprep.subr.bf16.mxu0 0
    %2572 = vmatpush1.bf16.msra.mxu0 0
    %2573 = vmatprep.subr.bf16.mxu0 0
    %2574 = vmatpush1.bf16.msra.mxu0 0
    %2575 = vmatprep.subr.bf16.mxu0 0
    %2576 = vmatpush1.bf16.msra.mxu0 0
    %2577 = vmatprep.subr.bf16.mxu0 0
    %2578 = vmatpush1.bf16.msra.mxu0 0
    %2579 = vmatprep.subr.bf16.mxu0 0
    %2580 = vmatpush1.bf16.msra.mxu0 0
    %2581 = vmatprep.subr.bf16.mxu0 0
    %2582 = vmatpush1.bf16.msra.mxu0 0
    %2583 = vmatprep.subr.bf16.mxu0 0
    %2584 = vmatpush1.bf16.msra.mxu0 0
    %2585 = vmatprep.mubr.bf16.mxu0 0
    %2586 = vmatmul.mubr.bf16.gmra.mrb[0].mxu0 %v2549
    %v2587 = vpop.f32.mrb[0].mxu0
    %v2588 = vadd.f32 %v2524, %v2587
    %v2589 = vpop.f32.mrb[0].mxu0
    %v2590 = vpop.f32.mrb[0].mxu0
    %v2591 = vadd.f32 %v2529, %v2590
    %v2592 = vpop.f32.mrb[0].mxu0
    %2593 = vmatprep.mubr.bf16.mxu0 0
    %2594 = vmatmul.mubr.bf16.gmra.mrb[0].mxu0 %v2550
    %v2595 = vpop.f32.mrb[0].mxu0
    %v2596 = vadd.f32 %v2534, %v2595
    %v2597 = vpop.f32.mrb[0].mxu0
    %v2598 = vpop.f32.mrb[0].mxu0
    %v2599 = vadd.f32 %v2539, %v2598
    %v2600 = vpop.f32.mrb[0].mxu0
    %2601 = vdwg.mxu0
    %v2602 = vlaneseq
    %v2603 = vshrl.u32 %v2602, 7
    %v2604 = vsub.s32 5, %v2603
    %v2605 = vrot.slane %v200, %v2604
    %v2606 = vmul.f32 %v2605, %v2588
    %v2607 = vmul.f32 %v2605, %v2591
    %v2608 = vmul.f32 %v2605, %v2596
    %v2609 = vmul.f32 %v2605, %v2599
    %v2610 = vadd.f32 %v2208, %v2606
    %v2611 = vadd.f32 %v2209, %v2607
    %v2612 = vadd.f32 %v2210, %v2608
    %v2613 = vadd.f32 %v2211, %v2609
    %s2614 = scalar_lea.vmem %s4, 384
    %v2615 = vld [vmem:[%s2614] sm:$0xf]
    %v2616 = vld [vmem:[%s2614 + $0x4] sm:$0xf]
    %v2617 = vld [vmem:[%s2614 + $0x8] sm:$0xf]
    %v2618 = vld [vmem:[%s2614 + $0xc] sm:$0xf]
    %v2619 = vld [vmem:[%s2614 + $0x10] sm:$0xf]
    %v2620 = vld [vmem:[%s2614 + $0x14] sm:$0xf]
    %v2621 = vld [vmem:[%s2614 + $0x18] sm:$0xf]
    %v2622 = vld [vmem:[%s2614 + $0x1c] sm:$0xf]
    %v2623 = vld [vmem:[%s2614 + $0x20] sm:$0xf]
    %v2624 = vld [vmem:[%s2614 + $0x24] sm:$0xf]
    %v2625 = vld [vmem:[%s2614 + $0x28] sm:$0xf]
    %v2626 = vld [vmem:[%s2614 + $0x2c] sm:$0xf]
    %v2627 = vld [vmem:[%s2614 + $0x30] sm:$0xf]
    %v2628 = vld [vmem:[%s2614 + $0x34] sm:$0xf]
    %v2629 = vld [vmem:[%s2614 + $0x38] sm:$0xf]
    %v2630 = vld [vmem:[%s2614 + $0x3c] sm:$0xf]
    %s2631 = scalar_lea.vmem %s5, 768
    %v2632 = vld [vmem:[%s2631] sm:$0xff]
    %v2633 = vld [vmem:[%s2631 + $0x8] sm:$0xff]
    %v2634 = vld [vmem:[%s2631 + $0x10] sm:$0xff]
    %v2635 = vld [vmem:[%s2631 + $0x18] sm:$0xff]
    %v2636 = vld [vmem:[%s2631 + $0x20] sm:$0xff]
    %v2637 = vld [vmem:[%s2631 + $0x28] sm:$0xff]
    %v2638 = vld [vmem:[%s2631 + $0x30] sm:$0xff]
    %v2639 = vld [vmem:[%s2631 + $0x38] sm:$0xff]
    %v2640 = vld [vmem:[%s2631 + $0x40] sm:$0xff]
    %v2641 = vld [vmem:[%s2631 + $0x48] sm:$0xff]
    %v2642 = vld [vmem:[%s2631 + $0x50] sm:$0xff]
    %v2643 = vld [vmem:[%s2631 + $0x58] sm:$0xff]
    %v2644 = vld [vmem:[%s2631 + $0x60] sm:$0xff]
    %v2645 = vld [vmem:[%s2631 + $0x68] sm:$0xff]
    %v2646 = vld [vmem:[%s2631 + $0x70] sm:$0xff]
    %v2647 = vld [vmem:[%s2631 + $0x78] sm:$0xff]
    %2649 = vset.pattern.permute.xlu0 0
    %2650 = vperm.xlu0 %2649, %v2632
    %v2651 = vpop.permute.xlu0 %2650
    %2654 = vset.pattern.permute.xlu0 0
    %2655 = vperm.xlu0 %2654, %v2633
    %v2656 = vpop.permute.xlu0 %2655
    %2659 = vset.pattern.permute.xlu0 0
    %2660 = vperm.xlu0 %2659, %v2634
    %v2661 = vpop.permute.xlu0 %2660
    %2664 = vset.pattern.permute.xlu0 0
    %2665 = vperm.xlu0 %2664, %v2635
    %v2666 = vpop.permute.xlu0 %2665
    %2669 = vset.pattern.permute.xlu0 0
    %2670 = vperm.xlu0 %2669, %v2636
    %v2671 = vpop.permute.xlu0 %2670
    %2674 = vset.pattern.permute.xlu0 0
    %2675 = vperm.xlu0 %2674, %v2637
    %v2676 = vpop.permute.xlu0 %2675
    %2679 = vset.pattern.permute.xlu0 0
    %2680 = vperm.xlu0 %2679, %v2638
    %v2681 = vpop.permute.xlu0 %2680
    %2684 = vset.pattern.permute.xlu0 0
    %2685 = vperm.xlu0 %2684, %v2639
    %v2686 = vpop.permute.xlu0 %2685
    %2689 = vset.pattern.permute.xlu0 0
    %2690 = vperm.xlu0 %2689, %v2640
    %v2691 = vpop.permute.xlu0 %2690
    %2694 = vset.pattern.permute.xlu0 0
    %2695 = vperm.xlu0 %2694, %v2641
    %v2696 = vpop.permute.xlu0 %2695
    %2699 = vset.pattern.permute.xlu0 0
    %2700 = vperm.xlu0 %2699, %v2642
    %v2701 = vpop.permute.xlu0 %2700
    %2704 = vset.pattern.permute.xlu0 0
    %2705 = vperm.xlu0 %2704, %v2643
    %v2706 = vpop.permute.xlu0 %2705
    %2709 = vset.pattern.permute.xlu0 0
    %2710 = vperm.xlu0 %2709, %v2644
    %v2711 = vpop.permute.xlu0 %2710
    %2714 = vset.pattern.permute.xlu0 0
    %2715 = vperm.xlu0 %2714, %v2645
    %v2716 = vpop.permute.xlu0 %2715
    %2719 = vset.pattern.permute.xlu0 0
    %2720 = vperm.xlu0 %2719, %v2646
    %v2721 = vpop.permute.xlu0 %2720
    %2724 = vset.pattern.permute.xlu0 0
    %2725 = vperm.xlu0 %2724, %v2647
    %v2726 = vpop.permute.xlu0 %2725
    %v2744 = vunpack.c.l.b16 %v2615
    %v2745 = vunpack.c.l.b16 %v2616
    %v2746 = vunpack.c.l.b16 %v2617
    %v2747 = vunpack.c.l.b16 %v2618
    %v2748 = vunpack.c.l.b16 %v2619
    %v2749 = vunpack.c.l.b16 %v2620
    %v2750 = vunpack.c.l.b16 %v2621
    %v2751 = vunpack.c.l.b16 %v2622
    %v2752 = vunpack.c.l.b16 %v2623
    %v2753 = vunpack.c.l.b16 %v2624
    %v2754 = vunpack.c.l.b16 %v2625
    %v2755 = vunpack.c.l.b16 %v2626
    %v2756 = vunpack.c.l.b16 %v2627
    %v2757 = vunpack.c.l.b16 %v2628
    %v2758 = vunpack.c.l.b16 %v2629
    %v2759 = vunpack.c.l.b16 %v2630
    %v2760 = vpack.c.b16 %v2745, %v2744
    %v2761 = vpack.c.b16 %v2747, %v2746
    %v2762 = vpack.c.b16 %v2749, %v2748
    %v2763 = vpack.c.b16 %v2751, %v2750
    %v2764 = vpack.c.b16 %v2753, %v2752
    %v2765 = vpack.c.b16 %v2755, %v2754
    %v2766 = vpack.c.b16 %v2757, %v2756
    %v2767 = vpack.c.b16 %v2759, %v2758
    %v2769 = vsel %vm70, %v2760, 0
    %v2772 = vsel %vm70, %v2761, 0
    %v2775 = vsel %vm70, %v2762, 0
    %v2778 = vsel %vm70, %v2763, 0
    %v2781 = vsel %vm70, %v2764, 0
    %v2784 = vsel %vm70, %v2765, 0
    %v2787 = vsel %vm70, %v2766, 0
    %v2790 = vsel %vm70, %v2767, 0
    %2792 = vmatprep.subr.bf16.mxu0 0
    %2793 = vmatpush1.bf16.msra.mxu0 %v66
    %2794 = vmatprep.subr.bf16.mxu0 0
    %2795 = vmatpush1.bf16.msra.mxu0 %v67
    %2796 = vmatprep.subr.bf16.mxu0 0
    %2797 = vmatpush1.bf16.msra.mxu0 0
    %2798 = vmatprep.subr.bf16.mxu0 0
    %2799 = vmatpush1.bf16.msra.mxu0 0
    %2800 = vmatprep.subr.bf16.mxu0 0
    %2801 = vmatpush1.bf16.msra.mxu0 0
    %2802 = vmatprep.subr.bf16.mxu0 0
    %2803 = vmatpush1.bf16.msra.mxu0 0
    %2804 = vmatprep.subr.bf16.mxu0 0
    %2805 = vmatpush1.bf16.msra.mxu0 0
    %2806 = vmatprep.subr.bf16.mxu0 0
    %2807 = vmatpush1.bf16.msra.mxu0 0
    %2808 = vmatprep.subr.bf16.mxu0 0
    %2809 = vmatpush1.bf16.msra.mxu0 0
    %2810 = vmatprep.subr.bf16.mxu0 0
    %2811 = vmatpush1.bf16.msra.mxu0 0
    %2812 = vmatprep.subr.bf16.mxu0 0
    %2813 = vmatpush1.bf16.msra.mxu0 0
    %2814 = vmatprep.subr.bf16.mxu0 0
    %2815 = vmatpush1.bf16.msra.mxu0 0
    %2816 = vmatprep.subr.bf16.mxu0 0
    %2817 = vmatpush1.bf16.msra.mxu0 0
    %2818 = vmatprep.subr.bf16.mxu0 0
    %2819 = vmatpush1.bf16.msra.mxu0 0
    %2820 = vmatprep.subr.bf16.mxu0 0
    %2821 = vmatpush1.bf16.msra.mxu0 0
    %2822 = vmatprep.subr.bf16.mxu0 0
    %2823 = vmatpush1.bf16.msra.mxu0 0
    %2824 = vmatprep.mubr.bf16.mxu0 0
    %2825 = vmatmul.mubr.bf16.gmra.mrb[0].mxu0 %v2769
    %v2826 = vpop.f32.mrb[0].mxu0
    %v2827 = vadd.f32 %v2651, %v2826
    %v2828 = vpop.f32.mrb[0].mxu0
    %v2829 = vpop.f32.mrb[0].mxu0
    %v2830 = vadd.f32 %v2656, %v2829
    %v2831 = vpop.f32.mrb[0].mxu0
    %2832 = vmatprep.mubr.bf16.mxu0 0
    %2833 = vmatmul.mubr.bf16.gmra.mrb[0].mxu0 %v2772
    %v2834 = vpop.f32.mrb[0].mxu0
    %v2835 = vadd.f32 %v2661, %v2834
    %v2836 = vpop.f32.mrb[0].mxu0
    %v2837 = vpop.f32.mrb[0].mxu0
    %v2838 = vadd.f32 %v2666, %v2837
    %v2839 = vpop.f32.mrb[0].mxu0
    %2840 = vmatprep.mubr.bf16.mxu0 0
    %2841 = vmatmul.mubr.bf16.gmra.mrb[0].mxu0 %v2775
    %v2842 = vpop.f32.mrb[0].mxu0
    %v2843 = vadd.f32 %v2671, %v2842
    %v2844 = vpop.f32.mrb[0].mxu0
    %v2845 = vpop.f32.mrb[0].mxu0
    %v2846 = vadd.f32 %v2676, %v2845
    %v2847 = vpop.f32.mrb[0].mxu0
    %2848 = vmatprep.mubr.bf16.mxu0 0
    %2849 = vmatmul.mubr.bf16.gmra.mrb[0].mxu0 %v2778
    %v2850 = vpop.f32.mrb[0].mxu0
    %v2851 = vadd.f32 %v2681, %v2850
    %v2852 = vpop.f32.mrb[0].mxu0
    %v2853 = vpop.f32.mrb[0].mxu0
    %v2854 = vadd.f32 %v2686, %v2853
    %v2855 = vpop.f32.mrb[0].mxu0
    %2856 = vmatprep.mubr.bf16.mxu0 0
    %2857 = vmatmul.mubr.bf16.gmra.mrb[0].mxu0 %v2781
    %v2858 = vpop.f32.mrb[0].mxu0
    %v2859 = vadd.f32 %v2691, %v2858
    %v2860 = vpop.f32.mrb[0].mxu0
    %v2861 = vpop.f32.mrb[0].mxu0
    %v2862 = vadd.f32 %v2696, %v2861
    %v2863 = vpop.f32.mrb[0].mxu0
    %2864 = vmatprep.mubr.bf16.mxu0 0
    %2865 = vmatmul.mubr.bf16.gmra.mrb[0].mxu0 %v2784
    %v2866 = vpop.f32.mrb[0].mxu0
    %v2867 = vadd.f32 %v2701, %v2866
    %v2868 = vpop.f32.mrb[0].mxu0
    %v2869 = vpop.f32.mrb[0].mxu0
    %v2870 = vadd.f32 %v2706, %v2869
    %v2871 = vpop.f32.mrb[0].mxu0
    %2872 = vmatprep.mubr.bf16.mxu0 0
    %2873 = vmatmul.mubr.bf16.gmra.mrb[0].mxu0 %v2787
    %v2874 = vpop.f32.mrb[0].mxu0
    %v2875 = vadd.f32 %v2711, %v2874
    %v2876 = vpop.f32.mrb[0].mxu0
    %v2877 = vpop.f32.mrb[0].mxu0
    %v2878 = vadd.f32 %v2716, %v2877
    %v2879 = vpop.f32.mrb[0].mxu0
    %2880 = vmatprep.mubr.bf16.mxu0 0
    %2881 = vmatmul.mubr.bf16.gmra.mrb[0].mxu0 %v2790
    %v2882 = vpop.f32.mrb[0].mxu0
    %v2883 = vadd.f32 %v2721, %v2882
    %v2884 = vpop.f32.mrb[0].mxu0
    %v2885 = vpop.f32.mrb[0].mxu0
    %v2886 = vadd.f32 %v2726, %v2885
    %v2887 = vpop.f32.mrb[0].mxu0
    %2888 = vdwg.mxu0
    %v2889 = vmax.f32 %v2827, 0.0
    %v2890 = vmax.f32 %v2830, 0.0
    %v2891 = vmax.f32 %v2835, 0.0
    %v2892 = vmax.f32 %v2838, 0.0
    %v2893 = vmax.f32 %v2843, 0.0
    %v2894 = vmax.f32 %v2846, 0.0
    %v2895 = vmax.f32 %v2851, 0.0
    %v2896 = vmax.f32 %v2854, 0.0
    %v2897 = vmax.f32 %v2859, 0.0
    %v2898 = vmax.f32 %v2862, 0.0
    %v2899 = vmax.f32 %v2867, 0.0
    %v2900 = vmax.f32 %v2870, 0.0
    %v2901 = vmax.f32 %v2875, 0.0
    %v2902 = vmax.f32 %v2878, 0.0
    %v2903 = vmax.f32 %v2883, 0.0
    %v2904 = vmax.f32 %v2886, 0.0
    %v2905 = vpack.c.bf16 %v2890, %v2889
    %v2906 = vpack.c.bf16 %v2892, %v2891
    %v2907 = vpack.c.bf16 %v2894, %v2893
    %v2908 = vpack.c.bf16 %v2896, %v2895
    %v2909 = vpack.c.bf16 %v2898, %v2897
    %v2910 = vpack.c.bf16 %v2900, %v2899
    %v2911 = vpack.c.bf16 %v2902, %v2901
    %v2912 = vpack.c.bf16 %v2904, %v2903
    %s2913 = scalar_lea.vmem %s6, 96
    %v2914 = vld [vmem:[%s2913] sm:$0xf]
    %v2915 = vld [vmem:[%s2913 + $0x4] sm:$0xf]
    %v2916 = vld [vmem:[%s2913 + $0x8] sm:$0xf]
    %v2917 = vld [vmem:[%s2913 + $0xc] sm:$0xf]
    %s2918 = scalar_lea.vmem %s7, 192
    %v2919 = vld [vmem:[%s2918] sm:$0xff]
    %v2920 = vld [vmem:[%s2918 + $0x8] sm:$0xff]
    %v2921 = vld [vmem:[%s2918 + $0x10] sm:$0xff]
    %v2922 = vld [vmem:[%s2918 + $0x18] sm:$0xff]
    %2924 = vset.pattern.permute.xlu0 0
    %2925 = vperm.xlu0 %2924, %v2919
    %v2926 = vpop.permute.xlu0 %2925
    %2929 = vset.pattern.permute.xlu0 0
    %2930 = vperm.xlu0 %2929, %v2920
    %v2931 = vpop.permute.xlu0 %2930
    %2934 = vset.pattern.permute.xlu0 0
    %2935 = vperm.xlu0 %2934, %v2921
    %v2936 = vpop.permute.xlu0 %2935
    %2939 = vset.pattern.permute.xlu0 0
    %2940 = vperm.xlu0 %2939, %v2922
    %v2941 = vpop.permute.xlu0 %2940
    %v2947 = vunpack.c.l.b16 %v2914
    %v2948 = vunpack.c.l.b16 %v2915
    %v2949 = vunpack.c.l.b16 %v2916
    %v2950 = vunpack.c.l.b16 %v2917
    %v2951 = vpack.c.b16 %v2948, %v2947
    %v2952 = vpack.c.b16 %v2950, %v2949
    %2955 = vmatprep.subr.bf16.mxu0 0
    %2956 = vmatpush1.bf16.msra.mxu0 %v2905
    %2957 = vmatprep.subr.bf16.mxu0 0
    %2958 = vmatpush1.bf16.msra.mxu0 %v2906
    %2959 = vmatprep.subr.bf16.mxu0 0
    %2960 = vmatpush1.bf16.msra.mxu0 %v2907
    %2961 = vmatprep.subr.bf16.mxu0 0
    %2962 = vmatpush1.bf16.msra.mxu0 %v2908
    %2963 = vmatprep.subr.bf16.mxu0 0
    %2964 = vmatpush1.bf16.msra.mxu0 %v2909
    %2965 = vmatprep.subr.bf16.mxu0 0
    %2966 = vmatpush1.bf16.msra.mxu0 %v2910
    %2967 = vmatprep.subr.bf16.mxu0 0
    %2968 = vmatpush1.bf16.msra.mxu0 %v2911
    %2969 = vmatprep.subr.bf16.mxu0 0
    %2970 = vmatpush1.bf16.msra.mxu0 %v2912
    %2971 = vmatprep.subr.bf16.mxu0 0
    %2972 = vmatpush1.bf16.msra.mxu0 0
    %2973 = vmatprep.subr.bf16.mxu0 0
    %2974 = vmatpush1.bf16.msra.mxu0 0
    %2975 = vmatprep.subr.bf16.mxu0 0
    %2976 = vmatpush1.bf16.msra.mxu0 0
    %2977 = vmatprep.subr.bf16.mxu0 0
    %2978 = vmatpush1.bf16.msra.mxu0 0
    %2979 = vmatprep.subr.bf16.mxu0 0
    %2980 = vmatpush1.bf16.msra.mxu0 0
    %2981 = vmatprep.subr.bf16.mxu0 0
    %2982 = vmatpush1.bf16.msra.mxu0 0
    %2983 = vmatprep.subr.bf16.mxu0 0
    %2984 = vmatpush1.bf16.msra.mxu0 0
    %2985 = vmatprep.subr.bf16.mxu0 0
    %2986 = vmatpush1.bf16.msra.mxu0 0
    %2987 = vmatprep.mubr.bf16.mxu0 0
    %2988 = vmatmul.mubr.bf16.gmra.mrb[0].mxu0 %v2951
    %v2989 = vpop.f32.mrb[0].mxu0
    %v2990 = vadd.f32 %v2926, %v2989
    %v2991 = vpop.f32.mrb[0].mxu0
    %v2992 = vpop.f32.mrb[0].mxu0
    %v2993 = vadd.f32 %v2931, %v2992
    %v2994 = vpop.f32.mrb[0].mxu0
    %2995 = vmatprep.mubr.bf16.mxu0 0
    %2996 = vmatmul.mubr.bf16.gmra.mrb[0].mxu0 %v2952
    %v2997 = vpop.f32.mrb[0].mxu0
    %v2998 = vadd.f32 %v2936, %v2997
    %v2999 = vpop.f32.mrb[0].mxu0
    %v3000 = vpop.f32.mrb[0].mxu0
    %v3001 = vadd.f32 %v2941, %v3000
    %v3002 = vpop.f32.mrb[0].mxu0
    %3003 = vdwg.mxu0
    %v3004 = vlaneseq
    %v3005 = vshrl.u32 %v3004, 7
    %v3006 = vsub.s32 6, %v3005
    %v3007 = vrot.slane %v200, %v3006
    %v3008 = vmul.f32 %v3007, %v2990
    %v3009 = vmul.f32 %v3007, %v2993
    %v3010 = vmul.f32 %v3007, %v2998
    %v3011 = vmul.f32 %v3007, %v3001
    %v3012 = vadd.f32 %v2610, %v3008
    %v3013 = vadd.f32 %v2611, %v3009
    %v3014 = vadd.f32 %v2612, %v3010
    %v3015 = vadd.f32 %v2613, %v3011
    %s3016 = scalar_lea.vmem %s4, 448
    %v3017 = vld [vmem:[%s3016] sm:$0xf]
    %v3018 = vld [vmem:[%s3016 + $0x4] sm:$0xf]
    %v3019 = vld [vmem:[%s3016 + $0x8] sm:$0xf]
    %v3020 = vld [vmem:[%s3016 + $0xc] sm:$0xf]
    %v3021 = vld [vmem:[%s3016 + $0x10] sm:$0xf]
    %v3022 = vld [vmem:[%s3016 + $0x14] sm:$0xf]
    %v3023 = vld [vmem:[%s3016 + $0x18] sm:$0xf]
    %v3024 = vld [vmem:[%s3016 + $0x1c] sm:$0xf]
    %v3025 = vld [vmem:[%s3016 + $0x20] sm:$0xf]
    %v3026 = vld [vmem:[%s3016 + $0x24] sm:$0xf]
    %v3027 = vld [vmem:[%s3016 + $0x28] sm:$0xf]
    %v3028 = vld [vmem:[%s3016 + $0x2c] sm:$0xf]
    %v3029 = vld [vmem:[%s3016 + $0x30] sm:$0xf]
    %v3030 = vld [vmem:[%s3016 + $0x34] sm:$0xf]
    %v3031 = vld [vmem:[%s3016 + $0x38] sm:$0xf]
    %v3032 = vld [vmem:[%s3016 + $0x3c] sm:$0xf]
    %s3033 = scalar_lea.vmem %s5, 896
    %v3034 = vld [vmem:[%s3033] sm:$0xff]
    %v3035 = vld [vmem:[%s3033 + $0x8] sm:$0xff]
    %v3036 = vld [vmem:[%s3033 + $0x10] sm:$0xff]
    %v3037 = vld [vmem:[%s3033 + $0x18] sm:$0xff]
    %v3038 = vld [vmem:[%s3033 + $0x20] sm:$0xff]
    %v3039 = vld [vmem:[%s3033 + $0x28] sm:$0xff]
    %v3040 = vld [vmem:[%s3033 + $0x30] sm:$0xff]
    %v3041 = vld [vmem:[%s3033 + $0x38] sm:$0xff]
    %v3042 = vld [vmem:[%s3033 + $0x40] sm:$0xff]
    %v3043 = vld [vmem:[%s3033 + $0x48] sm:$0xff]
    %v3044 = vld [vmem:[%s3033 + $0x50] sm:$0xff]
    %v3045 = vld [vmem:[%s3033 + $0x58] sm:$0xff]
    %v3046 = vld [vmem:[%s3033 + $0x60] sm:$0xff]
    %v3047 = vld [vmem:[%s3033 + $0x68] sm:$0xff]
    %v3048 = vld [vmem:[%s3033 + $0x70] sm:$0xff]
    %v3049 = vld [vmem:[%s3033 + $0x78] sm:$0xff]
    %3051 = vset.pattern.permute.xlu0 0
    %3052 = vperm.xlu0 %3051, %v3034
    %v3053 = vpop.permute.xlu0 %3052
    %3056 = vset.pattern.permute.xlu0 0
    %3057 = vperm.xlu0 %3056, %v3035
    %v3058 = vpop.permute.xlu0 %3057
    %3061 = vset.pattern.permute.xlu0 0
    %3062 = vperm.xlu0 %3061, %v3036
    %v3063 = vpop.permute.xlu0 %3062
    %3066 = vset.pattern.permute.xlu0 0
    %3067 = vperm.xlu0 %3066, %v3037
    %v3068 = vpop.permute.xlu0 %3067
    %3071 = vset.pattern.permute.xlu0 0
    %3072 = vperm.xlu0 %3071, %v3038
    %v3073 = vpop.permute.xlu0 %3072
    %3076 = vset.pattern.permute.xlu0 0
    %3077 = vperm.xlu0 %3076, %v3039
    %v3078 = vpop.permute.xlu0 %3077
    %3081 = vset.pattern.permute.xlu0 0
    %3082 = vperm.xlu0 %3081, %v3040
    %v3083 = vpop.permute.xlu0 %3082
    %3086 = vset.pattern.permute.xlu0 0
    %3087 = vperm.xlu0 %3086, %v3041
    %v3088 = vpop.permute.xlu0 %3087
    %3091 = vset.pattern.permute.xlu0 0
    %3092 = vperm.xlu0 %3091, %v3042
    %v3093 = vpop.permute.xlu0 %3092
    %3096 = vset.pattern.permute.xlu0 0
    %3097 = vperm.xlu0 %3096, %v3043
    %v3098 = vpop.permute.xlu0 %3097
    %3101 = vset.pattern.permute.xlu0 0
    %3102 = vperm.xlu0 %3101, %v3044
    %v3103 = vpop.permute.xlu0 %3102
    %3106 = vset.pattern.permute.xlu0 0
    %3107 = vperm.xlu0 %3106, %v3045
    %v3108 = vpop.permute.xlu0 %3107
    %3111 = vset.pattern.permute.xlu0 0
    %3112 = vperm.xlu0 %3111, %v3046
    %v3113 = vpop.permute.xlu0 %3112
    %3116 = vset.pattern.permute.xlu0 0
    %3117 = vperm.xlu0 %3116, %v3047
    %v3118 = vpop.permute.xlu0 %3117
    %3121 = vset.pattern.permute.xlu0 0
    %3122 = vperm.xlu0 %3121, %v3048
    %v3123 = vpop.permute.xlu0 %3122
    %3126 = vset.pattern.permute.xlu0 0
    %3127 = vperm.xlu0 %3126, %v3049
    %v3128 = vpop.permute.xlu0 %3127
    %v3146 = vunpack.c.l.b16 %v3017
    %v3147 = vunpack.c.l.b16 %v3018
    %v3148 = vunpack.c.l.b16 %v3019
    %v3149 = vunpack.c.l.b16 %v3020
    %v3150 = vunpack.c.l.b16 %v3021
    %v3151 = vunpack.c.l.b16 %v3022
    %v3152 = vunpack.c.l.b16 %v3023
    %v3153 = vunpack.c.l.b16 %v3024
    %v3154 = vunpack.c.l.b16 %v3025
    %v3155 = vunpack.c.l.b16 %v3026
    %v3156 = vunpack.c.l.b16 %v3027
    %v3157 = vunpack.c.l.b16 %v3028
    %v3158 = vunpack.c.l.b16 %v3029
    %v3159 = vunpack.c.l.b16 %v3030
    %v3160 = vunpack.c.l.b16 %v3031
    %v3161 = vunpack.c.l.b16 %v3032
    %v3162 = vpack.c.b16 %v3147, %v3146
    %v3163 = vpack.c.b16 %v3149, %v3148
    %v3164 = vpack.c.b16 %v3151, %v3150
    %v3165 = vpack.c.b16 %v3153, %v3152
    %v3166 = vpack.c.b16 %v3155, %v3154
    %v3167 = vpack.c.b16 %v3157, %v3156
    %v3168 = vpack.c.b16 %v3159, %v3158
    %v3169 = vpack.c.b16 %v3161, %v3160
    %v3171 = vsel %vm70, %v3162, 0
    %v3174 = vsel %vm70, %v3163, 0
    %v3177 = vsel %vm70, %v3164, 0
    %v3180 = vsel %vm70, %v3165, 0
    %v3183 = vsel %vm70, %v3166, 0
    %v3186 = vsel %vm70, %v3167, 0
    %v3189 = vsel %vm70, %v3168, 0
    %v3192 = vsel %vm70, %v3169, 0
    %3194 = vmatprep.subr.bf16.mxu0 0
    %3195 = vmatpush1.bf16.msra.mxu0 %v66
    %3196 = vmatprep.subr.bf16.mxu0 0
    %3197 = vmatpush1.bf16.msra.mxu0 %v67
    %3198 = vmatprep.subr.bf16.mxu0 0
    %3199 = vmatpush1.bf16.msra.mxu0 0
    %3200 = vmatprep.subr.bf16.mxu0 0
    %3201 = vmatpush1.bf16.msra.mxu0 0
    %3202 = vmatprep.subr.bf16.mxu0 0
    %3203 = vmatpush1.bf16.msra.mxu0 0
    %3204 = vmatprep.subr.bf16.mxu0 0
    %3205 = vmatpush1.bf16.msra.mxu0 0
    %3206 = vmatprep.subr.bf16.mxu0 0
    %3207 = vmatpush1.bf16.msra.mxu0 0
    %3208 = vmatprep.subr.bf16.mxu0 0
    %3209 = vmatpush1.bf16.msra.mxu0 0
    %3210 = vmatprep.subr.bf16.mxu0 0
    %3211 = vmatpush1.bf16.msra.mxu0 0
    %3212 = vmatprep.subr.bf16.mxu0 0
    %3213 = vmatpush1.bf16.msra.mxu0 0
    %3214 = vmatprep.subr.bf16.mxu0 0
    %3215 = vmatpush1.bf16.msra.mxu0 0
    %3216 = vmatprep.subr.bf16.mxu0 0
    %3217 = vmatpush1.bf16.msra.mxu0 0
    %3218 = vmatprep.subr.bf16.mxu0 0
    %3219 = vmatpush1.bf16.msra.mxu0 0
    %3220 = vmatprep.subr.bf16.mxu0 0
    %3221 = vmatpush1.bf16.msra.mxu0 0
    %3222 = vmatprep.subr.bf16.mxu0 0
    %3223 = vmatpush1.bf16.msra.mxu0 0
    %3224 = vmatprep.subr.bf16.mxu0 0
    %3225 = vmatpush1.bf16.msra.mxu0 0
    %3226 = vmatprep.mubr.bf16.mxu0 0
    %3227 = vmatmul.mubr.bf16.gmra.mrb[0].mxu0 %v3171
    %v3228 = vpop.f32.mrb[0].mxu0
    %v3229 = vadd.f32 %v3053, %v3228
    %v3230 = vpop.f32.mrb[0].mxu0
    %v3231 = vpop.f32.mrb[0].mxu0
    %v3232 = vadd.f32 %v3058, %v3231
    %v3233 = vpop.f32.mrb[0].mxu0
    %3234 = vmatprep.mubr.bf16.mxu0 0
    %3235 = vmatmul.mubr.bf16.gmra.mrb[0].mxu0 %v3174
    %v3236 = vpop.f32.mrb[0].mxu0
    %v3237 = vadd.f32 %v3063, %v3236
    %v3238 = vpop.f32.mrb[0].mxu0
    %v3239 = vpop.f32.mrb[0].mxu0
    %v3240 = vadd.f32 %v3068, %v3239
    %v3241 = vpop.f32.mrb[0].mxu0
    %3242 = vmatprep.mubr.bf16.mxu0 0
    %3243 = vmatmul.mubr.bf16.gmra.mrb[0].mxu0 %v3177
    %v3244 = vpop.f32.mrb[0].mxu0
    %v3245 = vadd.f32 %v3073, %v3244
    %v3246 = vpop.f32.mrb[0].mxu0
    %v3247 = vpop.f32.mrb[0].mxu0
    %v3248 = vadd.f32 %v3078, %v3247
    %v3249 = vpop.f32.mrb[0].mxu0
    %3250 = vmatprep.mubr.bf16.mxu0 0
    %3251 = vmatmul.mubr.bf16.gmra.mrb[0].mxu0 %v3180
    %v3252 = vpop.f32.mrb[0].mxu0
    %v3253 = vadd.f32 %v3083, %v3252
    %v3254 = vpop.f32.mrb[0].mxu0
    %v3255 = vpop.f32.mrb[0].mxu0
    %v3256 = vadd.f32 %v3088, %v3255
    %v3257 = vpop.f32.mrb[0].mxu0
    %3258 = vmatprep.mubr.bf16.mxu0 0
    %3259 = vmatmul.mubr.bf16.gmra.mrb[0].mxu0 %v3183
    %v3260 = vpop.f32.mrb[0].mxu0
    %v3261 = vadd.f32 %v3093, %v3260
    %v3262 = vpop.f32.mrb[0].mxu0
    %v3263 = vpop.f32.mrb[0].mxu0
    %v3264 = vadd.f32 %v3098, %v3263
    %v3265 = vpop.f32.mrb[0].mxu0
    %3266 = vmatprep.mubr.bf16.mxu0 0
    %3267 = vmatmul.mubr.bf16.gmra.mrb[0].mxu0 %v3186
    %v3268 = vpop.f32.mrb[0].mxu0
    %v3269 = vadd.f32 %v3103, %v3268
    %v3270 = vpop.f32.mrb[0].mxu0
    %v3271 = vpop.f32.mrb[0].mxu0
    %v3272 = vadd.f32 %v3108, %v3271
    %v3273 = vpop.f32.mrb[0].mxu0
    %3274 = vmatprep.mubr.bf16.mxu0 0
    %3275 = vmatmul.mubr.bf16.gmra.mrb[0].mxu0 %v3189
    %v3276 = vpop.f32.mrb[0].mxu0
    %v3277 = vadd.f32 %v3113, %v3276
    %v3278 = vpop.f32.mrb[0].mxu0
    %v3279 = vpop.f32.mrb[0].mxu0
    %v3280 = vadd.f32 %v3118, %v3279
    %v3281 = vpop.f32.mrb[0].mxu0
    %3282 = vmatprep.mubr.bf16.mxu0 0
    %3283 = vmatmul.mubr.bf16.gmra.mrb[0].mxu0 %v3192
    %v3284 = vpop.f32.mrb[0].mxu0
    %v3285 = vadd.f32 %v3123, %v3284
    %v3286 = vpop.f32.mrb[0].mxu0
    %v3287 = vpop.f32.mrb[0].mxu0
    %v3288 = vadd.f32 %v3128, %v3287
    %v3289 = vpop.f32.mrb[0].mxu0
    %3290 = vdwg.mxu0
    %v3291 = vmax.f32 %v3229, 0.0
    %v3292 = vmax.f32 %v3232, 0.0
    %v3293 = vmax.f32 %v3237, 0.0
    %v3294 = vmax.f32 %v3240, 0.0
    %v3295 = vmax.f32 %v3245, 0.0
    %v3296 = vmax.f32 %v3248, 0.0
    %v3297 = vmax.f32 %v3253, 0.0
    %v3298 = vmax.f32 %v3256, 0.0
    %v3299 = vmax.f32 %v3261, 0.0
    %v3300 = vmax.f32 %v3264, 0.0
    %v3301 = vmax.f32 %v3269, 0.0
    %v3302 = vmax.f32 %v3272, 0.0
    %v3303 = vmax.f32 %v3277, 0.0
    %v3304 = vmax.f32 %v3280, 0.0
    %v3305 = vmax.f32 %v3285, 0.0
    %v3306 = vmax.f32 %v3288, 0.0
    %v3307 = vpack.c.bf16 %v3292, %v3291
    %v3308 = vpack.c.bf16 %v3294, %v3293
    %v3309 = vpack.c.bf16 %v3296, %v3295
    %v3310 = vpack.c.bf16 %v3298, %v3297
    %v3311 = vpack.c.bf16 %v3300, %v3299
    %v3312 = vpack.c.bf16 %v3302, %v3301
    %v3313 = vpack.c.bf16 %v3304, %v3303
    %v3314 = vpack.c.bf16 %v3306, %v3305
    %s3315 = scalar_lea.vmem %s6, 112
    %v3316 = vld [vmem:[%s3315] sm:$0xf]
    %v3317 = vld [vmem:[%s3315 + $0x4] sm:$0xf]
    %v3318 = vld [vmem:[%s3315 + $0x8] sm:$0xf]
    %v3319 = vld [vmem:[%s3315 + $0xc] sm:$0xf]
    %s3320 = scalar_lea.vmem %s7, 224
    %v3321 = vld [vmem:[%s3320] sm:$0xff]
    %v3322 = vld [vmem:[%s3320 + $0x8] sm:$0xff]
    %v3323 = vld [vmem:[%s3320 + $0x10] sm:$0xff]
    %v3324 = vld [vmem:[%s3320 + $0x18] sm:$0xff]
    %3326 = vset.pattern.permute.xlu0 0
    %3327 = vperm.xlu0 %3326, %v3321
    %v3328 = vpop.permute.xlu0 %3327
    %3331 = vset.pattern.permute.xlu0 0
    %3332 = vperm.xlu0 %3331, %v3322
    %v3333 = vpop.permute.xlu0 %3332
    %3336 = vset.pattern.permute.xlu0 0
    %3337 = vperm.xlu0 %3336, %v3323
    %v3338 = vpop.permute.xlu0 %3337
    %3341 = vset.pattern.permute.xlu0 0
    %3342 = vperm.xlu0 %3341, %v3324
    %v3343 = vpop.permute.xlu0 %3342
    %v3349 = vunpack.c.l.b16 %v3316
    %v3350 = vunpack.c.l.b16 %v3317
    %v3351 = vunpack.c.l.b16 %v3318
    %v3352 = vunpack.c.l.b16 %v3319
    %v3353 = vpack.c.b16 %v3350, %v3349
    %v3354 = vpack.c.b16 %v3352, %v3351
    %3357 = vmatprep.subr.bf16.mxu0 0
    %3358 = vmatpush1.bf16.msra.mxu0 %v3307
    %3359 = vmatprep.subr.bf16.mxu0 0
    %3360 = vmatpush1.bf16.msra.mxu0 %v3308
    %3361 = vmatprep.subr.bf16.mxu0 0
    %3362 = vmatpush1.bf16.msra.mxu0 %v3309
    %3363 = vmatprep.subr.bf16.mxu0 0
    %3364 = vmatpush1.bf16.msra.mxu0 %v3310
    %3365 = vmatprep.subr.bf16.mxu0 0
    %3366 = vmatpush1.bf16.msra.mxu0 %v3311
    %3367 = vmatprep.subr.bf16.mxu0 0
    %3368 = vmatpush1.bf16.msra.mxu0 %v3312
    %3369 = vmatprep.subr.bf16.mxu0 0
    %3370 = vmatpush1.bf16.msra.mxu0 %v3313
    %3371 = vmatprep.subr.bf16.mxu0 0
    %3372 = vmatpush1.bf16.msra.mxu0 %v3314
    %3373 = vmatprep.subr.bf16.mxu0 0
    %3374 = vmatpush1.bf16.msra.mxu0 0
    %3375 = vmatprep.subr.bf16.mxu0 0
    %3376 = vmatpush1.bf16.msra.mxu0 0
    %3377 = vmatprep.subr.bf16.mxu0 0
    %3378 = vmatpush1.bf16.msra.mxu0 0
    %3379 = vmatprep.subr.bf16.mxu0 0
    %3380 = vmatpush1.bf16.msra.mxu0 0
    %3381 = vmatprep.subr.bf16.mxu0 0
    %3382 = vmatpush1.bf16.msra.mxu0 0
    %3383 = vmatprep.subr.bf16.mxu0 0
    %3384 = vmatpush1.bf16.msra.mxu0 0
    %3385 = vmatprep.subr.bf16.mxu0 0
    %3386 = vmatpush1.bf16.msra.mxu0 0
    %3387 = vmatprep.subr.bf16.mxu0 0
    %3388 = vmatpush1.bf16.msra.mxu0 0
    %3389 = vmatprep.mubr.bf16.mxu0 0
    %3390 = vmatmul.mubr.bf16.gmra.mrb[0].mxu0 %v3353
    %v3391 = vpop.f32.mrb[0].mxu0
    %v3392 = vadd.f32 %v3328, %v3391
    %v3393 = vpop.f32.mrb[0].mxu0
    %v3394 = vpop.f32.mrb[0].mxu0
    %v3395 = vadd.f32 %v3333, %v3394
    %v3396 = vpop.f32.mrb[0].mxu0
    %3397 = vmatprep.mubr.bf16.mxu0 0
    %3398 = vmatmul.mubr.bf16.gmra.mrb[0].mxu0 %v3354
    %v3399 = vpop.f32.mrb[0].mxu0
    %v3400 = vadd.f32 %v3338, %v3399
    %v3401 = vpop.f32.mrb[0].mxu0
    %v3402 = vpop.f32.mrb[0].mxu0
    %v3403 = vadd.f32 %v3343, %v3402
    %v3404 = vpop.f32.mrb[0].mxu0
    %3405 = vdwg.mxu0
    %v3406 = vlaneseq
    %v3407 = vshrl.u32 %v3406, 7
    %v3408 = vsub.s32 7, %v3407
    %v3409 = vrot.slane %v200, %v3408
    %v3410 = vmul.f32 %v3409, %v3392
    %v3411 = vmul.f32 %v3409, %v3395
    %v3412 = vmul.f32 %v3409, %v3400
    %v3413 = vmul.f32 %v3409, %v3403
    %v3414 = vadd.f32 %v3012, %v3410
    %v3415 = vadd.f32 %v3013, %v3411
    %v3416 = vadd.f32 %v3014, %v3412
    %v3417 = vadd.f32 %v3015, %v3413
    %3418 = vst.msk [vmem:[%s8] sm:$0xff] %vm138, %v3414
    %3419 = vst.msk [vmem:[%s8 + $0x8] sm:$0xff] %vm138, %v3415
    %3420 = vst.msk [vmem:[%s8 + $0x10] sm:$0xff] %vm138, %v3416
    %3421 = vst.msk [vmem:[%s8 + $0x18] sm:$0xff] %vm138, %v3417
    // Predicated region
    $region34: #{tpu_custom_call.1} parent=1 // pred_check
      _
    $region35: #{tpu_custom_call.1} parent=1 // pred_check_branch
      %3423 = sbr.rel (0) target = $region37
    $region36: #{tpu_custom_call.1} parent=1 // pred_region
      _
    $region37: #{tpu_custom_call.1} parent=1 // pred_fallthru
      _
    // Predicated region
    $region38: #{tpu_custom_call.1} parent=1 // pred_check
      _
    $region39: #{tpu_custom_call.1} parent=1 // pred_check_branch
      %3425 = sbr.rel (0) target = $region41
    $region40: #{tpu_custom_call.1} parent=1 // pred_region
      %s3427 = ssub.s32 128, 128
      %3428 = vsyncadd [#allocation3], %s3427
      %s3430 = sshll.u32 [#allocation2], 4
      %s3431 = int_to_ptr.vmem [resolvable:$true] %s3430
      %3433 = dma.vmem_to_hbm [thread:$0]  %s3431, 128, %s9, [#allocation3]
    $region41: #{tpu_custom_call.1} parent=1 // pred_fallthru
      _
    // Predicated region
    $region42: #{tpu_custom_call.1} parent=1 // pred_check
      _
    $region43: #{tpu_custom_call.1} parent=1 // pred_check_branch
      %3435 = sbr.rel (0) target = $region45
    $region44: #{tpu_custom_call.1} parent=1 // pred_region
      %s3437 = ssub.s32 32, 32
      %3438 = vsyncadd [#allocation5], %s3437
      %s3440 = sshll.u32 [#allocation4], 4
      %s3441 = int_to_ptr.vmem [resolvable:$true] %s3440
      %3443 = dma.vmem_to_hbm [thread:$0]  %s3441, 32, %s10, [#allocation5]
    $region45: #{tpu_custom_call.1} parent=1 // pred_fallthru
      _
    // Predicated region
    $region46: #{tpu_custom_call.1} parent=1 // pred_check
      _
    $region47: #{tpu_custom_call.1} parent=1 // pred_check_branch
      %3445 = sbr.rel (0) target = $region49
    $region48: #{tpu_custom_call.1} parent=1 // pred_region
      _
    $region49: #{tpu_custom_call.1} parent=1 // pred_fallthru
      _
    // Predicated region
    $region50: #{tpu_custom_call.1} parent=1 // pred_check
      _
    $region51: #{tpu_custom_call.1} parent=1 // pred_check_branch
      %3447 = sbr.rel (0) target = $region53
    $region52: #{tpu_custom_call.1} parent=1 // pred_region
      %3448 = dma.done [#allocation3], 128
    $region53: #{tpu_custom_call.1} parent=1 // pred_fallthru
      _
    // Predicated region
    $region54: #{tpu_custom_call.1} parent=1 // pred_check
      _
    $region55: #{tpu_custom_call.1} parent=1 // pred_check_branch
      %3450 = sbr.rel (0) target = $region57
    $region56: #{tpu_custom_call.1} parent=1 // pred_region
      %3451 = dma.done [#allocation5], 32
    $region57: #{tpu_custom_call.1} parent=1 // pred_fallthru
      _
    %3452 = vsyncpa [#allocation3], 1
    %3453 = vsyncpa [#allocation5], 1

</llo_original>
